<compile_context>
chip_gen: v7x
topology: tpu7x:2x2x1
jax: 0.10.0
libtpu: 0.0.40
codegen_flags: <defaults>
</compile_context>

<pallas_src>
import functools

import jax
import jax.numpy as jnp
from jax.experimental import pallas as pl
from jax.experimental.pallas import tpu as pltpu

N_INPUT = 12
N_HIDDEN = 128
N_OUT = 8
NUM_LAYERS = 2  # hard-coded as two stacked LSTM layers in the kernel


def _lstm_mlp_kernel(x_ref,                     # (T*bt, F)  f32, time-major rows of this batch tile
                     wih0_ref, b0_ref,           # (F, 4H) bf16, (1, 4H) f32  (b0 = bih0+bhh0, gate-reordered)
                     wbig_ref, b1_ref,           # (2H, 8H) bf16 = [[Whh0|Wih1],[0|Whh1]], (1, 4H) f32
                     w1_ref, bl1_ref,            # (H, H) bf16, (1, H) f32
                     w2_ref, bl2_ref,            # (H, H) bf16, (1, H) f32
                     w3_ref, bl3_ref,            # (H, 128) bf16 (zero-padded), (1, 128) f32
                     out_ref,                    # (bt, 128) f32
                     hcat_ref,                   # scratch (bt, 2H) f32: [h0 | h1]
                     *, seq_len):
    T = seq_len
    TB, _ = x_ref.shape
    bt = TB // T
    H = wbig_ref.shape[0] // 2
    bf = jnp.bfloat16

    # ---- Hoisted layer-0 input projection for ALL timesteps (one matmul), bias folded in.
    xw0 = (jnp.dot(x_ref[...].astype(bf), wih0_ref[...],
                   preferred_element_type=jnp.float32)
           + b0_ref[...])                                   # (T*bt, 4H) f32

    wbig = wbig_ref[...]                                    # (2H, 8H) bf16
    b1b = jnp.broadcast_to(b1_ref[...], (bt, 4 * H))        # hoisted bias broadcast, f32

    def gates_to_hc(g, c):
        # gate column order is [i, f, o | g]: one sigmoid over 3H lanes, one tanh over H.
        sig = jax.nn.sigmoid(g[:, :3 * H])
        i = sig[:, 0 * H:1 * H]
        f = sig[:, 1 * H:2 * H]
        o = sig[:, 2 * H:3 * H]
        gg = jnp.tanh(g[:, 3 * H:4 * H])
        c_new = f * c + i * gg                               # f32 state
        h_new = o * jnp.tanh(c_new)
        return h_new, c_new

    zeros = jnp.zeros((bt, H), jnp.float32)
    c0, c1, h1 = zeros, zeros, zeros

    # Step-0 layer 0: h0(-1) = 0, so the recurrent term vanishes -> no matmul needed.
    h0, c0 = gates_to_hc(xw0[0:bt, :], c0)
    hcat_ref[:, :H] = h0                      # h0(0)
    hcat_ref[:, H:] = zeros                   # h1(-1) = 0

    # Fully unrolled recurrence (T static).  Each iteration issues exactly ONE MXU dot:
    #   fused[:, :4H]  = h0(t) @ Whh0          (layer-0 recurrent part, used at step t+1)
    #   fused[:, 4H:]  = [h0(t), h1(t-1)] @ [Wih1; Whh1]   (layer-1 gates for step t)
    for t in range(T):
        fused = jnp.dot(hcat_ref[...].astype(bf), wbig,
                        preferred_element_type=jnp.float32)       # (bt, 8H) f32

        # Layer 1 at step t.
        h1, c1 = gates_to_hc(fused[:, 4 * H:] + b1b, c1)
        hcat_ref[:, H:] = h1

        if t + 1 < T:
            # Layer 0 at step t+1 (recurrent contribution came from the fused dot).
            g0 = xw0[(t + 1) * bt:(t + 2) * bt, :] + fused[:, :4 * H]
            h0, c0 = gates_to_hc(g0, c0)
            hcat_ref[:, :H] = h0

    # MLP head on the last hidden state of the top layer: relu -> relu -> linear.
    y = jnp.maximum(
        jnp.dot(h1.astype(bf), w1_ref[...], preferred_element_type=jnp.float32)
        + bl1_ref[...], 0.0)
    y = jnp.maximum(
        jnp.dot(y.astype(bf), w2_ref[...], preferred_element_type=jnp.float32)
        + bl2_ref[...], 0.0)
    y = (jnp.dot(y.astype(bf), w3_ref[...], preferred_element_type=jnp.float32)
         + bl3_ref[...])                                          # (bt, 128), cols >= N_OUT are 0
    out_ref[...] = y.astype(out_ref.dtype)


def _round_up(a, m):
    return (a + m - 1) // m * m


def lstm_weather_forward(x_btf, kp):
    """x_btf: (batch, seq, n_input) float32, like the PyTorch module's input."""
    B, T, F = x_btf.shape
    H = N_HIDDEN

    # Pad batch to a multiple of 8 (sublane alignment) and tile it (<=128 rows per tile).
    B8 = max(8, _round_up(B, 8))
    bt = min(128, B8)
    B_pad = _round_up(B8, bt)
    n_tiles = B_pad // bt

    # Time-major, per-batch-tile-contiguous slab:
    #   row [i*(T*bt) + t*bt + b] = x[i*bt + b, t, :]
    x_tbf = jnp.transpose(x_btf, (1, 0, 2))                 # (T, B, F)
    if B_pad != B:
        x_tbf = jnp.pad(x_tbf, ((0, 0), (0, B_pad - B), (0, 0)))
    x_slab = (x_tbf.reshape(T, n_tiles, bt, F)
              .transpose(1, 0, 2, 3)
              .reshape(n_tiles * T * bt, F))

    inputs = (
        x_slab,
        kp["wih0"], kp["b0"],
        kp["w_big"], kp["b1"],
        kp["w1"], kp["bl1"],
        kp["w2"], kp["bl2"],
        kp["w3"], kp["bl3"],
    )

    def const2d(a):  # full-array block, resident across all grid steps
        return pl.BlockSpec(a.shape, lambda i: (0, 0))

    grid_spec = pltpu.PrefetchScalarGridSpec(
        num_scalar_prefetch=0,
        grid=(n_tiles,),
        in_specs=[pl.BlockSpec((T * bt, F), lambda i: (i, 0))]
                 + [const2d(a) for a in inputs[1:]],
        out_specs=pl.BlockSpec((bt, 128), lambda i: (i, 0)),
        scratch_shapes=[pltpu.VMEM((bt, 2 * H), jnp.float32)],
    )

    out = pl.pallas_call(
        functools.partial(_lstm_mlp_kernel, seq_len=T),
        out_shape=jax.ShapeDtypeStruct((B_pad, 128), jnp.float32),
        grid_spec=grid_spec,
        compiler_params=pltpu.CompilerParams(
            dimension_semantics=("parallel",)),
    )(*inputs)
    return out[:B, :N_OUT]


# -------------------- parameter init / prep --------------------

def init_params(key):
    """PyTorch-layout f32 params, uniform(-1/sqrt(H), 1/sqrt(H)) like nn.LSTM/nn.Linear."""
    H, F, O = N_HIDDEN, N_INPUT, N_OUT
    bound = 1.0 / (H ** 0.5)
    ks = jax.random.split(key, 16)
    u = lambda k, shape: jax.random.uniform(k, shape, jnp.float32, -bound, bound)
    return dict(
        # LSTM layer 0 (PyTorch shapes: w_ih (4H, F), w_hh (4H, H), biases (4H,))
        wih0=u(ks[0], (4 * H, F)), whh0=u(ks[1], (4 * H, H)),
        bih0=u(ks[2], (4 * H,)), bhh0=u(ks[3], (4 * H,)),
        # LSTM layer 1 (input size H)
        wih1=u(ks[4], (4 * H, H)), whh1=u(ks[5], (4 * H, H)),
        bih1=u(ks[6], (4 * H,)), bhh1=u(ks[7], (4 * H,)),
        # Linear heads (PyTorch shape: (out, in))
        w1=u(ks[8], (H, H)), bl1=u(ks[9], (H,)),
        w2=u(ks[10], (H, H)), bl2=u(ks[11], (H,)),
        w3=u(ks[12], (O, H)), bl3=u(ks[13], (O,)),
    )


def _perm_gates(a, axis=0):
    """Reorder PyTorch gate chunks [i, f, g, o] -> kernel order [i, f, o, g]."""
    i, f, g, o = jnp.split(a, 4, axis=axis)
    return jnp.concatenate([i, f, o, g], axis=axis)


def prepare_kernel_params(p):
    """Pre-transpose to (in, out), reorder gates, build the fused recurrence weight
    w_big = [[Whh0 | Wih1], [0 | Whh1]] (rows 0:H multiply h0, rows H:2H multiply h1),
    zero-pad the head output to 128 lanes, cast matmul operands to bf16 (biases stay
    f32 — they are added after f32 accumulation)."""
    H, O = N_HIDDEN, N_OUT
    bf = jnp.bfloat16

    whh0_t = _perm_gates(p["whh0"]).T            # (H, 4H)
    wih1_t = _perm_gates(p["wih1"]).T            # (H, 4H)
    whh1_t = _perm_gates(p["whh1"]).T            # (H, 4H)
    w_big = jnp.concatenate(
        [jnp.concatenate([whh0_t, wih1_t], axis=1),                  # rows for h0
         jnp.concatenate([jnp.zeros_like(whh1_t), whh1_t], axis=1)], # rows for h1
        axis=0).astype(bf)                                           # (2H, 8H)

    w3p = jnp.zeros((H, 128), jnp.float32).at[:, :O].set(p["w3"].T)
    bl3p = jnp.zeros((1, 128), jnp.float32).at[:, :O].set(p["bl3"].reshape(1, O))

    return dict(
        wih0=_perm_gates(p["wih0"]).T.astype(bf),                 # (F, 4H)
        b0=_perm_gates(p["bih0"] + p["bhh0"]).reshape(1, 4 * H),  # (1, 4H) f32
        w_big=w_big,                                              # (2H, 8H) bf16
        b1=_perm_gates(p["bih1"] + p["bhh1"]).reshape(1, 4 * H),  # (1, 4H) f32
        w1=p["w1"].T.astype(bf), bl1=p["bl1"].reshape(1, H),
        w2=p["w2"].T.astype(bf), bl2=p["bl2"].reshape(1, H),
        w3=w3p.astype(bf), bl3=bl3p,                              # (H, 128) bf16, (1, 128) f32
    )


# -------------------- pure-JAX references (PyTorch semantics) --------------------

def _reference(x_btf, params, mm):
    """Shared reference body; `mm(a, w_pt)` computes a @ w_pt.T."""
    H = N_HIDDEN
    B, T, _ = x_btf.shape

    def cell(x_t, h, c, w_ih, w_hh, b_ih, b_hh):
        g = mm(x_t, w_ih) + mm(h, w_hh) + b_ih + b_hh
        i = jax.nn.sigmoid(g[:, :H]); f = jax.nn.sigmoid(g[:, H:2 * H])
        gg = jnp.tanh(g[:, 2 * H:3 * H]); o = jax.nn.sigmoid(g[:, 3 * H:])
        c = f * c + i * gg
        return o * jnp.tanh(c), c

    h0 = c0 = h1 = c1 = jnp.zeros((B, H), jnp.float32)
    for t in range(T):
        h0, c0 = cell(x_btf[:, t, :], h0, c0, params["wih0"], params["whh0"],
                      params["bih0"], params["bhh0"])
        h1, c1 = cell(h0, h1, c1, params["wih1"], params["whh1"],
                      params["bih1"], params["bhh1"])
    y = jnp.maximum(mm(h1, params["w1"]) + params["bl1"], 0.0)
    y = jnp.maximum(mm(y, params["w2"]) + params["bl2"], 0.0)
    return mm(y, params["w3"]) + params["bl3"]


def reference_forward_f32(x_btf, params):
    return _reference(x_btf, params, lambda a, w: a @ w.T)


def reference_forward_bf16(x_btf, params):
    """Same math with bf16 matmul operands / f32 accumulation, mirroring the kernel."""
    bf = jnp.bfloat16
    mm = lambda a, w: jnp.dot(a.astype(bf), w.T.astype(bf),
                              preferred_element_type=jnp.float32)
    return _reference(x_btf, params, mm)


if __name__ == "__main__":
    key = jax.random.PRNGKey(0)
    k_x, k_p = jax.random.split(key)

    batch, seq = 2, 8
    x = jax.random.normal(k_x, (batch, seq, N_INPUT), jnp.float32)
    params = init_params(k_p)
    kparams = prepare_kernel_params(params)

    out = jax.block_until_ready(lstm_weather_forward(x, kparams))
    assert out.shape == (batch, N_OUT), out.shape

    ref_bf16 = reference_forward_bf16(x, params)   # tight: same operand precision
    ref_f32 = reference_forward_f32(x, params)     # loose: full-f32 PyTorch math
    assert jnp.allclose(out, ref_bf16, atol=5e-3, rtol=5e-3), "mismatch vs bf16-matched ref"
    assert jnp.allclose(out, ref_f32, atol=2e-2, rtol=2e-2), "mismatch vs f32 reference"

    print("KERNEL_OK")
</pallas_src>

<mosaic_0001>
module attributes {stable_mosaic.version = 11 : i64} {
  func.func @_lstm_mlp_kernel(%arg0: i32, %arg1: memref<64x12xf32, #tpu.memory_space<vmem>>, %arg2: memref<12x512xbf16, #tpu.memory_space<vmem>>, %arg3: memref<1x512xf32, #tpu.memory_space<vmem>>, %arg4: memref<256x1024xbf16, #tpu.memory_space<vmem>>, %arg5: memref<1x512xf32, #tpu.memory_space<vmem>>, %arg6: memref<128x128xbf16, #tpu.memory_space<vmem>>, %arg7: memref<1x128xf32, #tpu.memory_space<vmem>>, %arg8: memref<128x128xbf16, #tpu.memory_space<vmem>>, %arg9: memref<1x128xf32, #tpu.memory_space<vmem>>, %arg10: memref<128x128xbf16, #tpu.memory_space<vmem>>, %arg11: memref<1x128xf32, #tpu.memory_space<vmem>>, %arg12: memref<8x128xf32, #tpu.memory_space<vmem>>, %arg13: memref<8x256xf32, #tpu.memory_space<vmem>>) attributes {dimension_semantics = [#tpu.dimension_semantics<parallel>], iteration_bounds = array<i64: 1>, scalar_prefetch = 0 : i64, scratch_operands = 1 : i64, tpu.core_type = #tpu.core_type<tc>, window_params = [{transform_indices = @transform_0, window_bounds = array<i64: 64, 12>}, {pipeline_mode = #tpu.pipeline_mode<synchronous>, transform_indices = @transform_1, window_bounds = array<i64: 12, 512>}, {pipeline_mode = #tpu.pipeline_mode<synchronous>, transform_indices = @transform_2, window_bounds = array<i64: 1, 512>}, {pipeline_mode = #tpu.pipeline_mode<synchronous>, transform_indices = @transform_3, window_bounds = array<i64: 256, 1024>}, {pipeline_mode = #tpu.pipeline_mode<synchronous>, transform_indices = @transform_4, window_bounds = array<i64: 1, 512>}, {pipeline_mode = #tpu.pipeline_mode<synchronous>, transform_indices = @transform_5, window_bounds = array<i64: 128, 128>}, {pipeline_mode = #tpu.pipeline_mode<synchronous>, transform_indices = @transform_6, window_bounds = array<i64: 1, 128>}, {pipeline_mode = #tpu.pipeline_mode<synchronous>, transform_indices = @transform_7, window_bounds = array<i64: 128, 128>}, {pipeline_mode = #tpu.pipeline_mode<synchronous>, transform_indices = @transform_8, window_bounds = array<i64: 1, 128>}, {pipeline_mode = #tpu.pipeline_mode<synchronous>, transform_indices = @transform_9, window_bounds = array<i64: 128, 128>}, {pipeline_mode = #tpu.pipeline_mode<synchronous>, transform_indices = @transform_10, window_bounds = array<i64: 1, 128>}, {transform_indices = @transform_11, window_bounds = array<i64: 8, 128>}]} {
    %c0 = arith.constant 0 : index
    %c0_0 = arith.constant 0 : index
    %0 = vector.load %arg1[%c0, %c0_0] : memref<64x12xf32, #tpu.memory_space<vmem>>, vector<64x12xf32>
    %1 = arith.truncf %0 : vector<64x12xf32> to vector<64x12xbf16>
    %c0_1 = arith.constant 0 : index
    %c0_2 = arith.constant 0 : index
    %2 = vector.load %arg2[%c0_1, %c0_2] : memref<12x512xbf16, #tpu.memory_space<vmem>>, vector<12x512xbf16>
    %cst = arith.constant dense<0.000000e+00> : vector<64x512xf32>
    %3 = tpu.matmul %1, %2, %cst {dimension_numbers = #tpu.dot_dimension_numbers<[1], [0], [0], [1], [0, 0, 1, 1], [], []>} : vector<64x12xbf16>, vector<12x512xbf16>, vector<64x512xf32> -> vector<64x512xf32>
    %c0_3 = arith.constant 0 : index
    %c0_4 = arith.constant 0 : index
    %4 = vector.load %arg3[%c0_3, %c0_4] : memref<1x512xf32, #tpu.memory_space<vmem>>, vector<1x512xf32>
    %5 = vector.broadcast %4 : vector<1x512xf32> to vector<64x512xf32>
    %6 = arith.addf %3, %5 : vector<64x512xf32>
    %c0_5 = arith.constant 0 : index
    %c0_6 = arith.constant 0 : index
    %7 = vector.load %arg4[%c0_5, %c0_6] : memref<256x1024xbf16, #tpu.memory_space<vmem>>, vector<256x1024xbf16>
    %c0_7 = arith.constant 0 : index
    %c0_8 = arith.constant 0 : index
    %8 = vector.load %arg5[%c0_7, %c0_8] : memref<1x512xf32, #tpu.memory_space<vmem>>, vector<1x512xf32>
    %9 = vector.shape_cast %8 : vector<1x512xf32> to vector<1x512xf32>
    %10 = vector.broadcast %9 : vector<1x512xf32> to vector<8x512xf32>
    %cst_9 = arith.constant 0.000000e+00 : f32
    %11 = vector.broadcast %cst_9 : f32 to vector<8x128xf32>
    %12 = vector.extract_strided_slice %6 {offsets = [0, 0], sizes = [8, 512], strides = [1, 1]} : vector<64x512xf32> to vector<8x512xf32>
    %13 = vector.extract_strided_slice %12 {offsets = [0, 0], sizes = [8, 384], strides = [1, 1]} : vector<8x512xf32> to vector<8x384xf32>
    %14 = arith.negf %13 : vector<8x384xf32>
    %15 = math.exp %14 : vector<8x384xf32>
    %cst_10 = arith.constant 1.000000e+00 : f32
    %16 = vector.broadcast %cst_10 : f32 to vector<8x384xf32>
    %17 = arith.addf %16, %15 : vector<8x384xf32>
    %18 = arith.divf %16, %17 : vector<8x384xf32>
    %19 = vector.extract_strided_slice %18 {offsets = [0, 0], sizes = [8, 128], strides = [1, 1]} : vector<8x384xf32> to vector<8x128xf32>
    %20 = vector.extract_strided_slice %18 {offsets = [0, 128], sizes = [8, 128], strides = [1, 1]} : vector<8x384xf32> to vector<8x128xf32>
    %21 = vector.extract_strided_slice %18 {offsets = [0, 256], sizes = [8, 128], strides = [1, 1]} : vector<8x384xf32> to vector<8x128xf32>
    %22 = vector.extract_strided_slice %12 {offsets = [0, 384], sizes = [8, 128], strides = [1, 1]} : vector<8x512xf32> to vector<8x128xf32>
    %23 = math.tanh %22 : vector<8x128xf32>
    %24 = arith.mulf %20, %11 : vector<8x128xf32>
    %25 = arith.mulf %19, %23 : vector<8x128xf32>
    %26 = arith.addf %24, %25 : vector<8x128xf32>
    %27 = math.tanh %26 : vector<8x128xf32>
    %28 = arith.mulf %21, %27 : vector<8x128xf32>
    %c0_11 = arith.constant 0 : index
    %c0_12 = arith.constant 0 : index
    %29 = vector.load %arg13[%c0_11, %c0_12] : memref<8x256xf32, #tpu.memory_space<vmem>>, vector<8x128xf32>
    tpu.vector_store %arg13[%c0_11, %c0_12], %28 {strides = array<i32>} : memref<8x256xf32, #tpu.memory_space<vmem>>, vector<8x128xf32>,
    %c0_13 = arith.constant 0 : index
    %c128 = arith.constant 128 : index
    %30 = vector.load %arg13[%c0_13, %c128] : memref<8x256xf32, #tpu.memory_space<vmem>>, vector<8x128xf32>
    tpu.vector_store %arg13[%c0_13, %c128], %11 {strides = array<i32>} : memref<8x256xf32, #tpu.memory_space<vmem>>, vector<8x128xf32>,
    %c0_14 = arith.constant 0 : index
    %c0_15 = arith.constant 0 : index
    %31 = vector.load %arg13[%c0_14, %c0_15] : memref<8x256xf32, #tpu.memory_space<vmem>>, vector<8x256xf32>
    %32 = arith.truncf %31 : vector<8x256xf32> to vector<8x256xbf16>
    %cst_16 = arith.constant dense<0.000000e+00> : vector<8x1024xf32>
    %33 = tpu.matmul %32, %7, %cst_16 {dimension_numbers = #tpu.dot_dimension_numbers<[1], [0], [0], [1], [0, 0, 1, 1], [], []>} : vector<8x256xbf16>, vector<256x1024xbf16>, vector<8x1024xf32> -> vector<8x1024xf32>
    %34 = vector.extract_strided_slice %33 {offsets = [0, 512], sizes = [8, 512], strides = [1, 1]} : vector<8x1024xf32> to vector<8x512xf32>
    %35 = arith.addf %34, %10 : vector<8x512xf32>
    %36 = vector.extract_strided_slice %35 {offsets = [0, 0], sizes = [8, 384], strides = [1, 1]} : vector<8x512xf32> to vector<8x384xf32>
    %37 = arith.negf %36 : vector<8x384xf32>
    %38 = math.exp %37 : vector<8x384xf32>
    %cst_17 = arith.constant 1.000000e+00 : f32
    %39 = vector.broadcast %cst_17 : f32 to vector<8x384xf32>
    %40 = arith.addf %39, %38 : vector<8x384xf32>
    %41 = arith.divf %39, %40 : vector<8x384xf32>
    %42 = vector.extract_strided_slice %41 {offsets = [0, 0], sizes = [8, 128], strides = [1, 1]} : vector<8x384xf32> to vector<8x128xf32>
    %43 = vector.extract_strided_slice %41 {offsets = [0, 128], sizes = [8, 128], strides = [1, 1]} : vector<8x384xf32> to vector<8x128xf32>
    %44 = vector.extract_strided_slice %41 {offsets = [0, 256], sizes = [8, 128], strides = [1, 1]} : vector<8x384xf32> to vector<8x128xf32>
    %45 = vector.extract_strided_slice %35 {offsets = [0, 384], sizes = [8, 128], strides = [1, 1]} : vector<8x512xf32> to vector<8x128xf32>
    %46 = math.tanh %45 : vector<8x128xf32>
    %47 = arith.mulf %43, %11 : vector<8x128xf32>
    %48 = arith.mulf %42, %46 : vector<8x128xf32>
    %49 = arith.addf %47, %48 : vector<8x128xf32>
    %50 = math.tanh %49 : vector<8x128xf32>
    %51 = arith.mulf %44, %50 : vector<8x128xf32>
    %c0_18 = arith.constant 0 : index
    %c128_19 = arith.constant 128 : index
    %52 = vector.load %arg13[%c0_18, %c128_19] : memref<8x256xf32, #tpu.memory_space<vmem>>, vector<8x128xf32>
    tpu.vector_store %arg13[%c0_18, %c128_19], %51 {strides = array<i32>} : memref<8x256xf32, #tpu.memory_space<vmem>>, vector<8x128xf32>,
    %53 = vector.extract_strided_slice %6 {offsets = [8, 0], sizes = [8, 512], strides = [1, 1]} : vector<64x512xf32> to vector<8x512xf32>
    %54 = vector.extract_strided_slice %33 {offsets = [0, 0], sizes = [8, 512], strides = [1, 1]} : vector<8x1024xf32> to vector<8x512xf32>
    %55 = arith.addf %53, %54 : vector<8x512xf32>
    %56 = vector.extract_strided_slice %55 {offsets = [0, 0], sizes = [8, 384], strides = [1, 1]} : vector<8x512xf32> to vector<8x384xf32>
    %57 = arith.negf %56 : vector<8x384xf32>
    %58 = math.exp %57 : vector<8x384xf32>
    %cst_20 = arith.constant 1.000000e+00 : f32
    %59 = vector.broadcast %cst_20 : f32 to vector<8x384xf32>
    %60 = arith.addf %59, %58 : vector<8x384xf32>
    %61 = arith.divf %59, %60 : vector<8x384xf32>
    %62 = vector.extract_strided_slice %61 {offsets = [0, 0], sizes = [8, 128], strides = [1, 1]} : vector<8x384xf32> to vector<8x128xf32>
    %63 = vector.extract_strided_slice %61 {offsets = [0, 128], sizes = [8, 128], strides = [1, 1]} : vector<8x384xf32> to vector<8x128xf32>
    %64 = vector.extract_strided_slice %61 {offsets = [0, 256], sizes = [8, 128], strides = [1, 1]} : vector<8x384xf32> to vector<8x128xf32>
    %65 = vector.extract_strided_slice %55 {offsets = [0, 384], sizes = [8, 128], strides = [1, 1]} : vector<8x512xf32> to vector<8x128xf32>
    %66 = math.tanh %65 : vector<8x128xf32>
    %67 = arith.mulf %63, %26 : vector<8x128xf32>
    %68 = arith.mulf %62, %66 : vector<8x128xf32>
    %69 = arith.addf %67, %68 : vector<8x128xf32>
    %70 = math.tanh %69 : vector<8x128xf32>
    %71 = arith.mulf %64, %70 : vector<8x128xf32>
    %c0_21 = arith.constant 0 : index
    %c0_22 = arith.constant 0 : index
    %72 = vector.load %arg13[%c0_21, %c0_22] : memref<8x256xf32, #tpu.memory_space<vmem>>, vector<8x128xf32>
    tpu.vector_store %arg13[%c0_21, %c0_22], %71 {strides = array<i32>} : memref<8x256xf32, #tpu.memory_space<vmem>>, vector<8x128xf32>,
    %c0_23 = arith.constant 0 : index
    %c0_24 = arith.constant 0 : index
    %73 = vector.load %arg13[%c0_23, %c0_24] : memref<8x256xf32, #tpu.memory_space<vmem>>, vector<8x256xf32>
    %74 = arith.truncf %73 : vector<8x256xf32> to vector<8x256xbf16>
    %cst_25 = arith.constant dense<0.000000e+00> : vector<8x1024xf32>
    %75 = tpu.matmul %74, %7, %cst_25 {dimension_numbers = #tpu.dot_dimension_numbers<[1], [0], [0], [1], [0, 0, 1, 1], [], []>} : vector<8x256xbf16>, vector<256x1024xbf16>, vector<8x1024xf32> -> vector<8x1024xf32>
    %76 = vector.extract_strided_slice %75 {offsets = [0, 512], sizes = [8, 512], strides = [1, 1]} : vector<8x1024xf32> to vector<8x512xf32>
    %77 = arith.addf %76, %10 : vector<8x512xf32>
    %78 = vector.extract_strided_slice %77 {offsets = [0, 0], sizes = [8, 384], strides = [1, 1]} : vector<8x512xf32> to vector<8x384xf32>
    %79 = arith.negf %78 : vector<8x384xf32>
    %80 = math.exp %79 : vector<8x384xf32>
    %cst_26 = arith.constant 1.000000e+00 : f32
    %81 = vector.broadcast %cst_26 : f32 to vector<8x384xf32>
    %82 = arith.addf %81, %80 : vector<8x384xf32>
    %83 = arith.divf %81, %82 : vector<8x384xf32>
    %84 = vector.extract_strided_slice %83 {offsets = [0, 0], sizes = [8, 128], strides = [1, 1]} : vector<8x384xf32> to vector<8x128xf32>
    %85 = vector.extract_strided_slice %83 {offsets = [0, 128], sizes = [8, 128], strides = [1, 1]} : vector<8x384xf32> to vector<8x128xf32>
    %86 = vector.extract_strided_slice %83 {offsets = [0, 256], sizes = [8, 128], strides = [1, 1]} : vector<8x384xf32> to vector<8x128xf32>
    %87 = vector.extract_strided_slice %77 {offsets = [0, 384], sizes = [8, 128], strides = [1, 1]} : vector<8x512xf32> to vector<8x128xf32>
    %88 = math.tanh %87 : vector<8x128xf32>
    %89 = arith.mulf %85, %49 : vector<8x128xf32>
    %90 = arith.mulf %84, %88 : vector<8x128xf32>
    %91 = arith.addf %89, %90 : vector<8x128xf32>
    %92 = math.tanh %91 : vector<8x128xf32>
    %93 = arith.mulf %86, %92 : vector<8x128xf32>
    %c0_27 = arith.constant 0 : index
    %c128_28 = arith.constant 128 : index
    %94 = vector.load %arg13[%c0_27, %c128_28] : memref<8x256xf32, #tpu.memory_space<vmem>>, vector<8x128xf32>
    tpu.vector_store %arg13[%c0_27, %c128_28], %93 {strides = array<i32>} : memref<8x256xf32, #tpu.memory_space<vmem>>, vector<8x128xf32>,
    %95 = vector.extract_strided_slice %6 {offsets = [16, 0], sizes = [8, 512], strides = [1, 1]} : vector<64x512xf32> to vector<8x512xf32>
    %96 = vector.extract_strided_slice %75 {offsets = [0, 0], sizes = [8, 512], strides = [1, 1]} : vector<8x1024xf32> to vector<8x512xf32>
    %97 = arith.addf %95, %96 : vector<8x512xf32>
    %98 = vector.extract_strided_slice %97 {offsets = [0, 0], sizes = [8, 384], strides = [1, 1]} : vector<8x512xf32> to vector<8x384xf32>
    %99 = arith.negf %98 : vector<8x384xf32>
    %100 = math.exp %99 : vector<8x384xf32>
    %cst_29 = arith.constant 1.000000e+00 : f32
    %101 = vector.broadcast %cst_29 : f32 to vector<8x384xf32>
    %102 = arith.addf %101, %100 : vector<8x384xf32>
    %103 = arith.divf %101, %102 : vector<8x384xf32>
    %104 = vector.extract_strided_slice %103 {offsets = [0, 0], sizes = [8, 128], strides = [1, 1]} : vector<8x384xf32> to vector<8x128xf32>
    %105 = vector.extract_strided_slice %103 {offsets = [0, 128], sizes = [8, 128], strides = [1, 1]} : vector<8x384xf32> to vector<8x128xf32>
    %106 = vector.extract_strided_slice %103 {offsets = [0, 256], sizes = [8, 128], strides = [1, 1]} : vector<8x384xf32> to vector<8x128xf32>
    %107 = vector.extract_strided_slice %97 {offsets = [0, 384], sizes = [8, 128], strides = [1, 1]} : vector<8x512xf32> to vector<8x128xf32>
    %108 = math.tanh %107 : vector<8x128xf32>
    %109 = arith.mulf %105, %69 : vector<8x128xf32>
    %110 = arith.mulf %104, %108 : vector<8x128xf32>
    %111 = arith.addf %109, %110 : vector<8x128xf32>
    %112 = math.tanh %111 : vector<8x128xf32>
    %113 = arith.mulf %106, %112 : vector<8x128xf32>
    %c0_30 = arith.constant 0 : index
    %c0_31 = arith.constant 0 : index
    %114 = vector.load %arg13[%c0_30, %c0_31] : memref<8x256xf32, #tpu.memory_space<vmem>>, vector<8x128xf32>
    tpu.vector_store %arg13[%c0_30, %c0_31], %113 {strides = array<i32>} : memref<8x256xf32, #tpu.memory_space<vmem>>, vector<8x128xf32>,
    %c0_32 = arith.constant 0 : index
    %c0_33 = arith.constant 0 : index
    %115 = vector.load %arg13[%c0_32, %c0_33] : memref<8x256xf32, #tpu.memory_space<vmem>>, vector<8x256xf32>
    %116 = arith.truncf %115 : vector<8x256xf32> to vector<8x256xbf16>
    %cst_34 = arith.constant dense<0.000000e+00> : vector<8x1024xf32>
    %117 = tpu.matmul %116, %7, %cst_34 {dimension_numbers = #tpu.dot_dimension_numbers<[1], [0], [0], [1], [0, 0, 1, 1], [], []>} : vector<8x256xbf16>, vector<256x1024xbf16>, vector<8x1024xf32> -> vector<8x1024xf32>
    %118 = vector.extract_strided_slice %117 {offsets = [0, 512], sizes = [8, 512], strides = [1, 1]} : vector<8x1024xf32> to vector<8x512xf32>
    %119 = arith.addf %118, %10 : vector<8x512xf32>
    %120 = vector.extract_strided_slice %119 {offsets = [0, 0], sizes = [8, 384], strides = [1, 1]} : vector<8x512xf32> to vector<8x384xf32>
    %121 = arith.negf %120 : vector<8x384xf32>
    %122 = math.exp %121 : vector<8x384xf32>
    %cst_35 = arith.constant 1.000000e+00 : f32
    %123 = vector.broadcast %cst_35 : f32 to vector<8x384xf32>
    %124 = arith.addf %123, %122 : vector<8x384xf32>
    %125 = arith.divf %123, %124 : vector<8x384xf32>
    %126 = vector.extract_strided_slice %125 {offsets = [0, 0], sizes = [8, 128], strides = [1, 1]} : vector<8x384xf32> to vector<8x128xf32>
    %127 = vector.extract_strided_slice %125 {offsets = [0, 128], sizes = [8, 128], strides = [1, 1]} : vector<8x384xf32> to vector<8x128xf32>
    %128 = vector.extract_strided_slice %125 {offsets = [0, 256], sizes = [8, 128], strides = [1, 1]} : vector<8x384xf32> to vector<8x128xf32>
    %129 = vector.extract_strided_slice %119 {offsets = [0, 384], sizes = [8, 128], strides = [1, 1]} : vector<8x512xf32> to vector<8x128xf32>
    %130 = math.tanh %129 : vector<8x128xf32>
    %131 = arith.mulf %127, %91 : vector<8x128xf32>
    %132 = arith.mulf %126, %130 : vector<8x128xf32>
    %133 = arith.addf %131, %132 : vector<8x128xf32>
    %134 = math.tanh %133 : vector<8x128xf32>
    %135 = arith.mulf %128, %134 : vector<8x128xf32>
    %c0_36 = arith.constant 0 : index
    %c128_37 = arith.constant 128 : index
    %136 = vector.load %arg13[%c0_36, %c128_37] : memref<8x256xf32, #tpu.memory_space<vmem>>, vector<8x128xf32>
    tpu.vector_store %arg13[%c0_36, %c128_37], %135 {strides = array<i32>} : memref<8x256xf32, #tpu.memory_space<vmem>>, vector<8x128xf32>,
    %137 = vector.extract_strided_slice %6 {offsets = [24, 0], sizes = [8, 512], strides = [1, 1]} : vector<64x512xf32> to vector<8x512xf32>
    %138 = vector.extract_strided_slice %117 {offsets = [0, 0], sizes = [8, 512], strides = [1, 1]} : vector<8x1024xf32> to vector<8x512xf32>
    %139 = arith.addf %137, %138 : vector<8x512xf32>
    %140 = vector.extract_strided_slice %139 {offsets = [0, 0], sizes = [8, 384], strides = [1, 1]} : vector<8x512xf32> to vector<8x384xf32>
    %141 = arith.negf %140 : vector<8x384xf32>
    %142 = math.exp %141 : vector<8x384xf32>
    %cst_38 = arith.constant 1.000000e+00 : f32
    %143 = vector.broadcast %cst_38 : f32 to vector<8x384xf32>
    %144 = arith.addf %143, %142 : vector<8x384xf32>
    %145 = arith.divf %143, %144 : vector<8x384xf32>
    %146 = vector.extract_strided_slice %145 {offsets = [0, 0], sizes = [8, 128], strides = [1, 1]} : vector<8x384xf32> to vector<8x128xf32>
    %147 = vector.extract_strided_slice %145 {offsets = [0, 128], sizes = [8, 128], strides = [1, 1]} : vector<8x384xf32> to vector<8x128xf32>
    %148 = vector.extract_strided_slice %145 {offsets = [0, 256], sizes = [8, 128], strides = [1, 1]} : vector<8x384xf32> to vector<8x128xf32>
    %149 = vector.extract_strided_slice %139 {offsets = [0, 384], sizes = [8, 128], strides = [1, 1]} : vector<8x512xf32> to vector<8x128xf32>
    %150 = math.tanh %149 : vector<8x128xf32>
    %151 = arith.mulf %147, %111 : vector<8x128xf32>
    %152 = arith.mulf %146, %150 : vector<8x128xf32>
    %153 = arith.addf %151, %152 : vector<8x128xf32>
    %154 = math.tanh %153 : vector<8x128xf32>
    %155 = arith.mulf %148, %154 : vector<8x128xf32>
    %c0_39 = arith.constant 0 : index
    %c0_40 = arith.constant 0 : index
    %156 = vector.load %arg13[%c0_39, %c0_40] : memref<8x256xf32, #tpu.memory_space<vmem>>, vector<8x128xf32>
    tpu.vector_store %arg13[%c0_39, %c0_40], %155 {strides = array<i32>} : memref<8x256xf32, #tpu.memory_space<vmem>>, vector<8x128xf32>,
    %c0_41 = arith.constant 0 : index
    %c0_42 = arith.constant 0 : index
    %157 = vector.load %arg13[%c0_41, %c0_42] : memref<8x256xf32, #tpu.memory_space<vmem>>, vector<8x256xf32>
    %158 = arith.truncf %157 : vector<8x256xf32> to vector<8x256xbf16>
    %cst_43 = arith.constant dense<0.000000e+00> : vector<8x1024xf32>
    %159 = tpu.matmul %158, %7, %cst_43 {dimension_numbers = #tpu.dot_dimension_numbers<[1], [0], [0], [1], [0, 0, 1, 1], [], []>} : vector<8x256xbf16>, vector<256x1024xbf16>, vector<8x1024xf32> -> vector<8x1024xf32>
    %160 = vector.extract_strided_slice %159 {offsets = [0, 512], sizes = [8, 512], strides = [1, 1]} : vector<8x1024xf32> to vector<8x512xf32>
    %161 = arith.addf %160, %10 : vector<8x512xf32>
    %162 = vector.extract_strided_slice %161 {offsets = [0, 0], sizes = [8, 384], strides = [1, 1]} : vector<8x512xf32> to vector<8x384xf32>
    %163 = arith.negf %162 : vector<8x384xf32>
    %164 = math.exp %163 : vector<8x384xf32>
    %cst_44 = arith.constant 1.000000e+00 : f32
    %165 = vector.broadcast %cst_44 : f32 to vector<8x384xf32>
    %166 = arith.addf %165, %164 : vector<8x384xf32>
    %167 = arith.divf %165, %166 : vector<8x384xf32>
    %168 = vector.extract_strided_slice %167 {offsets = [0, 0], sizes = [8, 128], strides = [1, 1]} : vector<8x384xf32> to vector<8x128xf32>
    %169 = vector.extract_strided_slice %167 {offsets = [0, 128], sizes = [8, 128], strides = [1, 1]} : vector<8x384xf32> to vector<8x128xf32>
    %170 = vector.extract_strided_slice %167 {offsets = [0, 256], sizes = [8, 128], strides = [1, 1]} : vector<8x384xf32> to vector<8x128xf32>
    %171 = vector.extract_strided_slice %161 {offsets = [0, 384], sizes = [8, 128], strides = [1, 1]} : vector<8x512xf32> to vector<8x128xf32>
    %172 = math.tanh %171 : vector<8x128xf32>
    %173 = arith.mulf %169, %133 : vector<8x128xf32>
    %174 = arith.mulf %168, %172 : vector<8x128xf32>
    %175 = arith.addf %173, %174 : vector<8x128xf32>
    %176 = math.tanh %175 : vector<8x128xf32>
    %177 = arith.mulf %170, %176 : vector<8x128xf32>
    %c0_45 = arith.constant 0 : index
    %c128_46 = arith.constant 128 : index
    %178 = vector.load %arg13[%c0_45, %c128_46] : memref<8x256xf32, #tpu.memory_space<vmem>>, vector<8x128xf32>
    tpu.vector_store %arg13[%c0_45, %c128_46], %177 {strides = array<i32>} : memref<8x256xf32, #tpu.memory_space<vmem>>, vector<8x128xf32>,
    %179 = vector.extract_strided_slice %6 {offsets = [32, 0], sizes = [8, 512], strides = [1, 1]} : vector<64x512xf32> to vector<8x512xf32>
    %180 = vector.extract_strided_slice %159 {offsets = [0, 0], sizes = [8, 512], strides = [1, 1]} : vector<8x1024xf32> to vector<8x512xf32>
    %181 = arith.addf %179, %180 : vector<8x512xf32>
    %182 = vector.extract_strided_slice %181 {offsets = [0, 0], sizes = [8, 384], strides = [1, 1]} : vector<8x512xf32> to vector<8x384xf32>
    %183 = arith.negf %182 : vector<8x384xf32>
    %184 = math.exp %183 : vector<8x384xf32>
    %cst_47 = arith.constant 1.000000e+00 : f32
    %185 = vector.broadcast %cst_47 : f32 to vector<8x384xf32>
    %186 = arith.addf %185, %184 : vector<8x384xf32>
    %187 = arith.divf %185, %186 : vector<8x384xf32>
    %188 = vector.extract_strided_slice %187 {offsets = [0, 0], sizes = [8, 128], strides = [1, 1]} : vector<8x384xf32> to vector<8x128xf32>
    %189 = vector.extract_strided_slice %187 {offsets = [0, 128], sizes = [8, 128], strides = [1, 1]} : vector<8x384xf32> to vector<8x128xf32>
    %190 = vector.extract_strided_slice %187 {offsets = [0, 256], sizes = [8, 128], strides = [1, 1]} : vector<8x384xf32> to vector<8x128xf32>
    %191 = vector.extract_strided_slice %181 {offsets = [0, 384], sizes = [8, 128], strides = [1, 1]} : vector<8x512xf32> to vector<8x128xf32>
    %192 = math.tanh %191 : vector<8x128xf32>
    %193 = arith.mulf %189, %153 : vector<8x128xf32>
    %194 = arith.mulf %188, %192 : vector<8x128xf32>
    %195 = arith.addf %193, %194 : vector<8x128xf32>
    %196 = math.tanh %195 : vector<8x128xf32>
    %197 = arith.mulf %190, %196 : vector<8x128xf32>
    %c0_48 = arith.constant 0 : index
    %c0_49 = arith.constant 0 : index
    %198 = vector.load %arg13[%c0_48, %c0_49] : memref<8x256xf32, #tpu.memory_space<vmem>>, vector<8x128xf32>
    tpu.vector_store %arg13[%c0_48, %c0_49], %197 {strides = array<i32>} : memref<8x256xf32, #tpu.memory_space<vmem>>, vector<8x128xf32>,
    %c0_50 = arith.constant 0 : index
    %c0_51 = arith.constant 0 : index
    %199 = vector.load %arg13[%c0_50, %c0_51] : memref<8x256xf32, #tpu.memory_space<vmem>>, vector<8x256xf32>
    %200 = arith.truncf %199 : vector<8x256xf32> to vector<8x256xbf16>
    %cst_52 = arith.constant dense<0.000000e+00> : vector<8x1024xf32>
    %201 = tpu.matmul %200, %7, %cst_52 {dimension_numbers = #tpu.dot_dimension_numbers<[1], [0], [0], [1], [0, 0, 1, 1], [], []>} : vector<8x256xbf16>, vector<256x1024xbf16>, vector<8x1024xf32> -> vector<8x1024xf32>
    %202 = vector.extract_strided_slice %201 {offsets = [0, 512], sizes = [8, 512], strides = [1, 1]} : vector<8x1024xf32> to vector<8x512xf32>
    %203 = arith.addf %202, %10 : vector<8x512xf32>
    %204 = vector.extract_strided_slice %203 {offsets = [0, 0], sizes = [8, 384], strides = [1, 1]} : vector<8x512xf32> to vector<8x384xf32>
    %205 = arith.negf %204 : vector<8x384xf32>
    %206 = math.exp %205 : vector<8x384xf32>
    %cst_53 = arith.constant 1.000000e+00 : f32
    %207 = vector.broadcast %cst_53 : f32 to vector<8x384xf32>
    %208 = arith.addf %207, %206 : vector<8x384xf32>
    %209 = arith.divf %207, %208 : vector<8x384xf32>
    %210 = vector.extract_strided_slice %209 {offsets = [0, 0], sizes = [8, 128], strides = [1, 1]} : vector<8x384xf32> to vector<8x128xf32>
    %211 = vector.extract_strided_slice %209 {offsets = [0, 128], sizes = [8, 128], strides = [1, 1]} : vector<8x384xf32> to vector<8x128xf32>
    %212 = vector.extract_strided_slice %209 {offsets = [0, 256], sizes = [8, 128], strides = [1, 1]} : vector<8x384xf32> to vector<8x128xf32>
    %213 = vector.extract_strided_slice %203 {offsets = [0, 384], sizes = [8, 128], strides = [1, 1]} : vector<8x512xf32> to vector<8x128xf32>
    %214 = math.tanh %213 : vector<8x128xf32>
    %215 = arith.mulf %211, %175 : vector<8x128xf32>
    %216 = arith.mulf %210, %214 : vector<8x128xf32>
    %217 = arith.addf %215, %216 : vector<8x128xf32>
    %218 = math.tanh %217 : vector<8x128xf32>
    %219 = arith.mulf %212, %218 : vector<8x128xf32>
    %c0_54 = arith.constant 0 : index
    %c128_55 = arith.constant 128 : index
    %220 = vector.load %arg13[%c0_54, %c128_55] : memref<8x256xf32, #tpu.memory_space<vmem>>, vector<8x128xf32>
    tpu.vector_store %arg13[%c0_54, %c128_55], %219 {strides = array<i32>} : memref<8x256xf32, #tpu.memory_space<vmem>>, vector<8x128xf32>,
    %221 = vector.extract_strided_slice %6 {offsets = [40, 0], sizes = [8, 512], strides = [1, 1]} : vector<64x512xf32> to vector<8x512xf32>
    %222 = vector.extract_strided_slice %201 {offsets = [0, 0], sizes = [8, 512], strides = [1, 1]} : vector<8x1024xf32> to vector<8x512xf32>
    %223 = arith.addf %221, %222 : vector<8x512xf32>
    %224 = vector.extract_strided_slice %223 {offsets = [0, 0], sizes = [8, 384], strides = [1, 1]} : vector<8x512xf32> to vector<8x384xf32>
    %225 = arith.negf %224 : vector<8x384xf32>
    %226 = math.exp %225 : vector<8x384xf32>
    %cst_56 = arith.constant 1.000000e+00 : f32
    %227 = vector.broadcast %cst_56 : f32 to vector<8x384xf32>
    %228 = arith.addf %227, %226 : vector<8x384xf32>
    %229 = arith.divf %227, %228 : vector<8x384xf32>
    %230 = vector.extract_strided_slice %229 {offsets = [0, 0], sizes = [8, 128], strides = [1, 1]} : vector<8x384xf32> to vector<8x128xf32>
    %231 = vector.extract_strided_slice %229 {offsets = [0, 128], sizes = [8, 128], strides = [1, 1]} : vector<8x384xf32> to vector<8x128xf32>
    %232 = vector.extract_strided_slice %229 {offsets = [0, 256], sizes = [8, 128], strides = [1, 1]} : vector<8x384xf32> to vector<8x128xf32>
    %233 = vector.extract_strided_slice %223 {offsets = [0, 384], sizes = [8, 128], strides = [1, 1]} : vector<8x512xf32> to vector<8x128xf32>
    %234 = math.tanh %233 : vector<8x128xf32>
    %235 = arith.mulf %231, %195 : vector<8x128xf32>
    %236 = arith.mulf %230, %234 : vector<8x128xf32>
    %237 = arith.addf %235, %236 : vector<8x128xf32>
    %238 = math.tanh %237 : vector<8x128xf32>
    %239 = arith.mulf %232, %238 : vector<8x128xf32>
    %c0_57 = arith.constant 0 : index
    %c0_58 = arith.constant 0 : index
    %240 = vector.load %arg13[%c0_57, %c0_58] : memref<8x256xf32, #tpu.memory_space<vmem>>, vector<8x128xf32>
    tpu.vector_store %arg13[%c0_57, %c0_58], %239 {strides = array<i32>} : memref<8x256xf32, #tpu.memory_space<vmem>>, vector<8x128xf32>,
    %c0_59 = arith.constant 0 : index
    %c0_60 = arith.constant 0 : index
    %241 = vector.load %arg13[%c0_59, %c0_60] : memref<8x256xf32, #tpu.memory_space<vmem>>, vector<8x256xf32>
    %242 = arith.truncf %241 : vector<8x256xf32> to vector<8x256xbf16>
    %cst_61 = arith.constant dense<0.000000e+00> : vector<8x1024xf32>
    %243 = tpu.matmul %242, %7, %cst_61 {dimension_numbers = #tpu.dot_dimension_numbers<[1], [0], [0], [1], [0, 0, 1, 1], [], []>} : vector<8x256xbf16>, vector<256x1024xbf16>, vector<8x1024xf32> -> vector<8x1024xf32>
    %244 = vector.extract_strided_slice %243 {offsets = [0, 512], sizes = [8, 512], strides = [1, 1]} : vector<8x1024xf32> to vector<8x512xf32>
    %245 = arith.addf %244, %10 : vector<8x512xf32>
    %246 = vector.extract_strided_slice %245 {offsets = [0, 0], sizes = [8, 384], strides = [1, 1]} : vector<8x512xf32> to vector<8x384xf32>
    %247 = arith.negf %246 : vector<8x384xf32>
    %248 = math.exp %247 : vector<8x384xf32>
    %cst_62 = arith.constant 1.000000e+00 : f32
    %249 = vector.broadcast %cst_62 : f32 to vector<8x384xf32>
    %250 = arith.addf %249, %248 : vector<8x384xf32>
    %251 = arith.divf %249, %250 : vector<8x384xf32>
    %252 = vector.extract_strided_slice %251 {offsets = [0, 0], sizes = [8, 128], strides = [1, 1]} : vector<8x384xf32> to vector<8x128xf32>
    %253 = vector.extract_strided_slice %251 {offsets = [0, 128], sizes = [8, 128], strides = [1, 1]} : vector<8x384xf32> to vector<8x128xf32>
    %254 = vector.extract_strided_slice %251 {offsets = [0, 256], sizes = [8, 128], strides = [1, 1]} : vector<8x384xf32> to vector<8x128xf32>
    %255 = vector.extract_strided_slice %245 {offsets = [0, 384], sizes = [8, 128], strides = [1, 1]} : vector<8x512xf32> to vector<8x128xf32>
    %256 = math.tanh %255 : vector<8x128xf32>
    %257 = arith.mulf %253, %217 : vector<8x128xf32>
    %258 = arith.mulf %252, %256 : vector<8x128xf32>
    %259 = arith.addf %257, %258 : vector<8x128xf32>
    %260 = math.tanh %259 : vector<8x128xf32>
    %261 = arith.mulf %254, %260 : vector<8x128xf32>
    %c0_63 = arith.constant 0 : index
    %c128_64 = arith.constant 128 : index
    %262 = vector.load %arg13[%c0_63, %c128_64] : memref<8x256xf32, #tpu.memory_space<vmem>>, vector<8x128xf32>
    tpu.vector_store %arg13[%c0_63, %c128_64], %261 {strides = array<i32>} : memref<8x256xf32, #tpu.memory_space<vmem>>, vector<8x128xf32>,
    %263 = vector.extract_strided_slice %6 {offsets = [48, 0], sizes = [8, 512], strides = [1, 1]} : vector<64x512xf32> to vector<8x512xf32>
    %264 = vector.extract_strided_slice %243 {offsets = [0, 0], sizes = [8, 512], strides = [1, 1]} : vector<8x1024xf32> to vector<8x512xf32>
    %265 = arith.addf %263, %264 : vector<8x512xf32>
    %266 = vector.extract_strided_slice %265 {offsets = [0, 0], sizes = [8, 384], strides = [1, 1]} : vector<8x512xf32> to vector<8x384xf32>
    %267 = arith.negf %266 : vector<8x384xf32>
    %268 = math.exp %267 : vector<8x384xf32>
    %cst_65 = arith.constant 1.000000e+00 : f32
    %269 = vector.broadcast %cst_65 : f32 to vector<8x384xf32>
    %270 = arith.addf %269, %268 : vector<8x384xf32>
    %271 = arith.divf %269, %270 : vector<8x384xf32>
    %272 = vector.extract_strided_slice %271 {offsets = [0, 0], sizes = [8, 128], strides = [1, 1]} : vector<8x384xf32> to vector<8x128xf32>
    %273 = vector.extract_strided_slice %271 {offsets = [0, 128], sizes = [8, 128], strides = [1, 1]} : vector<8x384xf32> to vector<8x128xf32>
    %274 = vector.extract_strided_slice %271 {offsets = [0, 256], sizes = [8, 128], strides = [1, 1]} : vector<8x384xf32> to vector<8x128xf32>
    %275 = vector.extract_strided_slice %265 {offsets = [0, 384], sizes = [8, 128], strides = [1, 1]} : vector<8x512xf32> to vector<8x128xf32>
    %276 = math.tanh %275 : vector<8x128xf32>
    %277 = arith.mulf %273, %237 : vector<8x128xf32>
    %278 = arith.mulf %272, %276 : vector<8x128xf32>
    %279 = arith.addf %277, %278 : vector<8x128xf32>
    %280 = math.tanh %279 : vector<8x128xf32>
    %281 = arith.mulf %274, %280 : vector<8x128xf32>
    %c0_66 = arith.constant 0 : index
    %c0_67 = arith.constant 0 : index
    %282 = vector.load %arg13[%c0_66, %c0_67] : memref<8x256xf32, #tpu.memory_space<vmem>>, vector<8x128xf32>
    tpu.vector_store %arg13[%c0_66, %c0_67], %281 {strides = array<i32>} : memref<8x256xf32, #tpu.memory_space<vmem>>, vector<8x128xf32>,
    %c0_68 = arith.constant 0 : index
    %c0_69 = arith.constant 0 : index
    %283 = vector.load %arg13[%c0_68, %c0_69] : memref<8x256xf32, #tpu.memory_space<vmem>>, vector<8x256xf32>
    %284 = arith.truncf %283 : vector<8x256xf32> to vector<8x256xbf16>
    %cst_70 = arith.constant dense<0.000000e+00> : vector<8x1024xf32>
    %285 = tpu.matmul %284, %7, %cst_70 {dimension_numbers = #tpu.dot_dimension_numbers<[1], [0], [0], [1], [0, 0, 1, 1], [], []>} : vector<8x256xbf16>, vector<256x1024xbf16>, vector<8x1024xf32> -> vector<8x1024xf32>
    %286 = vector.extract_strided_slice %285 {offsets = [0, 512], sizes = [8, 512], strides = [1, 1]} : vector<8x1024xf32> to vector<8x512xf32>
    %287 = arith.addf %286, %10 : vector<8x512xf32>
    %288 = vector.extract_strided_slice %287 {offsets = [0, 0], sizes = [8, 384], strides = [1, 1]} : vector<8x512xf32> to vector<8x384xf32>
    %289 = arith.negf %288 : vector<8x384xf32>
    %290 = math.exp %289 : vector<8x384xf32>
    %cst_71 = arith.constant 1.000000e+00 : f32
    %291 = vector.broadcast %cst_71 : f32 to vector<8x384xf32>
    %292 = arith.addf %291, %290 : vector<8x384xf32>
    %293 = arith.divf %291, %292 : vector<8x384xf32>
    %294 = vector.extract_strided_slice %293 {offsets = [0, 0], sizes = [8, 128], strides = [1, 1]} : vector<8x384xf32> to vector<8x128xf32>
    %295 = vector.extract_strided_slice %293 {offsets = [0, 128], sizes = [8, 128], strides = [1, 1]} : vector<8x384xf32> to vector<8x128xf32>
    %296 = vector.extract_strided_slice %293 {offsets = [0, 256], sizes = [8, 128], strides = [1, 1]} : vector<8x384xf32> to vector<8x128xf32>
    %297 = vector.extract_strided_slice %287 {offsets = [0, 384], sizes = [8, 128], strides = [1, 1]} : vector<8x512xf32> to vector<8x128xf32>
    %298 = math.tanh %297 : vector<8x128xf32>
    %299 = arith.mulf %295, %259 : vector<8x128xf32>
    %300 = arith.mulf %294, %298 : vector<8x128xf32>
    %301 = arith.addf %299, %300 : vector<8x128xf32>
    %302 = math.tanh %301 : vector<8x128xf32>
    %303 = arith.mulf %296, %302 : vector<8x128xf32>
    %c0_72 = arith.constant 0 : index
    %c128_73 = arith.constant 128 : index
    %304 = vector.load %arg13[%c0_72, %c128_73] : memref<8x256xf32, #tpu.memory_space<vmem>>, vector<8x128xf32>
    tpu.vector_store %arg13[%c0_72, %c128_73], %303 {strides = array<i32>} : memref<8x256xf32, #tpu.memory_space<vmem>>, vector<8x128xf32>,
    %305 = vector.extract_strided_slice %6 {offsets = [56, 0], sizes = [8, 512], strides = [1, 1]} : vector<64x512xf32> to vector<8x512xf32>
    %306 = vector.extract_strided_slice %285 {offsets = [0, 0], sizes = [8, 512], strides = [1, 1]} : vector<8x1024xf32> to vector<8x512xf32>
    %307 = arith.addf %305, %306 : vector<8x512xf32>
    %308 = vector.extract_strided_slice %307 {offsets = [0, 0], sizes = [8, 384], strides = [1, 1]} : vector<8x512xf32> to vector<8x384xf32>
    %309 = arith.negf %308 : vector<8x384xf32>
    %310 = math.exp %309 : vector<8x384xf32>
    %cst_74 = arith.constant 1.000000e+00 : f32
    %311 = vector.broadcast %cst_74 : f32 to vector<8x384xf32>
    %312 = arith.addf %311, %310 : vector<8x384xf32>
    %313 = arith.divf %311, %312 : vector<8x384xf32>
    %314 = vector.extract_strided_slice %313 {offsets = [0, 0], sizes = [8, 128], strides = [1, 1]} : vector<8x384xf32> to vector<8x128xf32>
    %315 = vector.extract_strided_slice %313 {offsets = [0, 128], sizes = [8, 128], strides = [1, 1]} : vector<8x384xf32> to vector<8x128xf32>
    %316 = vector.extract_strided_slice %313 {offsets = [0, 256], sizes = [8, 128], strides = [1, 1]} : vector<8x384xf32> to vector<8x128xf32>
    %317 = vector.extract_strided_slice %307 {offsets = [0, 384], sizes = [8, 128], strides = [1, 1]} : vector<8x512xf32> to vector<8x128xf32>
    %318 = math.tanh %317 : vector<8x128xf32>
    %319 = arith.mulf %315, %279 : vector<8x128xf32>
    %320 = arith.mulf %314, %318 : vector<8x128xf32>
    %321 = arith.addf %319, %320 : vector<8x128xf32>
    %322 = math.tanh %321 : vector<8x128xf32>
    %323 = arith.mulf %316, %322 : vector<8x128xf32>
    %c0_75 = arith.constant 0 : index
    %c0_76 = arith.constant 0 : index
    %324 = vector.load %arg13[%c0_75, %c0_76] : memref<8x256xf32, #tpu.memory_space<vmem>>, vector<8x128xf32>
    tpu.vector_store %arg13[%c0_75, %c0_76], %323 {strides = array<i32>} : memref<8x256xf32, #tpu.memory_space<vmem>>, vector<8x128xf32>,
    %c0_77 = arith.constant 0 : index
    %c0_78 = arith.constant 0 : index
    %325 = vector.load %arg13[%c0_77, %c0_78] : memref<8x256xf32, #tpu.memory_space<vmem>>, vector<8x256xf32>
    %326 = arith.truncf %325 : vector<8x256xf32> to vector<8x256xbf16>
    %cst_79 = arith.constant dense<0.000000e+00> : vector<8x1024xf32>
    %327 = tpu.matmul %326, %7, %cst_79 {dimension_numbers = #tpu.dot_dimension_numbers<[1], [0], [0], [1], [0, 0, 1, 1], [], []>} : vector<8x256xbf16>, vector<256x1024xbf16>, vector<8x1024xf32> -> vector<8x1024xf32>
    %328 = vector.extract_strided_slice %327 {offsets = [0, 512], sizes = [8, 512], strides = [1, 1]} : vector<8x1024xf32> to vector<8x512xf32>
    %329 = arith.addf %328, %10 : vector<8x512xf32>
    %330 = vector.extract_strided_slice %329 {offsets = [0, 0], sizes = [8, 384], strides = [1, 1]} : vector<8x512xf32> to vector<8x384xf32>
    %331 = arith.negf %330 : vector<8x384xf32>
    %332 = math.exp %331 : vector<8x384xf32>
    %cst_80 = arith.constant 1.000000e+00 : f32
    %333 = vector.broadcast %cst_80 : f32 to vector<8x384xf32>
    %334 = arith.addf %333, %332 : vector<8x384xf32>
    %335 = arith.divf %333, %334 : vector<8x384xf32>
    %336 = vector.extract_strided_slice %335 {offsets = [0, 0], sizes = [8, 128], strides = [1, 1]} : vector<8x384xf32> to vector<8x128xf32>
    %337 = vector.extract_strided_slice %335 {offsets = [0, 128], sizes = [8, 128], strides = [1, 1]} : vector<8x384xf32> to vector<8x128xf32>
    %338 = vector.extract_strided_slice %335 {offsets = [0, 256], sizes = [8, 128], strides = [1, 1]} : vector<8x384xf32> to vector<8x128xf32>
    %339 = vector.extract_strided_slice %329 {offsets = [0, 384], sizes = [8, 128], strides = [1, 1]} : vector<8x512xf32> to vector<8x128xf32>
    %340 = math.tanh %339 : vector<8x128xf32>
    %341 = arith.mulf %337, %301 : vector<8x128xf32>
    %342 = arith.mulf %336, %340 : vector<8x128xf32>
    %343 = arith.addf %341, %342 : vector<8x128xf32>
    %344 = math.tanh %343 : vector<8x128xf32>
    %345 = arith.mulf %338, %344 : vector<8x128xf32>
    %c0_81 = arith.constant 0 : index
    %c128_82 = arith.constant 128 : index
    %346 = vector.load %arg13[%c0_81, %c128_82] : memref<8x256xf32, #tpu.memory_space<vmem>>, vector<8x128xf32>
    tpu.vector_store %arg13[%c0_81, %c128_82], %345 {strides = array<i32>} : memref<8x256xf32, #tpu.memory_space<vmem>>, vector<8x128xf32>,
    %347 = arith.truncf %345 : vector<8x128xf32> to vector<8x128xbf16>
    %c0_83 = arith.constant 0 : index
    %c0_84 = arith.constant 0 : index
    %348 = vector.load %arg6[%c0_83, %c0_84] : memref<128x128xbf16, #tpu.memory_space<vmem>>, vector<128x128xbf16>
    %cst_85 = arith.constant dense<0.000000e+00> : vector<8x128xf32>
    %349 = tpu.matmul %347, %348, %cst_85 {dimension_numbers = #tpu.dot_dimension_numbers<[1], [0], [0], [1], [0, 0, 1, 1], [], []>} : vector<8x128xbf16>, vector<128x128xbf16>, vector<8x128xf32> -> vector<8x128xf32>
    %c0_86 = arith.constant 0 : index
    %c0_87 = arith.constant 0 : index
    %350 = vector.load %arg7[%c0_86, %c0_87] : memref<1x128xf32, #tpu.memory_space<vmem>>, vector<1x128xf32>
    %351 = vector.broadcast %350 : vector<1x128xf32> to vector<8x128xf32>
    %352 = arith.addf %349, %351 : vector<8x128xf32>
    %cst_88 = arith.constant 0.000000e+00 : f32
    %353 = vector.broadcast %cst_88 : f32 to vector<8x128xf32>
    %354 = arith.maximumf %352, %353 : vector<8x128xf32>
    %355 = arith.truncf %354 : vector<8x128xf32> to vector<8x128xbf16>
    %c0_89 = arith.constant 0 : index
    %c0_90 = arith.constant 0 : index
    %356 = vector.load %arg8[%c0_89, %c0_90] : memref<128x128xbf16, #tpu.memory_space<vmem>>, vector<128x128xbf16>
    %cst_91 = arith.constant dense<0.000000e+00> : vector<8x128xf32>
    %357 = tpu.matmul %355, %356, %cst_91 {dimension_numbers = #tpu.dot_dimension_numbers<[1], [0], [0], [1], [0, 0, 1, 1], [], []>} : vector<8x128xbf16>, vector<128x128xbf16>, vector<8x128xf32> -> vector<8x128xf32>
    %c0_92 = arith.constant 0 : index
    %c0_93 = arith.constant 0 : index
    %358 = vector.load %arg9[%c0_92, %c0_93] : memref<1x128xf32, #tpu.memory_space<vmem>>, vector<1x128xf32>
    %359 = vector.broadcast %358 : vector<1x128xf32> to vector<8x128xf32>
    %360 = arith.addf %357, %359 : vector<8x128xf32>
    %cst_94 = arith.constant 0.000000e+00 : f32
    %361 = vector.broadcast %cst_94 : f32 to vector<8x128xf32>
    %362 = arith.maximumf %360, %361 : vector<8x128xf32>
    %363 = arith.truncf %362 : vector<8x128xf32> to vector<8x128xbf16>
    %c0_95 = arith.constant 0 : index
    %c0_96 = arith.constant 0 : index
    %364 = vector.load %arg10[%c0_95, %c0_96] : memref<128x128xbf16, #tpu.memory_space<vmem>>, vector<128x128xbf16>
    %cst_97 = arith.constant dense<0.000000e+00> : vector<8x128xf32>
    %365 = tpu.matmul %363, %364, %cst_97 {dimension_numbers = #tpu.dot_dimension_numbers<[1], [0], [0], [1], [0, 0, 1, 1], [], []>} : vector<8x128xbf16>, vector<128x128xbf16>, vector<8x128xf32> -> vector<8x128xf32>
    %c0_98 = arith.constant 0 : index
    %c0_99 = arith.constant 0 : index
    %366 = vector.load %arg11[%c0_98, %c0_99] : memref<1x128xf32, #tpu.memory_space<vmem>>, vector<1x128xf32>
    %367 = vector.broadcast %366 : vector<1x128xf32> to vector<8x128xf32>
    %368 = arith.addf %365, %367 : vector<8x128xf32>
    %c0_100 = arith.constant 0 : index
    %c0_101 = arith.constant 0 : index
    %369 = vector.load %arg12[%c0_100, %c0_101] : memref<8x128xf32, #tpu.memory_space<vmem>>, vector<8x128xf32>
    tpu.vector_store %arg12[%c0_100, %c0_101], %368 {strides = array<i32>} : memref<8x128xf32, #tpu.memory_space<vmem>>, vector<8x128xf32>,
    return
  }
  func.func @transform_0(%arg0: i32) -> (i32, i32) {
    %c0_i32 = arith.constant 0 : i32
    %c0_i32_0 = arith.constant 0 : i32
    return %arg0, %c0_i32 : i32, i32
  }
  func.func @transform_1(%arg0: i32) -> (i32, i32) {
    %c0_i32 = arith.constant 0 : i32
    %c0_i32_0 = arith.constant 0 : i32
    %c0_i32_1 = arith.constant 0 : i32
    return %c0_i32, %c0_i32_0 : i32, i32
  }
  func.func @transform_2(%arg0: i32) -> (i32, i32) {
    %c0_i32 = arith.constant 0 : i32
    %c0_i32_0 = arith.constant 0 : i32
    %c0_i32_1 = arith.constant 0 : i32
    return %c0_i32, %c0_i32_0 : i32, i32
  }
  func.func @transform_3(%arg0: i32) -> (i32, i32) {
    %c0_i32 = arith.constant 0 : i32
    %c0_i32_0 = arith.constant 0 : i32
    %c0_i32_1 = arith.constant 0 : i32
    return %c0_i32, %c0_i32_0 : i32, i32
  }
  func.func @transform_4(%arg0: i32) -> (i32, i32) {
    %c0_i32 = arith.constant 0 : i32
    %c0_i32_0 = arith.constant 0 : i32
    %c0_i32_1 = arith.constant 0 : i32
    return %c0_i32, %c0_i32_0 : i32, i32
  }
  func.func @transform_5(%arg0: i32) -> (i32, i32) {
    %c0_i32 = arith.constant 0 : i32
    %c0_i32_0 = arith.constant 0 : i32
    %c0_i32_1 = arith.constant 0 : i32
    return %c0_i32, %c0_i32_0 : i32, i32
  }
  func.func @transform_6(%arg0: i32) -> (i32, i32) {
    %c0_i32 = arith.constant 0 : i32
    %c0_i32_0 = arith.constant 0 : i32
    %c0_i32_1 = arith.constant 0 : i32
    return %c0_i32, %c0_i32_0 : i32, i32
  }
  func.func @transform_7(%arg0: i32) -> (i32, i32) {
    %c0_i32 = arith.constant 0 : i32
    %c0_i32_0 = arith.constant 0 : i32
    %c0_i32_1 = arith.constant 0 : i32
    return %c0_i32, %c0_i32_0 : i32, i32
  }
  func.func @transform_8(%arg0: i32) -> (i32, i32) {
    %c0_i32 = arith.constant 0 : i32
    %c0_i32_0 = arith.constant 0 : i32
    %c0_i32_1 = arith.constant 0 : i32
    return %c0_i32, %c0_i32_0 : i32, i32
  }
  func.func @transform_9(%arg0: i32) -> (i32, i32) {
    %c0_i32 = arith.constant 0 : i32
    %c0_i32_0 = arith.constant 0 : i32
    %c0_i32_1 = arith.constant 0 : i32
    return %c0_i32, %c0_i32_0 : i32, i32
  }
  func.func @transform_10(%arg0: i32) -> (i32, i32) {
    %c0_i32 = arith.constant 0 : i32
    %c0_i32_0 = arith.constant 0 : i32
    %c0_i32_1 = arith.constant 0 : i32
    return %c0_i32, %c0_i32_0 : i32, i32
  }
  func.func @transform_11(%arg0: i32) -> (i32, i32) {
    %c0_i32 = arith.constant 0 : i32
    %c0_i32_0 = arith.constant 0 : i32
    return %arg0, %c0_i32 : i32, i32
  }
}

</mosaic_0001>

<llo_original>
// kernel: tpu_custom_call.1
$region0: #{tpu_custom_call.1}
  #allocation0 [shape = 'u32[]', space=smem, size = 0x4, offset = 0x4, fixed_abs, tag = 'smem constant byte address 0x4 - core index']
  #allocation1 [shape = 'u32[144,128]{1,0:T(1,128)}', space=vmem, size = 0x12000, scoped, tag = 'internal scratch']
  #allocation2 [shape = 'f32[8,256]{1,0:T(8,128)}', space=vmem, size = 0x2000, scoped, tag = 'scratch operand']
  %s0 = inlined_call_operand.vmem [shape: f32[64,12], index: 0, kind: input, shape index: {}]
  %s1 = inlined_call_operand.vmem [shape: bf16[12,512], index: 1, kind: input, shape index: {}]
  %s2 = inlined_call_operand.hbm [shape: f32[1,512], index: 2, kind: input, shape index: {}]
  %s3 = inlined_call_operand.hbm [shape: bf16[256,1024], index: 3, kind: input, shape index: {}]
  %s4 = inlined_call_operand.hbm [shape: f32[1,512], index: 4, kind: input, shape index: {}]
  %s5 = inlined_call_operand.vmem [shape: bf16[128,128], index: 5, kind: input, shape index: {}]
  %s6 = inlined_call_operand.vmem [shape: f32[1,128], index: 6, kind: input, shape index: {}]
  %s7 = inlined_call_operand.hbm [shape: bf16[128,128], index: 7, kind: input, shape index: {}]
  %s8 = inlined_call_operand.vmem [shape: f32[1,128], index: 8, kind: input, shape index: {}]
  %s9 = inlined_call_operand.hbm [shape: bf16[128,128], index: 9, kind: input, shape index: {}]
  %s10 = inlined_call_operand.vmem [shape: f32[1,128], index: 10, kind: input, shape index: {}]
  %s11 = inlined_call_operand.hbm [shape: f32[8,128], index: 11, kind: output, shape index: {}]
  %s12 = sld [smem:[#allocation0]]
  $region74: #{tpu_custom_call.1} parent=0
    _
  %s14 = ssub.s32 1, %s12
  %s15 = scalar_select 0, %s14, %s12
  $region1: #{tpu_custom_call.1} parent=0
    #allocation3 [shape = 'u8[2048]{0}', space=vmem, size = 0x800, scoped, tag = 'input window, operand 2, single buffered']
    #allocation4 [shape = 's32[1]{0}', space=sflag, size = 0x4, scoped, tag = 'scoped memory for tpu_custom_call.1']
    #allocation5 [shape = 's32[1]{0}', space=sflag, size = 0x4, scoped, tag = 'scoped memory for tpu_custom_call.1']
    #allocation6 [shape = 'u8[524288]{0}', space=vmem, size = 0x80000, scoped, tag = 'input window, operand 3, single buffered']
    #allocation7 [shape = 's32[1]{0}', space=sflag, size = 0x4, scoped, tag = 'scoped memory for tpu_custom_call.1']
    #allocation8 [shape = 'u8[2048]{0}', space=vmem, size = 0x800, scoped, tag = 'input window, operand 4, single buffered']
    #allocation9 [shape = 'u8[32768]{0}', space=vmem, size = 0x8000, scoped, tag = 'input window, operand 7, single buffered']
    #allocation10 [shape = 's32[1]{0}', space=sflag, size = 0x4, scoped, tag = 'scoped memory for tpu_custom_call.1']
    #allocation11 [shape = 'u8[32768]{0}', space=vmem, size = 0x8000, scoped, tag = 'input window, operand 9, single buffered']
    #allocation12 [shape = 'u8[4096]{0}', space=vmem, size = 0x1000, scoped, tag = 'output window, operand 0, single buffered']
    %16 = vsyncpa [#allocation4], 0
    %17 = vsyncpa [#allocation7], 0
    %18 = vsyncpa [#allocation10], 0
    %19 = vsyncpa [#allocation5], 0
    // Predicated region
    $region2: #{tpu_custom_call.1} parent=1 // pred_check
      _
    $region3: #{tpu_custom_call.1} parent=1 // pred_check_branch
      %21 = sbr.rel (0) target = $region5
    $region4: #{tpu_custom_call.1} parent=1 // pred_region
      _
    $region5: #{tpu_custom_call.1} parent=1 // pred_fallthru
      _
    // Predicated region
    $region6: #{tpu_custom_call.1} parent=1 // pred_check
      _
    $region7: #{tpu_custom_call.1} parent=1 // pred_check_branch
      %23 = sbr.rel (0) target = $region9
    $region8: #{tpu_custom_call.1} parent=1 // pred_region
      _
    $region9: #{tpu_custom_call.1} parent=1 // pred_fallthru
      _
    // Predicated region
    $region10: #{tpu_custom_call.1} parent=1 // pred_check
      _
    $region11: #{tpu_custom_call.1} parent=1 // pred_check_branch
      %25 = sbr.rel (0) target = $region13
    $region12: #{tpu_custom_call.1} parent=1 // pred_region
      %s27 = ssub.s32 64, 64
      %28 = vsyncadd [#allocation4], %s27
      %s30 = sshll.u32 [#allocation3], 4
      %s31 = int_to_ptr.vmem [resolvable:$true] %s30
      %33 = dma.hbm_to_vmem [thread:$0]  %s2, 64, %s31, [#allocation4]
    $region13: #{tpu_custom_call.1} parent=1 // pred_fallthru
      _
    // Predicated region
    $region14: #{tpu_custom_call.1} parent=1 // pred_check
      _
    $region15: #{tpu_custom_call.1} parent=1 // pred_check_branch
      %35 = sbr.rel (0) target = $region17
    $region16: #{tpu_custom_call.1} parent=1 // pred_region
      %s37 = ssub.s32 16384, 16384
      %38 = vsyncadd [#allocation7], %s37
      %s39 = sshll.u32 [#allocation6], 4
      %s40 = int_to_ptr.vmem [resolvable:$true] %s39
      %45 = dma.hbm_to_vmem [thread:$0]  %s3, 16384, %s40, [#allocation7], 512, 512, 32
    $region17: #{tpu_custom_call.1} parent=1 // pred_fallthru
      _
    // Predicated region
    $region18: #{tpu_custom_call.1} parent=1 // pred_check
      _
    $region19: #{tpu_custom_call.1} parent=1 // pred_check_branch
      %47 = sbr.rel (0) target = $region21
    $region20: #{tpu_custom_call.1} parent=1 // pred_region
      %s49 = ssub.s32 64, 64
      %50 = vsyncadd [#allocation7], %s49
      %s52 = sshll.u32 [#allocation8], 4
      %s53 = int_to_ptr.vmem [resolvable:$true] %s52
      %55 = dma.hbm_to_vmem [thread:$0]  %s4, 64, %s53, [#allocation7]
    $region21: #{tpu_custom_call.1} parent=1 // pred_fallthru
      _
    // Predicated region
    $region22: #{tpu_custom_call.1} parent=1 // pred_check
      _
    $region23: #{tpu_custom_call.1} parent=1 // pred_check_branch
      %57 = sbr.rel (0) target = $region25
    $region24: #{tpu_custom_call.1} parent=1 // pred_region
      _
    $region25: #{tpu_custom_call.1} parent=1 // pred_fallthru
      _
    // Predicated region
    $region26: #{tpu_custom_call.1} parent=1 // pred_check
      _
    $region27: #{tpu_custom_call.1} parent=1 // pred_check_branch
      %59 = sbr.rel (0) target = $region29
    $region28: #{tpu_custom_call.1} parent=1 // pred_region
      _
    $region29: #{tpu_custom_call.1} parent=1 // pred_fallthru
      _
    // Predicated region
    $region30: #{tpu_custom_call.1} parent=1 // pred_check
      _
    $region31: #{tpu_custom_call.1} parent=1 // pred_check_branch
      %61 = sbr.rel (0) target = $region33
    $region32: #{tpu_custom_call.1} parent=1 // pred_region
      %s63 = ssub.s32 1024, 1024
      %64 = vsyncadd [#allocation10], %s63
      %s65 = sshll.u32 [#allocation9], 4
      %s66 = int_to_ptr.vmem [resolvable:$true] %s65
      %71 = dma.hbm_to_vmem [thread:$0]  %s7, 1024, %s66, [#allocation10], 64, 64, 4
    $region33: #{tpu_custom_call.1} parent=1 // pred_fallthru
      _
    // Predicated region
    $region34: #{tpu_custom_call.1} parent=1 // pred_check
      _
    $region35: #{tpu_custom_call.1} parent=1 // pred_check_branch
      %73 = sbr.rel (0) target = $region37
    $region36: #{tpu_custom_call.1} parent=1 // pred_region
      _
    $region37: #{tpu_custom_call.1} parent=1 // pred_fallthru
      _
    // Predicated region
    $region38: #{tpu_custom_call.1} parent=1 // pred_check
      _
    $region39: #{tpu_custom_call.1} parent=1 // pred_check_branch
      %75 = sbr.rel (0) target = $region41
    $region40: #{tpu_custom_call.1} parent=1 // pred_region
      %s77 = ssub.s32 1024, 1024
      %78 = vsyncadd [#allocation10], %s77
      %s79 = sshll.u32 [#allocation11], 4
      %s80 = int_to_ptr.vmem [resolvable:$true] %s79
      %85 = dma.hbm_to_vmem [thread:$0]  %s9, 1024, %s80, [#allocation10], 64, 64, 4
    $region41: #{tpu_custom_call.1} parent=1 // pred_fallthru
      _
    // Predicated region
    $region42: #{tpu_custom_call.1} parent=1 // pred_check
      _
    $region43: #{tpu_custom_call.1} parent=1 // pred_check_branch
      %87 = sbr.rel (0) target = $region45
    $region44: #{tpu_custom_call.1} parent=1 // pred_region
      _
    $region45: #{tpu_custom_call.1} parent=1 // pred_fallthru
      _
    // Predicated region
    $region46: #{tpu_custom_call.1} parent=1 // pred_check
      _
    $region47: #{tpu_custom_call.1} parent=1 // pred_check_branch
      %89 = sbr.rel (0) target = $region49
    $region48: #{tpu_custom_call.1} parent=1 // pred_region
      %90 = dma.done [#allocation4], 64
    $region49: #{tpu_custom_call.1} parent=1 // pred_fallthru
      _
    // Predicated region
    $region50: #{tpu_custom_call.1} parent=1 // pred_check
      _
    $region51: #{tpu_custom_call.1} parent=1 // pred_check_branch
      %92 = sbr.rel (0) target = $region53
    $region52: #{tpu_custom_call.1} parent=1 // pred_region
      %93 = dma.done [#allocation7], 16384
    $region53: #{tpu_custom_call.1} parent=1 // pred_fallthru
      _
    // Predicated region
    $region54: #{tpu_custom_call.1} parent=1 // pred_check
      _
    $region55: #{tpu_custom_call.1} parent=1 // pred_check_branch
      %95 = sbr.rel (0) target = $region57
    $region56: #{tpu_custom_call.1} parent=1 // pred_region
      %96 = dma.done [#allocation7], 64
    $region57: #{tpu_custom_call.1} parent=1 // pred_fallthru
      _
    // Predicated region
    $region58: #{tpu_custom_call.1} parent=1 // pred_check
      _
    $region59: #{tpu_custom_call.1} parent=1 // pred_check_branch
      %98 = sbr.rel (0) target = $region61
    $region60: #{tpu_custom_call.1} parent=1 // pred_region
      %99 = dma.done [#allocation10], 1024
    $region61: #{tpu_custom_call.1} parent=1 // pred_fallthru
      _
    // Predicated region
    $region62: #{tpu_custom_call.1} parent=1 // pred_check
      _
    $region63: #{tpu_custom_call.1} parent=1 // pred_check_branch
      %101 = sbr.rel (0) target = $region65
    $region64: #{tpu_custom_call.1} parent=1 // pred_region
      %102 = dma.done [#allocation10], 1024
    $region65: #{tpu_custom_call.1} parent=1 // pred_fallthru
      _
    %v104 = vld [vmem:[%s0] sm:$0xff]
    %v105 = vld [vmem:[%s0 + $0x8] sm:$0xff]
    %v106 = vld [vmem:[%s0 + $0x10] sm:$0xff]
    %v107 = vld [vmem:[%s0 + $0x18] sm:$0xff]
    %v108 = vld [vmem:[%s0 + $0x20] sm:$0xff]
    %v109 = vld [vmem:[%s0 + $0x28] sm:$0xff]
    %v110 = vld [vmem:[%s0 + $0x30] sm:$0xff]
    %v111 = vld [vmem:[%s0 + $0x38] sm:$0xff]
    %v112 = vpack.c.bf16 %v105, %v104
    %v113 = vpack.c.bf16 %v107, %v106
    %v114 = vpack.c.bf16 %v109, %v108
    %v115 = vpack.c.bf16 %v111, %v110
    %v116 = vld [vmem:[%s1] sm:$0xff]
    %v117 = vld [vmem:[%s1 + $0x8] sm:$0xff]
    %v118 = vld [vmem:[%s1 + $0x10] sm:$0x33]
    %v119 = vld [vmem:[%s1 + $0x18] sm:$0x33]
    %v120 = vld [vmem:[#allocation3] sm:$0xf]
    %v122 = vlaneseq
    %v123 = vshrl.u32 %v122, 7
    %v124 = vsub.s32 0, %v123
    %v125 = vrot.slane %v120, %v124
    %v126 = vlaneseq
    %v127 = vshrl.u32 %v126, 7
    %v128 = vsub.s32 1, %v127
    %v129 = vrot.slane %v120, %v128
    %v130 = vlaneseq
    %v131 = vshrl.u32 %v130, 7
    %v132 = vsub.s32 2, %v131
    %v133 = vrot.slane %v120, %v132
    %v134 = vlaneseq
    %v135 = vshrl.u32 %v134, 7
    %v136 = vsub.s32 3, %v135
    %v137 = vrot.slane %v120, %v136
    %v146 = vunpack.c.l.b16 %v116
    %v147 = vunpack.c.h.b16 %v116
    %v148 = vunpack.c.l.b16 %v117
    %v149 = vunpack.c.h.b16 %v117
    %v150 = vunpack.c.l.b16 %v118
    %v151 = vunpack.c.h.b16 %v118
    %v152 = vunpack.c.l.b16 %v119
    %v153 = vunpack.c.h.b16 %v119
    %v154 = vpack.c.b16 %v150, %v146
    %v155 = vpack.c.b16 %v151, %v147
    %v156 = vpack.c.b16 %v152, %v148
    %v157 = vpack.c.b16 %v153, %v149
    %vm158 = vcmask 97280
    %v160 = vsel %vm158, %v112, 0
    %v163 = vsel %vm158, %v113, 0
    %v166 = vsel %vm158, %v114, 0
    %v169 = vsel %vm158, %v115, 0
    %vm171 = vcmask 1045504
    %v173 = vsel %vm171, %v154, 0
    %v176 = vsel %vm171, %v155, 0
    %v179 = vsel %vm171, %v156, 0
    %v182 = vsel %vm171, %v157, 0
    %184 = vmatprep.subr.bf16.mxu0 %v176
    %185 = vmatpush1.bf16.msra.mxu0 %v173
    %186 = vmatprep.subr.bf16.mxu0 0
    %187 = vmatpush1.bf16.msra.mxu0 0
    %188 = vmatprep.subr.bf16.mxu0 0
    %189 = vmatpush1.bf16.msra.mxu0 0
    %190 = vmatprep.subr.bf16.mxu0 0
    %191 = vmatpush1.bf16.msra.mxu0 0
    %192 = vmatprep.subr.bf16.mxu0 0
    %193 = vmatpush1.bf16.msra.mxu0 0
    %194 = vmatprep.subr.bf16.mxu0 0
    %195 = vmatpush1.bf16.msra.mxu0 0
    %196 = vmatprep.subr.bf16.mxu0 0
    %197 = vmatpush1.bf16.msra.mxu0 0
    %198 = vmatprep.subr.bf16.mxu0 0
    %199 = vmatpush1.bf16.msra.mxu0 0
    %200 = vmatprep.subr.bf16.mxu0 0
    %201 = vmatpush1.bf16.msra.mxu0 0
    %202 = vmatprep.subr.bf16.mxu0 0
    %203 = vmatpush1.bf16.msra.mxu0 0
    %204 = vmatprep.subr.bf16.mxu0 0
    %205 = vmatpush1.bf16.msra.mxu0 0
    %206 = vmatprep.subr.bf16.mxu0 0
    %207 = vmatpush1.bf16.msra.mxu0 0
    %208 = vmatprep.subr.bf16.mxu0 0
    %209 = vmatpush1.bf16.msra.mxu0 0
    %210 = vmatprep.subr.bf16.mxu0 0
    %211 = vmatpush1.bf16.msra.mxu0 0
    %212 = vmatprep.subr.bf16.mxu0 0
    %213 = vmatpush1.bf16.msra.mxu0 0
    %214 = vmatprep.subr.bf16.mxu0 0
    %215 = vmatpush1.bf16.msra.mxu0 0
    %216 = vmatprep.mubr.bf16.mxu0 0
    %217 = vmatmul.mubr.bf16.gmra.mrb[0].mxu0 %v160
    %v218 = vpop.f32.mrb[0].mxu0
    %v219 = vadd.f32 %v125, %v218
    %v220 = vpop.f32.mrb[0].mxu0
    %v221 = vadd.f32 %v129, %v220
    %v222 = vpop.f32.mrb[0].mxu0
    %v223 = vadd.f32 %v125, %v222
    %v224 = vpop.f32.mrb[0].mxu0
    %v225 = vadd.f32 %v129, %v224
    %226 = vmatprep.mubr.bf16.mxu0 0
    %227 = vmatmul.mubr.bf16.gmra.mrb[0].mxu0 %v163
    %v228 = vpop.f32.mrb[0].mxu0
    %v229 = vadd.f32 %v125, %v228
    %v230 = vpop.f32.mrb[0].mxu0
    %v231 = vadd.f32 %v129, %v230
    %v232 = vpop.f32.mrb[0].mxu0
    %v233 = vadd.f32 %v125, %v232
    %v234 = vpop.f32.mrb[0].mxu0
    %v235 = vadd.f32 %v129, %v234
    %236 = vmatprep.mubr.bf16.mxu0 0
    %237 = vmatmul.mubr.bf16.gmra.mrb[0].mxu0 %v166
    %v238 = vpop.f32.mrb[0].mxu0
    %v239 = vadd.f32 %v125, %v238
    %v240 = vpop.f32.mrb[0].mxu0
    %v241 = vadd.f32 %v129, %v240
    %v242 = vpop.f32.mrb[0].mxu0
    %v243 = vadd.f32 %v125, %v242
    %v244 = vpop.f32.mrb[0].mxu0
    %v245 = vadd.f32 %v129, %v244
    %246 = vmatprep.mubr.bf16.mxu0 0
    %247 = vmatmul.mubr.bf16.gmra.mrb[0].mxu0 %v169
    %v248 = vpop.f32.mrb[0].mxu0
    %v249 = vadd.f32 %v125, %v248
    %v250 = vpop.f32.mrb[0].mxu0
    %v251 = vadd.f32 %v129, %v250
    %v252 = vpop.f32.mrb[0].mxu0
    %v253 = vadd.f32 %v125, %v252
    %v254 = vpop.f32.mrb[0].mxu0
    %v255 = vadd.f32 %v129, %v254
    %256 = vdwg.mxu0
    %257 = vmatprep.subr.bf16.mxu0 %v182
    %258 = vmatpush1.bf16.msra.mxu0 %v179
    %259 = vmatprep.subr.bf16.mxu0 0
    %260 = vmatpush1.bf16.msra.mxu0 0
    %261 = vmatprep.subr.bf16.mxu0 0
    %262 = vmatpush1.bf16.msra.mxu0 0
    %263 = vmatprep.subr.bf16.mxu0 0
    %264 = vmatpush1.bf16.msra.mxu0 0
    %265 = vmatprep.subr.bf16.mxu0 0
    %266 = vmatpush1.bf16.msra.mxu0 0
    %267 = vmatprep.subr.bf16.mxu0 0
    %268 = vmatpush1.bf16.msra.mxu0 0
    %269 = vmatprep.subr.bf16.mxu0 0
    %270 = vmatpush1.bf16.msra.mxu0 0
    %271 = vmatprep.subr.bf16.mxu0 0
    %272 = vmatpush1.bf16.msra.mxu0 0
    %273 = vmatprep.subr.bf16.mxu0 0
    %274 = vmatpush1.bf16.msra.mxu0 0
    %275 = vmatprep.subr.bf16.mxu0 0
    %276 = vmatpush1.bf16.msra.mxu0 0
    %277 = vmatprep.subr.bf16.mxu0 0
    %278 = vmatpush1.bf16.msra.mxu0 0
    %279 = vmatprep.subr.bf16.mxu0 0
    %280 = vmatpush1.bf16.msra.mxu0 0
    %281 = vmatprep.subr.bf16.mxu0 0
    %282 = vmatpush1.bf16.msra.mxu0 0
    %283 = vmatprep.subr.bf16.mxu0 0
    %284 = vmatpush1.bf16.msra.mxu0 0
    %285 = vmatprep.subr.bf16.mxu0 0
    %286 = vmatpush1.bf16.msra.mxu0 0
    %287 = vmatprep.subr.bf16.mxu0 0
    %288 = vmatpush1.bf16.msra.mxu0 0
    %289 = vmatprep.mubr.bf16.mxu0 0
    %290 = vmatmul.mubr.bf16.gmra.mrb[0].mxu0 %v160
    %v291 = vpop.f32.mrb[0].mxu0
    %v292 = vadd.f32 %v133, %v291
    %v293 = vpop.f32.mrb[0].mxu0
    %v294 = vadd.f32 %v137, %v293
    %v295 = vpop.f32.mrb[0].mxu0
    %v296 = vadd.f32 %v133, %v295
    %v297 = vpop.f32.mrb[0].mxu0
    %v298 = vadd.f32 %v137, %v297
    %299 = vmatprep.mubr.bf16.mxu0 0
    %300 = vmatmul.mubr.bf16.gmra.mrb[0].mxu0 %v163
    %v301 = vpop.f32.mrb[0].mxu0
    %v302 = vadd.f32 %v133, %v301
    %v303 = vpop.f32.mrb[0].mxu0
    %v304 = vadd.f32 %v137, %v303
    %v305 = vpop.f32.mrb[0].mxu0
    %v306 = vadd.f32 %v133, %v305
    %v307 = vpop.f32.mrb[0].mxu0
    %v308 = vadd.f32 %v137, %v307
    %309 = vmatprep.mubr.bf16.mxu0 0
    %310 = vmatmul.mubr.bf16.gmra.mrb[0].mxu0 %v166
    %v311 = vpop.f32.mrb[0].mxu0
    %v312 = vadd.f32 %v133, %v311
    %v313 = vpop.f32.mrb[0].mxu0
    %v314 = vadd.f32 %v137, %v313
    %v315 = vpop.f32.mrb[0].mxu0
    %v316 = vadd.f32 %v133, %v315
    %v317 = vpop.f32.mrb[0].mxu0
    %v318 = vadd.f32 %v137, %v317
    %319 = vmatprep.mubr.bf16.mxu0 0
    %320 = vmatmul.mubr.bf16.gmra.mrb[0].mxu0 %v169
    %v321 = vpop.f32.mrb[0].mxu0
    %v322 = vadd.f32 %v133, %v321
    %v323 = vpop.f32.mrb[0].mxu0
    %v324 = vadd.f32 %v137, %v323
    %v325 = vpop.f32.mrb[0].mxu0
    %v326 = vadd.f32 %v133, %v325
    %v327 = vpop.f32.mrb[0].mxu0
    %v328 = vadd.f32 %v137, %v327
    %329 = vdwg.mxu0
    %v330 = vld [vmem:[#allocation6] sm:$0xff]
    %v331 = vld [vmem:[#allocation6 + $0x8] sm:$0xff]
    %v332 = vld [vmem:[#allocation6 + $0x10] sm:$0xff]
    %v333 = vld [vmem:[#allocation6 + $0x18] sm:$0xff]
    %v334 = vld [vmem:[#allocation6 + $0x20] sm:$0xff]
    %v335 = vld [vmem:[#allocation6 + $0x28] sm:$0xff]
    %v336 = vld [vmem:[#allocation6 + $0x30] sm:$0xff]
    %v337 = vld [vmem:[#allocation6 + $0x38] sm:$0xff]
    %v338 = vld [vmem:[#allocation6 + $0x40] sm:$0xff]
    %v339 = vld [vmem:[#allocation6 + $0x48] sm:$0xff]
    %v340 = vld [vmem:[#allocation6 + $0x50] sm:$0xff]
    %v341 = vld [vmem:[#allocation6 + $0x58] sm:$0xff]
    %v342 = vld [vmem:[#allocation6 + $0x60] sm:$0xff]
    %v343 = vld [vmem:[#allocation6 + $0x68] sm:$0xff]
    %v344 = vld [vmem:[#allocation6 + $0x70] sm:$0xff]
    %v345 = vld [vmem:[#allocation6 + $0x78] sm:$0xff]
    %v346 = vld [vmem:[#allocation6 + $0x80] sm:$0xff]
    %v347 = vld [vmem:[#allocation6 + $0x88] sm:$0xff]
    %v348 = vld [vmem:[#allocation6 + $0x90] sm:$0xff]
    %v349 = vld [vmem:[#allocation6 + $0x98] sm:$0xff]
    %v350 = vld [vmem:[#allocation6 + $0xa0] sm:$0xff]
    %v351 = vld [vmem:[#allocation6 + $0xa8] sm:$0xff]
    %v352 = vld [vmem:[#allocation6 + $0xb0] sm:$0xff]
    %v353 = vld [vmem:[#allocation6 + $0xb8] sm:$0xff]
    %v354 = vld [vmem:[#allocation6 + $0xc0] sm:$0xff]
    %v355 = vld [vmem:[#allocation6 + $0xc8] sm:$0xff]
    %v356 = vld [vmem:[#allocation6 + $0xd0] sm:$0xff]
    %v357 = vld [vmem:[#allocation6 + $0xd8] sm:$0xff]
    %v358 = vld [vmem:[#allocation6 + $0xe0] sm:$0xff]
    %v359 = vld [vmem:[#allocation6 + $0xe8] sm:$0xff]
    %v360 = vld [vmem:[#allocation6 + $0xf0] sm:$0xff]
    %v361 = vld [vmem:[#allocation6 + $0xf8] sm:$0xff]
    %v362 = vld [vmem:[#allocation6 + $0x100] sm:$0xff]
    %v363 = vld [vmem:[#allocation6 + $0x108] sm:$0xff]
    %v364 = vld [vmem:[#allocation6 + $0x110] sm:$0xff]
    %v365 = vld [vmem:[#allocation6 + $0x118] sm:$0xff]
    %v366 = vld [vmem:[#allocation6 + $0x120] sm:$0xff]
    %v367 = vld [vmem:[#allocation6 + $0x128] sm:$0xff]
    %v368 = vld [vmem:[#allocation6 + $0x130] sm:$0xff]
    %v369 = vld [vmem:[#allocation6 + $0x138] sm:$0xff]
    %v370 = vld [vmem:[#allocation6 + $0x140] sm:$0xff]
    %v371 = vld [vmem:[#allocation6 + $0x148] sm:$0xff]
    %v372 = vld [vmem:[#allocation6 + $0x150] sm:$0xff]
    %v373 = vld [vmem:[#allocation6 + $0x158] sm:$0xff]
    %v374 = vld [vmem:[#allocation6 + $0x160] sm:$0xff]
    %v375 = vld [vmem:[#allocation6 + $0x168] sm:$0xff]
    %v376 = vld [vmem:[#allocation6 + $0x170] sm:$0xff]
    %v377 = vld [vmem:[#allocation6 + $0x178] sm:$0xff]
    %v378 = vld [vmem:[#allocation6 + $0x180] sm:$0xff]
    %v379 = vld [vmem:[#allocation6 + $0x188] sm:$0xff]
    %v380 = vld [vmem:[#allocation6 + $0x190] sm:$0xff]
    %v381 = vld [vmem:[#allocation6 + $0x198] sm:$0xff]
    %v382 = vld [vmem:[#allocation6 + $0x1a0] sm:$0xff]
    %v383 = vld [vmem:[#allocation6 + $0x1a8] sm:$0xff]
    %v384 = vld [vmem:[#allocation6 + $0x1b0] sm:$0xff]
    %v385 = vld [vmem:[#allocation6 + $0x1b8] sm:$0xff]
    %v386 = vld [vmem:[#allocation6 + $0x1c0] sm:$0xff]
    %v387 = vld [vmem:[#allocation6 + $0x1c8] sm:$0xff]
    %v388 = vld [vmem:[#allocation6 + $0x1d0] sm:$0xff]
    %v389 = vld [vmem:[#allocation6 + $0x1d8] sm:$0xff]
    %v390 = vld [vmem:[#allocation6 + $0x1e0] sm:$0xff]
    %v391 = vld [vmem:[#allocation6 + $0x1e8] sm:$0xff]
    %v392 = vld [vmem:[#allocation6 + $0x1f0] sm:$0xff]
    %v393 = vld [vmem:[#allocation6 + $0x1f8] sm:$0xff]
    %v394 = vld [vmem:[#allocation6 + $0x200] sm:$0xff]
    %v395 = vld [vmem:[#allocation6 + $0x208] sm:$0xff]
    %v396 = vld [vmem:[#allocation6 + $0x210] sm:$0xff]
    %v397 = vld [vmem:[#allocation6 + $0x218] sm:$0xff]
    %v398 = vld [vmem:[#allocation6 + $0x220] sm:$0xff]
    %v399 = vld [vmem:[#allocation6 + $0x228] sm:$0xff]
    %v400 = vld [vmem:[#allocation6 + $0x230] sm:$0xff]
    %v401 = vld [vmem:[#allocation6 + $0x238] sm:$0xff]
    %v402 = vld [vmem:[#allocation6 + $0x240] sm:$0xff]
    %v403 = vld [vmem:[#allocation6 + $0x248] sm:$0xff]
    %v404 = vld [vmem:[#allocation6 + $0x250] sm:$0xff]
    %v405 = vld [vmem:[#allocation6 + $0x258] sm:$0xff]
    %v406 = vld [vmem:[#allocation6 + $0x260] sm:$0xff]
    %v407 = vld [vmem:[#allocation6 + $0x268] sm:$0xff]
    %v408 = vld [vmem:[#allocation6 + $0x270] sm:$0xff]
    %v409 = vld [vmem:[#allocation6 + $0x278] sm:$0xff]
    %v410 = vld [vmem:[#allocation6 + $0x280] sm:$0xff]
    %v411 = vld [vmem:[#allocation6 + $0x288] sm:$0xff]
    %v412 = vld [vmem:[#allocation6 + $0x290] sm:$0xff]
    %v413 = vld [vmem:[#allocation6 + $0x298] sm:$0xff]
    %v414 = vld [vmem:[#allocation6 + $0x2a0] sm:$0xff]
    %v415 = vld [vmem:[#allocation6 + $0x2a8] sm:$0xff]
    %v416 = vld [vmem:[#allocation6 + $0x2b0] sm:$0xff]
    %v417 = vld [vmem:[#allocation6 + $0x2b8] sm:$0xff]
    %v418 = vld [vmem:[#allocation6 + $0x2c0] sm:$0xff]
    %v419 = vld [vmem:[#allocation6 + $0x2c8] sm:$0xff]
    %v420 = vld [vmem:[#allocation6 + $0x2d0] sm:$0xff]
    %v421 = vld [vmem:[#allocation6 + $0x2d8] sm:$0xff]
    %v422 = vld [vmem:[#allocation6 + $0x2e0] sm:$0xff]
    %v423 = vld [vmem:[#allocation6 + $0x2e8] sm:$0xff]
    %v424 = vld [vmem:[#allocation6 + $0x2f0] sm:$0xff]
    %v425 = vld [vmem:[#allocation6 + $0x2f8] sm:$0xff]
    %v426 = vld [vmem:[#allocation6 + $0x300] sm:$0xff]
    %v427 = vld [vmem:[#allocation6 + $0x308] sm:$0xff]
    %v428 = vld [vmem:[#allocation6 + $0x310] sm:$0xff]
    %v429 = vld [vmem:[#allocation6 + $0x318] sm:$0xff]
    %v430 = vld [vmem:[#allocation6 + $0x320] sm:$0xff]
    %v431 = vld [vmem:[#allocation6 + $0x328] sm:$0xff]
    %v432 = vld [vmem:[#allocation6 + $0x330] sm:$0xff]
    %v433 = vld [vmem:[#allocation6 + $0x338] sm:$0xff]
    %v434 = vld [vmem:[#allocation6 + $0x340] sm:$0xff]
    %v435 = vld [vmem:[#allocation6 + $0x348] sm:$0xff]
    %v436 = vld [vmem:[#allocation6 + $0x350] sm:$0xff]
    %v437 = vld [vmem:[#allocation6 + $0x358] sm:$0xff]
    %v438 = vld [vmem:[#allocation6 + $0x360] sm:$0xff]
    %v439 = vld [vmem:[#allocation6 + $0x368] sm:$0xff]
    %v440 = vld [vmem:[#allocation6 + $0x370] sm:$0xff]
    %v441 = vld [vmem:[#allocation6 + $0x378] sm:$0xff]
    %v442 = vld [vmem:[#allocation6 + $0x380] sm:$0xff]
    %v443 = vld [vmem:[#allocation6 + $0x388] sm:$0xff]
    %v444 = vld [vmem:[#allocation6 + $0x390] sm:$0xff]
    %v445 = vld [vmem:[#allocation6 + $0x398] sm:$0xff]
    %v446 = vld [vmem:[#allocation6 + $0x3a0] sm:$0xff]
    %v447 = vld [vmem:[#allocation6 + $0x3a8] sm:$0xff]
    %v448 = vld [vmem:[#allocation6 + $0x3b0] sm:$0xff]
    %v449 = vld [vmem:[#allocation6 + $0x3b8] sm:$0xff]
    %v450 = vld [vmem:[#allocation6 + $0x3c0] sm:$0xff]
    %v451 = vld [vmem:[#allocation6 + $0x3c8] sm:$0xff]
    %v452 = vld [vmem:[#allocation6 + $0x3d0] sm:$0xff]
    %v453 = vld [vmem:[#allocation6 + $0x3d8] sm:$0xff]
    %v454 = vld [vmem:[#allocation6 + $0x3e0] sm:$0xff]
    %v455 = vld [vmem:[#allocation6 + $0x3e8] sm:$0xff]
    %v456 = vld [vmem:[#allocation6 + $0x3f0] sm:$0xff]
    %v457 = vld [vmem:[#allocation6 + $0x3f8] sm:$0xff]
    %v458 = vld [vmem:[#allocation8] sm:$0xf]
    %v460 = vlaneseq
    %v461 = vshrl.u32 %v460, 7
    %v462 = vsub.s32 0, %v461
    %v463 = vrot.slane %v458, %v462
    %v464 = vlaneseq
    %v465 = vshrl.u32 %v464, 7
    %v466 = vsub.s32 1, %v465
    %v467 = vrot.slane %v458, %v466
    %v468 = vlaneseq
    %v469 = vshrl.u32 %v468, 7
    %v470 = vsub.s32 2, %v469
    %v471 = vrot.slane %v458, %v470
    %v472 = vlaneseq
    %v473 = vshrl.u32 %v472, 7
    %v474 = vsub.s32 3, %v473
    %v475 = vrot.slane %v458, %v474
    %v480 = vxor.u32 %v219, 2147483648
    %v481 = vxor.u32 %v221, 2147483648
    %v482 = vxor.u32 %v292, 2147483648
    %v483 = vmul.f32 %v480, 1.442695
    %v484 = vpow.pop %v483
    %v485 = vmul.f32 %v481, 1.442695
    %v486 = vpow.pop %v485
    %v487 = vmul.f32 %v482, 1.442695
    %v488 = vpow.pop %v487
    %v489 = vadd.f32 %v484, 1.0
    %v490 = vadd.f32 %v486, 1.0
    %v491 = vadd.f32 %v488, 1.0
    %v492 = vrcp.pop %v489
    %v493 = vmul.f32 1.0, %v492
    %v494 = vrcp.pop %v490
    %v495 = vmul.f32 1.0, %v494
    %v496 = vrcp.pop %v491
    %v497 = vmul.f32 1.0, %v496
    %v498 = vtanh.pop %v294
    %v499 = vmul.f32 %v495, 0.0
    %v500 = vmul.f32 %v493, %v498
    %v501 = vadd.f32 %v499, %v500
    %v502 = vtanh.pop %v501
    %v503 = vmul.f32 %v497, %v502
    %504 = vst [vmem:[#allocation2] sm:$0xff] %v503
    %505 = vst [vmem:[#allocation2 + $0x8] sm:$0xff] 0.0
    %v506 = vld [vmem:[#allocation2] sm:$0xff]
    %v507 = vld [vmem:[#allocation2 + $0x8] sm:$0xff]
    %v508 = vpack.c.bf16 %v506, %v506
    %v509 = vpack.c.bf16 %v507, %v507
    %v638 = vunpack.c.l.b16 %v330
    %v639 = vunpack.c.h.b16 %v330
    %v640 = vunpack.c.l.b16 %v331
    %v641 = vunpack.c.h.b16 %v331
    %v642 = vunpack.c.l.b16 %v332
    %v643 = vunpack.c.h.b16 %v332
    %v644 = vunpack.c.l.b16 %v333
    %v645 = vunpack.c.h.b16 %v333
    %v646 = vunpack.c.l.b16 %v334
    %v647 = vunpack.c.h.b16 %v334
    %v648 = vunpack.c.l.b16 %v335
    %v649 = vunpack.c.h.b16 %v335
    %v650 = vunpack.c.l.b16 %v336
    %v651 = vunpack.c.h.b16 %v336
    %v652 = vunpack.c.l.b16 %v337
    %v653 = vunpack.c.h.b16 %v337
    %v654 = vunpack.c.l.b16 %v338
    %v655 = vunpack.c.h.b16 %v338
    %v656 = vunpack.c.l.b16 %v339
    %v657 = vunpack.c.h.b16 %v339
    %v658 = vunpack.c.l.b16 %v340
    %v659 = vunpack.c.h.b16 %v340
    %v660 = vunpack.c.l.b16 %v341
    %v661 = vunpack.c.h.b16 %v341
    %v662 = vunpack.c.l.b16 %v342
    %v663 = vunpack.c.h.b16 %v342
    %v664 = vunpack.c.l.b16 %v343
    %v665 = vunpack.c.h.b16 %v343
    %v666 = vunpack.c.l.b16 %v344
    %v667 = vunpack.c.h.b16 %v344
    %v668 = vunpack.c.l.b16 %v345
    %v669 = vunpack.c.h.b16 %v345
    %v670 = vunpack.c.l.b16 %v346
    %v671 = vunpack.c.h.b16 %v346
    %v672 = vunpack.c.l.b16 %v347
    %v673 = vunpack.c.h.b16 %v347
    %v674 = vunpack.c.l.b16 %v348
    %v675 = vunpack.c.h.b16 %v348
    %v676 = vunpack.c.l.b16 %v349
    %v677 = vunpack.c.h.b16 %v349
    %v678 = vunpack.c.l.b16 %v350
    %v679 = vunpack.c.h.b16 %v350
    %v680 = vunpack.c.l.b16 %v351
    %v681 = vunpack.c.h.b16 %v351
    %v682 = vunpack.c.l.b16 %v352
    %v683 = vunpack.c.h.b16 %v352
    %v684 = vunpack.c.l.b16 %v353
    %v685 = vunpack.c.h.b16 %v353
    %v686 = vunpack.c.l.b16 %v354
    %v687 = vunpack.c.h.b16 %v354
    %v688 = vunpack.c.l.b16 %v355
    %v689 = vunpack.c.h.b16 %v355
    %v690 = vunpack.c.l.b16 %v356
    %v691 = vunpack.c.h.b16 %v356
    %v692 = vunpack.c.l.b16 %v357
    %v693 = vunpack.c.h.b16 %v357
    %v694 = vunpack.c.l.b16 %v358
    %v695 = vunpack.c.h.b16 %v358
    %v696 = vunpack.c.l.b16 %v359
    %v697 = vunpack.c.h.b16 %v359
    %v698 = vunpack.c.l.b16 %v360
    %v699 = vunpack.c.h.b16 %v360
    %v700 = vunpack.c.l.b16 %v361
    %v701 = vunpack.c.h.b16 %v361
    %v702 = vunpack.c.l.b16 %v362
    %v703 = vunpack.c.h.b16 %v362
    %v704 = vunpack.c.l.b16 %v363
    %v705 = vunpack.c.h.b16 %v363
    %v706 = vunpack.c.l.b16 %v364
    %v707 = vunpack.c.h.b16 %v364
    %v708 = vunpack.c.l.b16 %v365
    %v709 = vunpack.c.h.b16 %v365
    %v710 = vunpack.c.l.b16 %v366
    %v711 = vunpack.c.h.b16 %v366
    %v712 = vunpack.c.l.b16 %v367
    %v713 = vunpack.c.h.b16 %v367
    %v714 = vunpack.c.l.b16 %v368
    %v715 = vunpack.c.h.b16 %v368
    %v716 = vunpack.c.l.b16 %v369
    %v717 = vunpack.c.h.b16 %v369
    %v718 = vunpack.c.l.b16 %v370
    %v719 = vunpack.c.h.b16 %v370
    %v720 = vunpack.c.l.b16 %v371
    %v721 = vunpack.c.h.b16 %v371
    %v722 = vunpack.c.l.b16 %v372
    %v723 = vunpack.c.h.b16 %v372
    %v724 = vunpack.c.l.b16 %v373
    %v725 = vunpack.c.h.b16 %v373
    %v726 = vunpack.c.l.b16 %v374
    %v727 = vunpack.c.h.b16 %v374
    %v728 = vunpack.c.l.b16 %v375
    %v729 = vunpack.c.h.b16 %v375
    %v730 = vunpack.c.l.b16 %v376
    %v731 = vunpack.c.h.b16 %v376
    %v732 = vunpack.c.l.b16 %v377
    %v733 = vunpack.c.h.b16 %v377
    %v734 = vunpack.c.l.b16 %v378
    %v735 = vunpack.c.h.b16 %v378
    %v736 = vunpack.c.l.b16 %v379
    %v737 = vunpack.c.h.b16 %v379
    %v738 = vunpack.c.l.b16 %v380
    %v739 = vunpack.c.h.b16 %v380
    %v740 = vunpack.c.l.b16 %v381
    %v741 = vunpack.c.h.b16 %v381
    %v742 = vunpack.c.l.b16 %v382
    %v743 = vunpack.c.h.b16 %v382
    %v744 = vunpack.c.l.b16 %v383
    %v745 = vunpack.c.h.b16 %v383
    %v746 = vunpack.c.l.b16 %v384
    %v747 = vunpack.c.h.b16 %v384
    %v748 = vunpack.c.l.b16 %v385
    %v749 = vunpack.c.h.b16 %v385
    %v750 = vunpack.c.l.b16 %v386
    %v751 = vunpack.c.h.b16 %v386
    %v752 = vunpack.c.l.b16 %v387
    %v753 = vunpack.c.h.b16 %v387
    %v754 = vunpack.c.l.b16 %v388
    %v755 = vunpack.c.h.b16 %v388
    %v756 = vunpack.c.l.b16 %v389
    %v757 = vunpack.c.h.b16 %v389
    %v758 = vunpack.c.l.b16 %v390
    %v759 = vunpack.c.h.b16 %v390
    %v760 = vunpack.c.l.b16 %v391
    %v761 = vunpack.c.h.b16 %v391
    %v762 = vunpack.c.l.b16 %v392
    %v763 = vunpack.c.h.b16 %v392
    %v764 = vunpack.c.l.b16 %v393
    %v765 = vunpack.c.h.b16 %v393
    %v766 = vunpack.c.l.b16 %v394
    %v767 = vunpack.c.h.b16 %v394
    %v768 = vunpack.c.l.b16 %v395
    %v769 = vunpack.c.h.b16 %v395
    %v770 = vunpack.c.l.b16 %v396
    %v771 = vunpack.c.h.b16 %v396
    %v772 = vunpack.c.l.b16 %v397
    %v773 = vunpack.c.h.b16 %v397
    %v774 = vunpack.c.l.b16 %v398
    %v775 = vunpack.c.h.b16 %v398
    %v776 = vunpack.c.l.b16 %v399
    %v777 = vunpack.c.h.b16 %v399
    %v778 = vunpack.c.l.b16 %v400
    %v779 = vunpack.c.h.b16 %v400
    %v780 = vunpack.c.l.b16 %v401
    %v781 = vunpack.c.h.b16 %v401
    %v782 = vunpack.c.l.b16 %v402
    %v783 = vunpack.c.h.b16 %v402
    %v784 = vunpack.c.l.b16 %v403
    %v785 = vunpack.c.h.b16 %v403
    %v786 = vunpack.c.l.b16 %v404
    %v787 = vunpack.c.h.b16 %v404
    %v788 = vunpack.c.l.b16 %v405
    %v789 = vunpack.c.h.b16 %v405
    %v790 = vunpack.c.l.b16 %v406
    %v791 = vunpack.c.h.b16 %v406
    %v792 = vunpack.c.l.b16 %v407
    %v793 = vunpack.c.h.b16 %v407
    %v794 = vunpack.c.l.b16 %v408
    %v795 = vunpack.c.h.b16 %v408
    %v796 = vunpack.c.l.b16 %v409
    %v797 = vunpack.c.h.b16 %v409
    %v798 = vunpack.c.l.b16 %v410
    %v799 = vunpack.c.h.b16 %v410
    %v800 = vunpack.c.l.b16 %v411
    %v801 = vunpack.c.h.b16 %v411
    %v802 = vunpack.c.l.b16 %v412
    %v803 = vunpack.c.h.b16 %v412
    %v804 = vunpack.c.l.b16 %v413
    %v805 = vunpack.c.h.b16 %v413
    %v806 = vunpack.c.l.b16 %v414
    %v807 = vunpack.c.h.b16 %v414
    %v808 = vunpack.c.l.b16 %v415
    %v809 = vunpack.c.h.b16 %v415
    %v810 = vunpack.c.l.b16 %v416
    %v811 = vunpack.c.h.b16 %v416
    %v812 = vunpack.c.l.b16 %v417
    %v813 = vunpack.c.h.b16 %v417
    %v814 = vunpack.c.l.b16 %v418
    %v815 = vunpack.c.h.b16 %v418
    %v816 = vunpack.c.l.b16 %v419
    %v817 = vunpack.c.h.b16 %v419
    %v818 = vunpack.c.l.b16 %v420
    %v819 = vunpack.c.h.b16 %v420
    %v820 = vunpack.c.l.b16 %v421
    %v821 = vunpack.c.h.b16 %v421
    %v822 = vunpack.c.l.b16 %v422
    %v823 = vunpack.c.h.b16 %v422
    %v824 = vunpack.c.l.b16 %v423
    %v825 = vunpack.c.h.b16 %v423
    %v826 = vunpack.c.l.b16 %v424
    %v827 = vunpack.c.h.b16 %v424
    %v828 = vunpack.c.l.b16 %v425
    %v829 = vunpack.c.h.b16 %v425
    %v830 = vunpack.c.l.b16 %v426
    %v831 = vunpack.c.h.b16 %v426
    %v832 = vunpack.c.l.b16 %v427
    %v833 = vunpack.c.h.b16 %v427
    %v834 = vunpack.c.l.b16 %v428
    %v835 = vunpack.c.h.b16 %v428
    %v836 = vunpack.c.l.b16 %v429
    %v837 = vunpack.c.h.b16 %v429
    %v838 = vunpack.c.l.b16 %v430
    %v839 = vunpack.c.h.b16 %v430
    %v840 = vunpack.c.l.b16 %v431
    %v841 = vunpack.c.h.b16 %v431
    %v842 = vunpack.c.l.b16 %v432
    %v843 = vunpack.c.h.b16 %v432
    %v844 = vunpack.c.l.b16 %v433
    %v845 = vunpack.c.h.b16 %v433
    %v846 = vunpack.c.l.b16 %v434
    %v847 = vunpack.c.h.b16 %v434
    %v848 = vunpack.c.l.b16 %v435
    %v849 = vunpack.c.h.b16 %v435
    %v850 = vunpack.c.l.b16 %v436
    %v851 = vunpack.c.h.b16 %v436
    %v852 = vunpack.c.l.b16 %v437
    %v853 = vunpack.c.h.b16 %v437
    %v854 = vunpack.c.l.b16 %v438
    %v855 = vunpack.c.h.b16 %v438
    %v856 = vunpack.c.l.b16 %v439
    %v857 = vunpack.c.h.b16 %v439
    %v858 = vunpack.c.l.b16 %v440
    %v859 = vunpack.c.h.b16 %v440
    %v860 = vunpack.c.l.b16 %v441
    %v861 = vunpack.c.h.b16 %v441
    %v862 = vunpack.c.l.b16 %v442
    %v863 = vunpack.c.h.b16 %v442
    %v864 = vunpack.c.l.b16 %v443
    %v865 = vunpack.c.h.b16 %v443
    %v866 = vunpack.c.l.b16 %v444
    %v867 = vunpack.c.h.b16 %v444
    %v868 = vunpack.c.l.b16 %v445
    %v869 = vunpack.c.h.b16 %v445
    %v870 = vunpack.c.l.b16 %v446
    %v871 = vunpack.c.h.b16 %v446
    %v872 = vunpack.c.l.b16 %v447
    %v873 = vunpack.c.h.b16 %v447
    %v874 = vunpack.c.l.b16 %v448
    %v875 = vunpack.c.h.b16 %v448
    %v876 = vunpack.c.l.b16 %v449
    %v877 = vunpack.c.h.b16 %v449
    %v878 = vunpack.c.l.b16 %v450
    %v879 = vunpack.c.h.b16 %v450
    %v880 = vunpack.c.l.b16 %v451
    %v881 = vunpack.c.h.b16 %v451
    %v882 = vunpack.c.l.b16 %v452
    %v883 = vunpack.c.h.b16 %v452
    %v884 = vunpack.c.l.b16 %v453
    %v885 = vunpack.c.h.b16 %v453
    %v886 = vunpack.c.l.b16 %v454
    %v887 = vunpack.c.h.b16 %v454
    %v888 = vunpack.c.l.b16 %v455
    %v889 = vunpack.c.h.b16 %v455
    %v890 = vunpack.c.l.b16 %v456
    %v891 = vunpack.c.h.b16 %v456
    %v892 = vunpack.c.l.b16 %v457
    %v893 = vunpack.c.h.b16 %v457
    %v894 = vpack.c.b16 %v646, %v638
    %v895 = vpack.c.b16 %v647, %v639
    %v896 = vpack.c.b16 %v648, %v640
    %v897 = vpack.c.b16 %v649, %v641
    %v898 = vpack.c.b16 %v650, %v642
    %v899 = vpack.c.b16 %v651, %v643
    %v900 = vpack.c.b16 %v652, %v644
    %v901 = vpack.c.b16 %v653, %v645
    %v902 = vpack.c.b16 %v662, %v654
    %v903 = vpack.c.b16 %v663, %v655
    %v904 = vpack.c.b16 %v664, %v656
    %v905 = vpack.c.b16 %v665, %v657
    %v906 = vpack.c.b16 %v666, %v658
    %v907 = vpack.c.b16 %v667, %v659
    %v908 = vpack.c.b16 %v668, %v660
    %v909 = vpack.c.b16 %v669, %v661
    %v910 = vpack.c.b16 %v678, %v670
    %v911 = vpack.c.b16 %v679, %v671
    %v912 = vpack.c.b16 %v680, %v672
    %v913 = vpack.c.b16 %v681, %v673
    %v914 = vpack.c.b16 %v682, %v674
    %v915 = vpack.c.b16 %v683, %v675
    %v916 = vpack.c.b16 %v684, %v676
    %v917 = vpack.c.b16 %v685, %v677
    %v918 = vpack.c.b16 %v694, %v686
    %v919 = vpack.c.b16 %v695, %v687
    %v920 = vpack.c.b16 %v696, %v688
    %v921 = vpack.c.b16 %v697, %v689
    %v922 = vpack.c.b16 %v698, %v690
    %v923 = vpack.c.b16 %v699, %v691
    %v924 = vpack.c.b16 %v700, %v692
    %v925 = vpack.c.b16 %v701, %v693
    %v926 = vpack.c.b16 %v710, %v702
    %v927 = vpack.c.b16 %v711, %v703
    %v928 = vpack.c.b16 %v712, %v704
    %v929 = vpack.c.b16 %v713, %v705
    %v930 = vpack.c.b16 %v714, %v706
    %v931 = vpack.c.b16 %v715, %v707
    %v932 = vpack.c.b16 %v716, %v708
    %v933 = vpack.c.b16 %v717, %v709
    %v934 = vpack.c.b16 %v726, %v718
    %v935 = vpack.c.b16 %v727, %v719
    %v936 = vpack.c.b16 %v728, %v720
    %v937 = vpack.c.b16 %v729, %v721
    %v938 = vpack.c.b16 %v730, %v722
    %v939 = vpack.c.b16 %v731, %v723
    %v940 = vpack.c.b16 %v732, %v724
    %v941 = vpack.c.b16 %v733, %v725
    %v942 = vpack.c.b16 %v742, %v734
    %v943 = vpack.c.b16 %v743, %v735
    %v944 = vpack.c.b16 %v744, %v736
    %v945 = vpack.c.b16 %v745, %v737
    %v946 = vpack.c.b16 %v746, %v738
    %v947 = vpack.c.b16 %v747, %v739
    %v948 = vpack.c.b16 %v748, %v740
    %v949 = vpack.c.b16 %v749, %v741
    %v950 = vpack.c.b16 %v758, %v750
    %v951 = vpack.c.b16 %v759, %v751
    %v952 = vpack.c.b16 %v760, %v752
    %v953 = vpack.c.b16 %v761, %v753
    %v954 = vpack.c.b16 %v762, %v754
    %v955 = vpack.c.b16 %v763, %v755
    %v956 = vpack.c.b16 %v764, %v756
    %v957 = vpack.c.b16 %v765, %v757
    %v958 = vpack.c.b16 %v774, %v766
    %v959 = vpack.c.b16 %v775, %v767
    %v960 = vpack.c.b16 %v776, %v768
    %v961 = vpack.c.b16 %v777, %v769
    %v962 = vpack.c.b16 %v778, %v770
    %v963 = vpack.c.b16 %v779, %v771
    %v964 = vpack.c.b16 %v780, %v772
    %v965 = vpack.c.b16 %v781, %v773
    %v966 = vpack.c.b16 %v790, %v782
    %v967 = vpack.c.b16 %v791, %v783
    %v968 = vpack.c.b16 %v792, %v784
    %v969 = vpack.c.b16 %v793, %v785
    %v970 = vpack.c.b16 %v794, %v786
    %v971 = vpack.c.b16 %v795, %v787
    %v972 = vpack.c.b16 %v796, %v788
    %v973 = vpack.c.b16 %v797, %v789
    %v974 = vpack.c.b16 %v806, %v798
    %v975 = vpack.c.b16 %v807, %v799
    %v976 = vpack.c.b16 %v808, %v800
    %v977 = vpack.c.b16 %v809, %v801
    %v978 = vpack.c.b16 %v810, %v802
    %v979 = vpack.c.b16 %v811, %v803
    %v980 = vpack.c.b16 %v812, %v804
    %v981 = vpack.c.b16 %v813, %v805
    %v982 = vpack.c.b16 %v822, %v814
    %v983 = vpack.c.b16 %v823, %v815
    %v984 = vpack.c.b16 %v824, %v816
    %v985 = vpack.c.b16 %v825, %v817
    %v986 = vpack.c.b16 %v826, %v818
    %v987 = vpack.c.b16 %v827, %v819
    %v988 = vpack.c.b16 %v828, %v820
    %v989 = vpack.c.b16 %v829, %v821
    %v990 = vpack.c.b16 %v838, %v830
    %v991 = vpack.c.b16 %v839, %v831
    %v992 = vpack.c.b16 %v840, %v832
    %v993 = vpack.c.b16 %v841, %v833
    %v994 = vpack.c.b16 %v842, %v834
    %v995 = vpack.c.b16 %v843, %v835
    %v996 = vpack.c.b16 %v844, %v836
    %v997 = vpack.c.b16 %v845, %v837
    %v998 = vpack.c.b16 %v854, %v846
    %v999 = vpack.c.b16 %v855, %v847
    %v1000 = vpack.c.b16 %v856, %v848
    %v1001 = vpack.c.b16 %v857, %v849
    %v1002 = vpack.c.b16 %v858, %v850
    %v1003 = vpack.c.b16 %v859, %v851
    %v1004 = vpack.c.b16 %v860, %v852
    %v1005 = vpack.c.b16 %v861, %v853
    %v1006 = vpack.c.b16 %v870, %v862
    %v1007 = vpack.c.b16 %v871, %v863
    %v1008 = vpack.c.b16 %v872, %v864
    %v1009 = vpack.c.b16 %v873, %v865
    %v1010 = vpack.c.b16 %v874, %v866
    %v1011 = vpack.c.b16 %v875, %v867
    %v1012 = vpack.c.b16 %v876, %v868
    %v1013 = vpack.c.b16 %v877, %v869
    %v1014 = vpack.c.b16 %v886, %v878
    %v1015 = vpack.c.b16 %v887, %v879
    %v1016 = vpack.c.b16 %v888, %v880
    %v1017 = vpack.c.b16 %v889, %v881
    %v1018 = vpack.c.b16 %v890, %v882
    %v1019 = vpack.c.b16 %v891, %v883
    %v1020 = vpack.c.b16 %v892, %v884
    %v1021 = vpack.c.b16 %v893, %v885
    %1150 = vmatprep.subr.bf16.mxu0 %v895
    %1151 = vmatpush1.bf16.msra.mxu0 %v894
    %1152 = vmatprep.subr.bf16.mxu0 %v903
    %1153 = vmatpush1.bf16.msra.mxu0 %v902
    %1154 = vmatprep.subr.bf16.mxu0 %v911
    %1155 = vmatpush1.bf16.msra.mxu0 %v910
    %1156 = vmatprep.subr.bf16.mxu0 %v919
    %1157 = vmatpush1.bf16.msra.mxu0 %v918
    %1158 = vmatprep.subr.bf16.mxu0 %v927
    %1159 = vmatpush1.bf16.msra.mxu0 %v926
    %1160 = vmatprep.subr.bf16.mxu0 %v935
    %1161 = vmatpush1.bf16.msra.mxu0 %v934
    %1162 = vmatprep.subr.bf16.mxu0 %v943
    %1163 = vmatpush1.bf16.msra.mxu0 %v942
    %1164 = vmatprep.subr.bf16.mxu0 %v951
    %1165 = vmatpush1.bf16.msra.mxu0 %v950
    %1166 = vmatprep.subr.bf16.mxu0 %v959
    %1167 = vmatpush1.bf16.msra.mxu0 %v958
    %1168 = vmatprep.subr.bf16.mxu0 %v967
    %1169 = vmatpush1.bf16.msra.mxu0 %v966
    %1170 = vmatprep.subr.bf16.mxu0 %v975
    %1171 = vmatpush1.bf16.msra.mxu0 %v974
    %1172 = vmatprep.subr.bf16.mxu0 %v983
    %1173 = vmatpush1.bf16.msra.mxu0 %v982
    %1174 = vmatprep.subr.bf16.mxu0 %v991
    %1175 = vmatpush1.bf16.msra.mxu0 %v990
    %1176 = vmatprep.subr.bf16.mxu0 %v999
    %1177 = vmatpush1.bf16.msra.mxu0 %v998
    %1178 = vmatprep.subr.bf16.mxu0 %v1007
    %1179 = vmatpush1.bf16.msra.mxu0 %v1006
    %1180 = vmatprep.subr.bf16.mxu0 %v1015
    %1181 = vmatpush1.bf16.msra.mxu0 %v1014
    %1182 = vmatprep.mubr.bf16.mxu0 %v509
    %1183 = vmatmul.mubr.bf16.gmra.mrb[0].mxu0 %v508
    %v1184 = vpop.f32.mrb[0].mxu0
    %v1185 = vadd.f32 0.0, %v1184
    %v1186 = vpop.f32.mrb[0].mxu0
    %v1187 = vadd.f32 0.0, %v1186
    %v1188 = vpop.f32.mrb[0].mxu0
    %v1189 = vpop.f32.mrb[0].mxu0
    %1190 = vdwg.mxu0
    %1191 = vmatprep.subr.bf16.mxu0 %v897
    %1192 = vmatpush1.bf16.msra.mxu0 %v896
    %1193 = vmatprep.subr.bf16.mxu0 %v905
    %1194 = vmatpush1.bf16.msra.mxu0 %v904
    %1195 = vmatprep.subr.bf16.mxu0 %v913
    %1196 = vmatpush1.bf16.msra.mxu0 %v912
    %1197 = vmatprep.subr.bf16.mxu0 %v921
    %1198 = vmatpush1.bf16.msra.mxu0 %v920
    %1199 = vmatprep.subr.bf16.mxu0 %v929
    %1200 = vmatpush1.bf16.msra.mxu0 %v928
    %1201 = vmatprep.subr.bf16.mxu0 %v937
    %1202 = vmatpush1.bf16.msra.mxu0 %v936
    %1203 = vmatprep.subr.bf16.mxu0 %v945
    %1204 = vmatpush1.bf16.msra.mxu0 %v944
    %1205 = vmatprep.subr.bf16.mxu0 %v953
    %1206 = vmatpush1.bf16.msra.mxu0 %v952
    %1207 = vmatprep.subr.bf16.mxu0 %v961
    %1208 = vmatpush1.bf16.msra.mxu0 %v960
    %1209 = vmatprep.subr.bf16.mxu0 %v969
    %1210 = vmatpush1.bf16.msra.mxu0 %v968
    %1211 = vmatprep.subr.bf16.mxu0 %v977
    %1212 = vmatpush1.bf16.msra.mxu0 %v976
    %1213 = vmatprep.subr.bf16.mxu0 %v985
    %1214 = vmatpush1.bf16.msra.mxu0 %v984
    %1215 = vmatprep.subr.bf16.mxu0 %v993
    %1216 = vmatpush1.bf16.msra.mxu0 %v992
    %1217 = vmatprep.subr.bf16.mxu0 %v1001
    %1218 = vmatpush1.bf16.msra.mxu0 %v1000
    %1219 = vmatprep.subr.bf16.mxu0 %v1009
    %1220 = vmatpush1.bf16.msra.mxu0 %v1008
    %1221 = vmatprep.subr.bf16.mxu0 %v1017
    %1222 = vmatpush1.bf16.msra.mxu0 %v1016
    %1223 = vmatprep.mubr.bf16.mxu0 %v509
    %1224 = vmatmul.mubr.bf16.gmra.mrb[0].mxu0 %v508
    %v1225 = vpop.f32.mrb[0].mxu0
    %v1226 = vadd.f32 0.0, %v1225
    %v1227 = vpop.f32.mrb[0].mxu0
    %v1228 = vadd.f32 0.0, %v1227
    %v1229 = vpop.f32.mrb[0].mxu0
    %v1230 = vpop.f32.mrb[0].mxu0
    %1231 = vdwg.mxu0
    %1232 = vmatprep.subr.bf16.mxu0 %v899
    %1233 = vmatpush1.bf16.msra.mxu0 %v898
    %1234 = vmatprep.subr.bf16.mxu0 %v907
    %1235 = vmatpush1.bf16.msra.mxu0 %v906
    %1236 = vmatprep.subr.bf16.mxu0 %v915
    %1237 = vmatpush1.bf16.msra.mxu0 %v914
    %1238 = vmatprep.subr.bf16.mxu0 %v923
    %1239 = vmatpush1.bf16.msra.mxu0 %v922
    %1240 = vmatprep.subr.bf16.mxu0 %v931
    %1241 = vmatpush1.bf16.msra.mxu0 %v930
    %1242 = vmatprep.subr.bf16.mxu0 %v939
    %1243 = vmatpush1.bf16.msra.mxu0 %v938
    %1244 = vmatprep.subr.bf16.mxu0 %v947
    %1245 = vmatpush1.bf16.msra.mxu0 %v946
    %1246 = vmatprep.subr.bf16.mxu0 %v955
    %1247 = vmatpush1.bf16.msra.mxu0 %v954
    %1248 = vmatprep.subr.bf16.mxu0 %v963
    %1249 = vmatpush1.bf16.msra.mxu0 %v962
    %1250 = vmatprep.subr.bf16.mxu0 %v971
    %1251 = vmatpush1.bf16.msra.mxu0 %v970
    %1252 = vmatprep.subr.bf16.mxu0 %v979
    %1253 = vmatpush1.bf16.msra.mxu0 %v978
    %1254 = vmatprep.subr.bf16.mxu0 %v987
    %1255 = vmatpush1.bf16.msra.mxu0 %v986
    %1256 = vmatprep.subr.bf16.mxu0 %v995
    %1257 = vmatpush1.bf16.msra.mxu0 %v994
    %1258 = vmatprep.subr.bf16.mxu0 %v1003
    %1259 = vmatpush1.bf16.msra.mxu0 %v1002
    %1260 = vmatprep.subr.bf16.mxu0 %v1011
    %1261 = vmatpush1.bf16.msra.mxu0 %v1010
    %1262 = vmatprep.subr.bf16.mxu0 %v1019
    %1263 = vmatpush1.bf16.msra.mxu0 %v1018
    %1264 = vmatprep.mubr.bf16.mxu0 %v509
    %1265 = vmatmul.mubr.bf16.gmra.mrb[0].mxu0 %v508
    %v1266 = vpop.f32.mrb[0].mxu0
    %v1267 = vadd.f32 0.0, %v1266
    %v1268 = vpop.f32.mrb[0].mxu0
    %v1269 = vadd.f32 0.0, %v1268
    %v1270 = vpop.f32.mrb[0].mxu0
    %v1271 = vpop.f32.mrb[0].mxu0
    %1272 = vdwg.mxu0
    %1273 = vmatprep.subr.bf16.mxu0 %v901
    %1274 = vmatpush1.bf16.msra.mxu0 %v900
    %1275 = vmatprep.subr.bf16.mxu0 %v909
    %1276 = vmatpush1.bf16.msra.mxu0 %v908
    %1277 = vmatprep.subr.bf16.mxu0 %v917
    %1278 = vmatpush1.bf16.msra.mxu0 %v916
    %1279 = vmatprep.subr.bf16.mxu0 %v925
    %1280 = vmatpush1.bf16.msra.mxu0 %v924
    %1281 = vmatprep.subr.bf16.mxu0 %v933
    %1282 = vmatpush1.bf16.msra.mxu0 %v932
    %1283 = vmatprep.subr.bf16.mxu0 %v941
    %1284 = vmatpush1.bf16.msra.mxu0 %v940
    %1285 = vmatprep.subr.bf16.mxu0 %v949
    %1286 = vmatpush1.bf16.msra.mxu0 %v948
    %1287 = vmatprep.subr.bf16.mxu0 %v957
    %1288 = vmatpush1.bf16.msra.mxu0 %v956
    %1289 = vmatprep.subr.bf16.mxu0 %v965
    %1290 = vmatpush1.bf16.msra.mxu0 %v964
    %1291 = vmatprep.subr.bf16.mxu0 %v973
    %1292 = vmatpush1.bf16.msra.mxu0 %v972
    %1293 = vmatprep.subr.bf16.mxu0 %v981
    %1294 = vmatpush1.bf16.msra.mxu0 %v980
    %1295 = vmatprep.subr.bf16.mxu0 %v989
    %1296 = vmatpush1.bf16.msra.mxu0 %v988
    %1297 = vmatprep.subr.bf16.mxu0 %v997
    %1298 = vmatpush1.bf16.msra.mxu0 %v996
    %1299 = vmatprep.subr.bf16.mxu0 %v1005
    %1300 = vmatpush1.bf16.msra.mxu0 %v1004
    %1301 = vmatprep.subr.bf16.mxu0 %v1013
    %1302 = vmatpush1.bf16.msra.mxu0 %v1012
    %1303 = vmatprep.subr.bf16.mxu0 %v1021
    %1304 = vmatpush1.bf16.msra.mxu0 %v1020
    %1305 = vmatprep.mubr.bf16.mxu0 %v509
    %1306 = vmatmul.mubr.bf16.gmra.mrb[0].mxu0 %v508
    %v1307 = vpop.f32.mrb[0].mxu0
    %v1308 = vadd.f32 0.0, %v1307
    %v1309 = vpop.f32.mrb[0].mxu0
    %v1310 = vadd.f32 0.0, %v1309
    %v1311 = vpop.f32.mrb[0].mxu0
    %v1312 = vpop.f32.mrb[0].mxu0
    %1313 = vdwg.mxu0
    %v1314 = vadd.f32 %v1267, %v463
    %v1315 = vadd.f32 %v1269, %v467
    %v1316 = vadd.f32 %v1308, %v471
    %v1317 = vadd.f32 %v1310, %v475
    %v1318 = vxor.u32 %v1314, 2147483648
    %v1319 = vxor.u32 %v1315, 2147483648
    %v1320 = vxor.u32 %v1316, 2147483648
    %v1321 = vmul.f32 %v1318, 1.442695
    %v1322 = vpow.pop %v1321
    %v1323 = vmul.f32 %v1319, 1.442695
    %v1324 = vpow.pop %v1323
    %v1325 = vmul.f32 %v1320, 1.442695
    %v1326 = vpow.pop %v1325
    %v1327 = vadd.f32 %v1322, 1.0
    %v1328 = vadd.f32 %v1324, 1.0
    %v1329 = vadd.f32 %v1326, 1.0
    %v1330 = vrcp.pop %v1327
    %v1331 = vmul.f32 1.0, %v1330
    %v1332 = vrcp.pop %v1328
    %v1333 = vmul.f32 1.0, %v1332
    %v1334 = vrcp.pop %v1329
    %v1335 = vmul.f32 1.0, %v1334
    %v1336 = vtanh.pop %v1317
    %v1337 = vmul.f32 %v1333, 0.0
    %v1338 = vmul.f32 %v1331, %v1336
    %v1339 = vadd.f32 %v1337, %v1338
    %v1340 = vtanh.pop %v1339
    %v1341 = vmul.f32 %v1335, %v1340
    %1342 = vst [vmem:[#allocation2 + $0x8] sm:$0xff] %v1341
    %v1343 = vadd.f32 %v223, %v1185
    %v1344 = vadd.f32 %v225, %v1187
    %v1345 = vadd.f32 %v296, %v1226
    %v1346 = vadd.f32 %v298, %v1228
    %v1347 = vxor.u32 %v1343, 2147483648
    %v1348 = vxor.u32 %v1344, 2147483648
    %v1349 = vxor.u32 %v1345, 2147483648
    %v1350 = vmul.f32 %v1347, 1.442695
    %v1351 = vpow.pop %v1350
    %v1352 = vmul.f32 %v1348, 1.442695
    %v1353 = vpow.pop %v1352
    %v1354 = vmul.f32 %v1349, 1.442695
    %v1355 = vpow.pop %v1354
    %v1356 = vadd.f32 %v1351, 1.0
    %v1357 = vadd.f32 %v1353, 1.0
    %v1358 = vadd.f32 %v1355, 1.0
    %v1359 = vrcp.pop %v1356
    %v1360 = vmul.f32 1.0, %v1359
    %v1361 = vrcp.pop %v1357
    %v1362 = vmul.f32 1.0, %v1361
    %v1363 = vrcp.pop %v1358
    %v1364 = vmul.f32 1.0, %v1363
    %v1365 = vtanh.pop %v1346
    %v1366 = vmul.f32 %v1362, %v501
    %v1367 = vmul.f32 %v1360, %v1365
    %v1368 = vadd.f32 %v1366, %v1367
    %v1369 = vtanh.pop %v1368
    %v1370 = vmul.f32 %v1364, %v1369
    %1371 = vst [vmem:[#allocation2] sm:$0xff] %v1370
    %v1372 = vld [vmem:[#allocation2] sm:$0xff]
    %v1373 = vld [vmem:[#allocation2 + $0x8] sm:$0xff]
    %v1374 = vpack.c.bf16 %v1372, %v1372
    %v1375 = vpack.c.bf16 %v1373, %v1373
    %1376 = vmatprep.subr.bf16.mxu0 %v895
    %1377 = vmatpush1.bf16.msra.mxu0 %v894
    %1378 = vmatprep.subr.bf16.mxu0 %v903
    %1379 = vmatpush1.bf16.msra.mxu0 %v902
    %1380 = vmatprep.subr.bf16.mxu0 %v911
    %1381 = vmatpush1.bf16.msra.mxu0 %v910
    %1382 = vmatprep.subr.bf16.mxu0 %v919
    %1383 = vmatpush1.bf16.msra.mxu0 %v918
    %1384 = vmatprep.subr.bf16.mxu0 %v927
    %1385 = vmatpush1.bf16.msra.mxu0 %v926
    %1386 = vmatprep.subr.bf16.mxu0 %v935
    %1387 = vmatpush1.bf16.msra.mxu0 %v934
    %1388 = vmatprep.subr.bf16.mxu0 %v943
    %1389 = vmatpush1.bf16.msra.mxu0 %v942
    %1390 = vmatprep.subr.bf16.mxu0 %v951
    %1391 = vmatpush1.bf16.msra.mxu0 %v950
    %1392 = vmatprep.subr.bf16.mxu0 %v959
    %1393 = vmatpush1.bf16.msra.mxu0 %v958
    %1394 = vmatprep.subr.bf16.mxu0 %v967
    %1395 = vmatpush1.bf16.msra.mxu0 %v966
    %1396 = vmatprep.subr.bf16.mxu0 %v975
    %1397 = vmatpush1.bf16.msra.mxu0 %v974
    %1398 = vmatprep.subr.bf16.mxu0 %v983
    %1399 = vmatpush1.bf16.msra.mxu0 %v982
    %1400 = vmatprep.subr.bf16.mxu0 %v991
    %1401 = vmatpush1.bf16.msra.mxu0 %v990
    %1402 = vmatprep.subr.bf16.mxu0 %v999
    %1403 = vmatpush1.bf16.msra.mxu0 %v998
    %1404 = vmatprep.subr.bf16.mxu0 %v1007
    %1405 = vmatpush1.bf16.msra.mxu0 %v1006
    %1406 = vmatprep.subr.bf16.mxu0 %v1015
    %1407 = vmatpush1.bf16.msra.mxu0 %v1014
    %1408 = vmatprep.mubr.bf16.mxu0 %v1375
    %1409 = vmatmul.mubr.bf16.gmra.mrb[0].mxu0 %v1374
    %v1410 = vpop.f32.mrb[0].mxu0
    %v1411 = vadd.f32 0.0, %v1410
    %v1412 = vpop.f32.mrb[0].mxu0
    %v1413 = vadd.f32 0.0, %v1412
    %v1414 = vpop.f32.mrb[0].mxu0
    %v1415 = vpop.f32.mrb[0].mxu0
    %1416 = vdwg.mxu0
    %1417 = vmatprep.subr.bf16.mxu0 %v897
    %1418 = vmatpush1.bf16.msra.mxu0 %v896
    %1419 = vmatprep.subr.bf16.mxu0 %v905
    %1420 = vmatpush1.bf16.msra.mxu0 %v904
    %1421 = vmatprep.subr.bf16.mxu0 %v913
    %1422 = vmatpush1.bf16.msra.mxu0 %v912
    %1423 = vmatprep.subr.bf16.mxu0 %v921
    %1424 = vmatpush1.bf16.msra.mxu0 %v920
    %1425 = vmatprep.subr.bf16.mxu0 %v929
    %1426 = vmatpush1.bf16.msra.mxu0 %v928
    %1427 = vmatprep.subr.bf16.mxu0 %v937
    %1428 = vmatpush1.bf16.msra.mxu0 %v936
    %1429 = vmatprep.subr.bf16.mxu0 %v945
    %1430 = vmatpush1.bf16.msra.mxu0 %v944
    %1431 = vmatprep.subr.bf16.mxu0 %v953
    %1432 = vmatpush1.bf16.msra.mxu0 %v952
    %1433 = vmatprep.subr.bf16.mxu0 %v961
    %1434 = vmatpush1.bf16.msra.mxu0 %v960
    %1435 = vmatprep.subr.bf16.mxu0 %v969
    %1436 = vmatpush1.bf16.msra.mxu0 %v968
    %1437 = vmatprep.subr.bf16.mxu0 %v977
    %1438 = vmatpush1.bf16.msra.mxu0 %v976
    %1439 = vmatprep.subr.bf16.mxu0 %v985
    %1440 = vmatpush1.bf16.msra.mxu0 %v984
    %1441 = vmatprep.subr.bf16.mxu0 %v993
    %1442 = vmatpush1.bf16.msra.mxu0 %v992
    %1443 = vmatprep.subr.bf16.mxu0 %v1001
    %1444 = vmatpush1.bf16.msra.mxu0 %v1000
    %1445 = vmatprep.subr.bf16.mxu0 %v1009
    %1446 = vmatpush1.bf16.msra.mxu0 %v1008
    %1447 = vmatprep.subr.bf16.mxu0 %v1017
    %1448 = vmatpush1.bf16.msra.mxu0 %v1016
    %1449 = vmatprep.mubr.bf16.mxu0 %v1375
    %1450 = vmatmul.mubr.bf16.gmra.mrb[0].mxu0 %v1374
    %v1451 = vpop.f32.mrb[0].mxu0
    %v1452 = vadd.f32 0.0, %v1451
    %v1453 = vpop.f32.mrb[0].mxu0
    %v1454 = vadd.f32 0.0, %v1453
    %v1455 = vpop.f32.mrb[0].mxu0
    %v1456 = vpop.f32.mrb[0].mxu0
    %1457 = vdwg.mxu0
    %1458 = vmatprep.subr.bf16.mxu0 %v899
    %1459 = vmatpush1.bf16.msra.mxu0 %v898
    %1460 = vmatprep.subr.bf16.mxu0 %v907
    %1461 = vmatpush1.bf16.msra.mxu0 %v906
    %1462 = vmatprep.subr.bf16.mxu0 %v915
    %1463 = vmatpush1.bf16.msra.mxu0 %v914
    %1464 = vmatprep.subr.bf16.mxu0 %v923
    %1465 = vmatpush1.bf16.msra.mxu0 %v922
    %1466 = vmatprep.subr.bf16.mxu0 %v931
    %1467 = vmatpush1.bf16.msra.mxu0 %v930
    %1468 = vmatprep.subr.bf16.mxu0 %v939
    %1469 = vmatpush1.bf16.msra.mxu0 %v938
    %1470 = vmatprep.subr.bf16.mxu0 %v947
    %1471 = vmatpush1.bf16.msra.mxu0 %v946
    %1472 = vmatprep.subr.bf16.mxu0 %v955
    %1473 = vmatpush1.bf16.msra.mxu0 %v954
    %1474 = vmatprep.subr.bf16.mxu0 %v963
    %1475 = vmatpush1.bf16.msra.mxu0 %v962
    %1476 = vmatprep.subr.bf16.mxu0 %v971
    %1477 = vmatpush1.bf16.msra.mxu0 %v970
    %1478 = vmatprep.subr.bf16.mxu0 %v979
    %1479 = vmatpush1.bf16.msra.mxu0 %v978
    %1480 = vmatprep.subr.bf16.mxu0 %v987
    %1481 = vmatpush1.bf16.msra.mxu0 %v986
    %1482 = vmatprep.subr.bf16.mxu0 %v995
    %1483 = vmatpush1.bf16.msra.mxu0 %v994
    %1484 = vmatprep.subr.bf16.mxu0 %v1003
    %1485 = vmatpush1.bf16.msra.mxu0 %v1002
    %1486 = vmatprep.subr.bf16.mxu0 %v1011
    %1487 = vmatpush1.bf16.msra.mxu0 %v1010
    %1488 = vmatprep.subr.bf16.mxu0 %v1019
    %1489 = vmatpush1.bf16.msra.mxu0 %v1018
    %1490 = vmatprep.mubr.bf16.mxu0 %v1375
    %1491 = vmatmul.mubr.bf16.gmra.mrb[0].mxu0 %v1374
    %v1492 = vpop.f32.mrb[0].mxu0
    %v1493 = vadd.f32 0.0, %v1492
    %v1494 = vpop.f32.mrb[0].mxu0
    %v1495 = vadd.f32 0.0, %v1494
    %v1496 = vpop.f32.mrb[0].mxu0
    %v1497 = vpop.f32.mrb[0].mxu0
    %1498 = vdwg.mxu0
    %1499 = vmatprep.subr.bf16.mxu0 %v901
    %1500 = vmatpush1.bf16.msra.mxu0 %v900
    %1501 = vmatprep.subr.bf16.mxu0 %v909
    %1502 = vmatpush1.bf16.msra.mxu0 %v908
    %1503 = vmatprep.subr.bf16.mxu0 %v917
    %1504 = vmatpush1.bf16.msra.mxu0 %v916
    %1505 = vmatprep.subr.bf16.mxu0 %v925
    %1506 = vmatpush1.bf16.msra.mxu0 %v924
    %1507 = vmatprep.subr.bf16.mxu0 %v933
    %1508 = vmatpush1.bf16.msra.mxu0 %v932
    %1509 = vmatprep.subr.bf16.mxu0 %v941
    %1510 = vmatpush1.bf16.msra.mxu0 %v940
    %1511 = vmatprep.subr.bf16.mxu0 %v949
    %1512 = vmatpush1.bf16.msra.mxu0 %v948
    %1513 = vmatprep.subr.bf16.mxu0 %v957
    %1514 = vmatpush1.bf16.msra.mxu0 %v956
    %1515 = vmatprep.subr.bf16.mxu0 %v965
    %1516 = vmatpush1.bf16.msra.mxu0 %v964
    %1517 = vmatprep.subr.bf16.mxu0 %v973
    %1518 = vmatpush1.bf16.msra.mxu0 %v972
    %1519 = vmatprep.subr.bf16.mxu0 %v981
    %1520 = vmatpush1.bf16.msra.mxu0 %v980
    %1521 = vmatprep.subr.bf16.mxu0 %v989
    %1522 = vmatpush1.bf16.msra.mxu0 %v988
    %1523 = vmatprep.subr.bf16.mxu0 %v997
    %1524 = vmatpush1.bf16.msra.mxu0 %v996
    %1525 = vmatprep.subr.bf16.mxu0 %v1005
    %1526 = vmatpush1.bf16.msra.mxu0 %v1004
    %1527 = vmatprep.subr.bf16.mxu0 %v1013
    %1528 = vmatpush1.bf16.msra.mxu0 %v1012
    %1529 = vmatprep.subr.bf16.mxu0 %v1021
    %1530 = vmatpush1.bf16.msra.mxu0 %v1020
    %1531 = vmatprep.mubr.bf16.mxu0 %v1375
    %1532 = vmatmul.mubr.bf16.gmra.mrb[0].mxu0 %v1374
    %v1533 = vpop.f32.mrb[0].mxu0
    %v1534 = vadd.f32 0.0, %v1533
    %v1535 = vpop.f32.mrb[0].mxu0
    %v1536 = vadd.f32 0.0, %v1535
    %v1537 = vpop.f32.mrb[0].mxu0
    %v1538 = vpop.f32.mrb[0].mxu0
    %1539 = vdwg.mxu0
    %v1540 = vadd.f32 %v1493, %v463
    %v1541 = vadd.f32 %v1495, %v467
    %v1542 = vadd.f32 %v1534, %v471
    %v1543 = vadd.f32 %v1536, %v475
    %v1544 = vxor.u32 %v1540, 2147483648
    %v1545 = vxor.u32 %v1541, 2147483648
    %v1546 = vxor.u32 %v1542, 2147483648
    %v1547 = vmul.f32 %v1544, 1.442695
    %v1548 = vpow.pop %v1547
    %v1549 = vmul.f32 %v1545, 1.442695
    %v1550 = vpow.pop %v1549
    %v1551 = vmul.f32 %v1546, 1.442695
    %v1552 = vpow.pop %v1551
    %v1553 = vadd.f32 %v1548, 1.0
    %v1554 = vadd.f32 %v1550, 1.0
    %v1555 = vadd.f32 %v1552, 1.0
    %v1556 = vrcp.pop %v1553
    %v1557 = vmul.f32 1.0, %v1556
    %v1558 = vrcp.pop %v1554
    %v1559 = vmul.f32 1.0, %v1558
    %v1560 = vrcp.pop %v1555
    %v1561 = vmul.f32 1.0, %v1560
    %v1562 = vtanh.pop %v1543
    %v1563 = vmul.f32 %v1559, %v1339
    %v1564 = vmul.f32 %v1557, %v1562
    %v1565 = vadd.f32 %v1563, %v1564
    %v1566 = vtanh.pop %v1565
    %v1567 = vmul.f32 %v1561, %v1566
    %1568 = vst [vmem:[#allocation2 + $0x8] sm:$0xff] %v1567
    %v1569 = vadd.f32 %v229, %v1411
    %v1570 = vadd.f32 %v231, %v1413
    %v1571 = vadd.f32 %v302, %v1452
    %v1572 = vadd.f32 %v304, %v1454
    %v1573 = vxor.u32 %v1569, 2147483648
    %v1574 = vxor.u32 %v1570, 2147483648
    %v1575 = vxor.u32 %v1571, 2147483648
    %v1576 = vmul.f32 %v1573, 1.442695
    %v1577 = vpow.pop %v1576
    %v1578 = vmul.f32 %v1574, 1.442695
    %v1579 = vpow.pop %v1578
    %v1580 = vmul.f32 %v1575, 1.442695
    %v1581 = vpow.pop %v1580
    %v1582 = vadd.f32 %v1577, 1.0
    %v1583 = vadd.f32 %v1579, 1.0
    %v1584 = vadd.f32 %v1581, 1.0
    %v1585 = vrcp.pop %v1582
    %v1586 = vmul.f32 1.0, %v1585
    %v1587 = vrcp.pop %v1583
    %v1588 = vmul.f32 1.0, %v1587
    %v1589 = vrcp.pop %v1584
    %v1590 = vmul.f32 1.0, %v1589
    %v1591 = vtanh.pop %v1572
    %v1592 = vmul.f32 %v1588, %v1368
    %v1593 = vmul.f32 %v1586, %v1591
    %v1594 = vadd.f32 %v1592, %v1593
    %v1595 = vtanh.pop %v1594
    %v1596 = vmul.f32 %v1590, %v1595
    %1597 = vst [vmem:[#allocation2] sm:$0xff] %v1596
    %v1598 = vld [vmem:[#allocation2] sm:$0xff]
    %v1599 = vld [vmem:[#allocation2 + $0x8] sm:$0xff]
    %v1600 = vpack.c.bf16 %v1598, %v1598
    %v1601 = vpack.c.bf16 %v1599, %v1599
    %1602 = vmatprep.subr.bf16.mxu0 %v895
    %1603 = vmatpush1.bf16.msra.mxu0 %v894
    %1604 = vmatprep.subr.bf16.mxu0 %v903
    %1605 = vmatpush1.bf16.msra.mxu0 %v902
    %1606 = vmatprep.subr.bf16.mxu0 %v911
    %1607 = vmatpush1.bf16.msra.mxu0 %v910
    %1608 = vmatprep.subr.bf16.mxu0 %v919
    %1609 = vmatpush1.bf16.msra.mxu0 %v918
    %1610 = vmatprep.subr.bf16.mxu0 %v927
    %1611 = vmatpush1.bf16.msra.mxu0 %v926
    %1612 = vmatprep.subr.bf16.mxu0 %v935
    %1613 = vmatpush1.bf16.msra.mxu0 %v934
    %1614 = vmatprep.subr.bf16.mxu0 %v943
    %1615 = vmatpush1.bf16.msra.mxu0 %v942
    %1616 = vmatprep.subr.bf16.mxu0 %v951
    %1617 = vmatpush1.bf16.msra.mxu0 %v950
    %1618 = vmatprep.subr.bf16.mxu0 %v959
    %1619 = vmatpush1.bf16.msra.mxu0 %v958
    %1620 = vmatprep.subr.bf16.mxu0 %v967
    %1621 = vmatpush1.bf16.msra.mxu0 %v966
    %1622 = vmatprep.subr.bf16.mxu0 %v975
    %1623 = vmatpush1.bf16.msra.mxu0 %v974
    %1624 = vmatprep.subr.bf16.mxu0 %v983
    %1625 = vmatpush1.bf16.msra.mxu0 %v982
    %1626 = vmatprep.subr.bf16.mxu0 %v991
    %1627 = vmatpush1.bf16.msra.mxu0 %v990
    %1628 = vmatprep.subr.bf16.mxu0 %v999
    %1629 = vmatpush1.bf16.msra.mxu0 %v998
    %1630 = vmatprep.subr.bf16.mxu0 %v1007
    %1631 = vmatpush1.bf16.msra.mxu0 %v1006
    %1632 = vmatprep.subr.bf16.mxu0 %v1015
    %1633 = vmatpush1.bf16.msra.mxu0 %v1014
    %1634 = vmatprep.mubr.bf16.mxu0 %v1601
    %1635 = vmatmul.mubr.bf16.gmra.mrb[0].mxu0 %v1600
    %v1636 = vpop.f32.mrb[0].mxu0
    %v1637 = vadd.f32 0.0, %v1636
    %v1638 = vpop.f32.mrb[0].mxu0
    %v1639 = vadd.f32 0.0, %v1638
    %v1640 = vpop.f32.mrb[0].mxu0
    %v1641 = vpop.f32.mrb[0].mxu0
    %1642 = vdwg.mxu0
    %1643 = vmatprep.subr.bf16.mxu0 %v897
    %1644 = vmatpush1.bf16.msra.mxu0 %v896
    %1645 = vmatprep.subr.bf16.mxu0 %v905
    %1646 = vmatpush1.bf16.msra.mxu0 %v904
    %1647 = vmatprep.subr.bf16.mxu0 %v913
    %1648 = vmatpush1.bf16.msra.mxu0 %v912
    %1649 = vmatprep.subr.bf16.mxu0 %v921
    %1650 = vmatpush1.bf16.msra.mxu0 %v920
    %1651 = vmatprep.subr.bf16.mxu0 %v929
    %1652 = vmatpush1.bf16.msra.mxu0 %v928
    %1653 = vmatprep.subr.bf16.mxu0 %v937
    %1654 = vmatpush1.bf16.msra.mxu0 %v936
    %1655 = vmatprep.subr.bf16.mxu0 %v945
    %1656 = vmatpush1.bf16.msra.mxu0 %v944
    %1657 = vmatprep.subr.bf16.mxu0 %v953
    %1658 = vmatpush1.bf16.msra.mxu0 %v952
    %1659 = vmatprep.subr.bf16.mxu0 %v961
    %1660 = vmatpush1.bf16.msra.mxu0 %v960
    %1661 = vmatprep.subr.bf16.mxu0 %v969
    %1662 = vmatpush1.bf16.msra.mxu0 %v968
    %1663 = vmatprep.subr.bf16.mxu0 %v977
    %1664 = vmatpush1.bf16.msra.mxu0 %v976
    %1665 = vmatprep.subr.bf16.mxu0 %v985
    %1666 = vmatpush1.bf16.msra.mxu0 %v984
    %1667 = vmatprep.subr.bf16.mxu0 %v993
    %1668 = vmatpush1.bf16.msra.mxu0 %v992
    %1669 = vmatprep.subr.bf16.mxu0 %v1001
    %1670 = vmatpush1.bf16.msra.mxu0 %v1000
    %1671 = vmatprep.subr.bf16.mxu0 %v1009
    %1672 = vmatpush1.bf16.msra.mxu0 %v1008
    %1673 = vmatprep.subr.bf16.mxu0 %v1017
    %1674 = vmatpush1.bf16.msra.mxu0 %v1016
    %1675 = vmatprep.mubr.bf16.mxu0 %v1601
    %1676 = vmatmul.mubr.bf16.gmra.mrb[0].mxu0 %v1600
    %v1677 = vpop.f32.mrb[0].mxu0
    %v1678 = vadd.f32 0.0, %v1677
    %v1679 = vpop.f32.mrb[0].mxu0
    %v1680 = vadd.f32 0.0, %v1679
    %v1681 = vpop.f32.mrb[0].mxu0
    %v1682 = vpop.f32.mrb[0].mxu0
    %1683 = vdwg.mxu0
    %1684 = vmatprep.subr.bf16.mxu0 %v899
    %1685 = vmatpush1.bf16.msra.mxu0 %v898
    %1686 = vmatprep.subr.bf16.mxu0 %v907
    %1687 = vmatpush1.bf16.msra.mxu0 %v906
    %1688 = vmatprep.subr.bf16.mxu0 %v915
    %1689 = vmatpush1.bf16.msra.mxu0 %v914
    %1690 = vmatprep.subr.bf16.mxu0 %v923
    %1691 = vmatpush1.bf16.msra.mxu0 %v922
    %1692 = vmatprep.subr.bf16.mxu0 %v931
    %1693 = vmatpush1.bf16.msra.mxu0 %v930
    %1694 = vmatprep.subr.bf16.mxu0 %v939
    %1695 = vmatpush1.bf16.msra.mxu0 %v938
    %1696 = vmatprep.subr.bf16.mxu0 %v947
    %1697 = vmatpush1.bf16.msra.mxu0 %v946
    %1698 = vmatprep.subr.bf16.mxu0 %v955
    %1699 = vmatpush1.bf16.msra.mxu0 %v954
    %1700 = vmatprep.subr.bf16.mxu0 %v963
    %1701 = vmatpush1.bf16.msra.mxu0 %v962
    %1702 = vmatprep.subr.bf16.mxu0 %v971
    %1703 = vmatpush1.bf16.msra.mxu0 %v970
    %1704 = vmatprep.subr.bf16.mxu0 %v979
    %1705 = vmatpush1.bf16.msra.mxu0 %v978
    %1706 = vmatprep.subr.bf16.mxu0 %v987
    %1707 = vmatpush1.bf16.msra.mxu0 %v986
    %1708 = vmatprep.subr.bf16.mxu0 %v995
    %1709 = vmatpush1.bf16.msra.mxu0 %v994
    %1710 = vmatprep.subr.bf16.mxu0 %v1003
    %1711 = vmatpush1.bf16.msra.mxu0 %v1002
    %1712 = vmatprep.subr.bf16.mxu0 %v1011
    %1713 = vmatpush1.bf16.msra.mxu0 %v1010
    %1714 = vmatprep.subr.bf16.mxu0 %v1019
    %1715 = vmatpush1.bf16.msra.mxu0 %v1018
    %1716 = vmatprep.mubr.bf16.mxu0 %v1601
    %1717 = vmatmul.mubr.bf16.gmra.mrb[0].mxu0 %v1600
    %v1718 = vpop.f32.mrb[0].mxu0
    %v1719 = vadd.f32 0.0, %v1718
    %v1720 = vpop.f32.mrb[0].mxu0
    %v1721 = vadd.f32 0.0, %v1720
    %v1722 = vpop.f32.mrb[0].mxu0
    %v1723 = vpop.f32.mrb[0].mxu0
    %1724 = vdwg.mxu0
    %1725 = vmatprep.subr.bf16.mxu0 %v901
    %1726 = vmatpush1.bf16.msra.mxu0 %v900
    %1727 = vmatprep.subr.bf16.mxu0 %v909
    %1728 = vmatpush1.bf16.msra.mxu0 %v908
    %1729 = vmatprep.subr.bf16.mxu0 %v917
    %1730 = vmatpush1.bf16.msra.mxu0 %v916
    %1731 = vmatprep.subr.bf16.mxu0 %v925
    %1732 = vmatpush1.bf16.msra.mxu0 %v924
    %1733 = vmatprep.subr.bf16.mxu0 %v933
    %1734 = vmatpush1.bf16.msra.mxu0 %v932
    %1735 = vmatprep.subr.bf16.mxu0 %v941
    %1736 = vmatpush1.bf16.msra.mxu0 %v940
    %1737 = vmatprep.subr.bf16.mxu0 %v949
    %1738 = vmatpush1.bf16.msra.mxu0 %v948
    %1739 = vmatprep.subr.bf16.mxu0 %v957
    %1740 = vmatpush1.bf16.msra.mxu0 %v956
    %1741 = vmatprep.subr.bf16.mxu0 %v965
    %1742 = vmatpush1.bf16.msra.mxu0 %v964
    %1743 = vmatprep.subr.bf16.mxu0 %v973
    %1744 = vmatpush1.bf16.msra.mxu0 %v972
    %1745 = vmatprep.subr.bf16.mxu0 %v981
    %1746 = vmatpush1.bf16.msra.mxu0 %v980
    %1747 = vmatprep.subr.bf16.mxu0 %v989
    %1748 = vmatpush1.bf16.msra.mxu0 %v988
    %1749 = vmatprep.subr.bf16.mxu0 %v997
    %1750 = vmatpush1.bf16.msra.mxu0 %v996
    %1751 = vmatprep.subr.bf16.mxu0 %v1005
    %1752 = vmatpush1.bf16.msra.mxu0 %v1004
    %1753 = vmatprep.subr.bf16.mxu0 %v1013
    %1754 = vmatpush1.bf16.msra.mxu0 %v1012
    %1755 = vmatprep.subr.bf16.mxu0 %v1021
    %1756 = vmatpush1.bf16.msra.mxu0 %v1020
    %1757 = vmatprep.mubr.bf16.mxu0 %v1601
    %1758 = vmatmul.mubr.bf16.gmra.mrb[0].mxu0 %v1600
    %v1759 = vpop.f32.mrb[0].mxu0
    %v1760 = vadd.f32 0.0, %v1759
    %v1761 = vpop.f32.mrb[0].mxu0
    %v1762 = vadd.f32 0.0, %v1761
    %v1763 = vpop.f32.mrb[0].mxu0
    %v1764 = vpop.f32.mrb[0].mxu0
    %1765 = vdwg.mxu0
    %v1766 = vadd.f32 %v1719, %v463
    %v1767 = vadd.f32 %v1721, %v467
    %v1768 = vadd.f32 %v1760, %v471
    %v1769 = vadd.f32 %v1762, %v475
    %v1770 = vxor.u32 %v1766, 2147483648
    %v1771 = vxor.u32 %v1767, 2147483648
    %v1772 = vxor.u32 %v1768, 2147483648
    %v1773 = vmul.f32 %v1770, 1.442695
    %v1774 = vpow.pop %v1773
    %v1775 = vmul.f32 %v1771, 1.442695
    %v1776 = vpow.pop %v1775
    %v1777 = vmul.f32 %v1772, 1.442695
    %v1778 = vpow.pop %v1777
    %v1779 = vadd.f32 %v1774, 1.0
    %v1780 = vadd.f32 %v1776, 1.0
    %v1781 = vadd.f32 %v1778, 1.0
    %v1782 = vrcp.pop %v1779
    %v1783 = vmul.f32 1.0, %v1782
    %v1784 = vrcp.pop %v1780
    %v1785 = vmul.f32 1.0, %v1784
    %v1786 = vrcp.pop %v1781
    %v1787 = vmul.f32 1.0, %v1786
    %v1788 = vtanh.pop %v1769
    %v1789 = vmul.f32 %v1785, %v1565
    %v1790 = vmul.f32 %v1783, %v1788
    %v1791 = vadd.f32 %v1789, %v1790
    %v1792 = vtanh.pop %v1791
    %v1793 = vmul.f32 %v1787, %v1792
    %1794 = vst [vmem:[#allocation2 + $0x8] sm:$0xff] %v1793
    %v1795 = vadd.f32 %v233, %v1637
    %v1796 = vadd.f32 %v235, %v1639
    %v1797 = vadd.f32 %v306, %v1678
    %v1798 = vadd.f32 %v308, %v1680
    %v1799 = vxor.u32 %v1795, 2147483648
    %v1800 = vxor.u32 %v1796, 2147483648
    %v1801 = vxor.u32 %v1797, 2147483648
    %v1802 = vmul.f32 %v1799, 1.442695
    %v1803 = vpow.pop %v1802
    %v1804 = vmul.f32 %v1800, 1.442695
    %v1805 = vpow.pop %v1804
    %v1806 = vmul.f32 %v1801, 1.442695
    %v1807 = vpow.pop %v1806
    %v1808 = vadd.f32 %v1803, 1.0
    %v1809 = vadd.f32 %v1805, 1.0
    %v1810 = vadd.f32 %v1807, 1.0
    %v1811 = vrcp.pop %v1808
    %v1812 = vmul.f32 1.0, %v1811
    %v1813 = vrcp.pop %v1809
    %v1814 = vmul.f32 1.0, %v1813
    %v1815 = vrcp.pop %v1810
    %v1816 = vmul.f32 1.0, %v1815
    %v1817 = vtanh.pop %v1798
    %v1818 = vmul.f32 %v1814, %v1594
    %v1819 = vmul.f32 %v1812, %v1817
    %v1820 = vadd.f32 %v1818, %v1819
    %v1821 = vtanh.pop %v1820
    %v1822 = vmul.f32 %v1816, %v1821
    %1823 = vst [vmem:[#allocation2] sm:$0xff] %v1822
    %v1824 = vld [vmem:[#allocation2] sm:$0xff]
    %v1825 = vld [vmem:[#allocation2 + $0x8] sm:$0xff]
    %v1826 = vpack.c.bf16 %v1824, %v1824
    %v1827 = vpack.c.bf16 %v1825, %v1825
    %1828 = vmatprep.subr.bf16.mxu0 %v895
    %1829 = vmatpush1.bf16.msra.mxu0 %v894
    %1830 = vmatprep.subr.bf16.mxu0 %v903
    %1831 = vmatpush1.bf16.msra.mxu0 %v902
    %1832 = vmatprep.subr.bf16.mxu0 %v911
    %1833 = vmatpush1.bf16.msra.mxu0 %v910
    %1834 = vmatprep.subr.bf16.mxu0 %v919
    %1835 = vmatpush1.bf16.msra.mxu0 %v918
    %1836 = vmatprep.subr.bf16.mxu0 %v927
    %1837 = vmatpush1.bf16.msra.mxu0 %v926
    %1838 = vmatprep.subr.bf16.mxu0 %v935
    %1839 = vmatpush1.bf16.msra.mxu0 %v934
    %1840 = vmatprep.subr.bf16.mxu0 %v943
    %1841 = vmatpush1.bf16.msra.mxu0 %v942
    %1842 = vmatprep.subr.bf16.mxu0 %v951
    %1843 = vmatpush1.bf16.msra.mxu0 %v950
    %1844 = vmatprep.subr.bf16.mxu0 %v959
    %1845 = vmatpush1.bf16.msra.mxu0 %v958
    %1846 = vmatprep.subr.bf16.mxu0 %v967
    %1847 = vmatpush1.bf16.msra.mxu0 %v966
    %1848 = vmatprep.subr.bf16.mxu0 %v975
    %1849 = vmatpush1.bf16.msra.mxu0 %v974
    %1850 = vmatprep.subr.bf16.mxu0 %v983
    %1851 = vmatpush1.bf16.msra.mxu0 %v982
    %1852 = vmatprep.subr.bf16.mxu0 %v991
    %1853 = vmatpush1.bf16.msra.mxu0 %v990
    %1854 = vmatprep.subr.bf16.mxu0 %v999
    %1855 = vmatpush1.bf16.msra.mxu0 %v998
    %1856 = vmatprep.subr.bf16.mxu0 %v1007
    %1857 = vmatpush1.bf16.msra.mxu0 %v1006
    %1858 = vmatprep.subr.bf16.mxu0 %v1015
    %1859 = vmatpush1.bf16.msra.mxu0 %v1014
    %1860 = vmatprep.mubr.bf16.mxu0 %v1827
    %1861 = vmatmul.mubr.bf16.gmra.mrb[0].mxu0 %v1826
    %v1862 = vpop.f32.mrb[0].mxu0
    %v1863 = vadd.f32 0.0, %v1862
    %v1864 = vpop.f32.mrb[0].mxu0
    %v1865 = vadd.f32 0.0, %v1864
    %v1866 = vpop.f32.mrb[0].mxu0
    %v1867 = vpop.f32.mrb[0].mxu0
    %1868 = vdwg.mxu0
    %1869 = vmatprep.subr.bf16.mxu0 %v897
    %1870 = vmatpush1.bf16.msra.mxu0 %v896
    %1871 = vmatprep.subr.bf16.mxu0 %v905
    %1872 = vmatpush1.bf16.msra.mxu0 %v904
    %1873 = vmatprep.subr.bf16.mxu0 %v913
    %1874 = vmatpush1.bf16.msra.mxu0 %v912
    %1875 = vmatprep.subr.bf16.mxu0 %v921
    %1876 = vmatpush1.bf16.msra.mxu0 %v920
    %1877 = vmatprep.subr.bf16.mxu0 %v929
    %1878 = vmatpush1.bf16.msra.mxu0 %v928
    %1879 = vmatprep.subr.bf16.mxu0 %v937
    %1880 = vmatpush1.bf16.msra.mxu0 %v936
    %1881 = vmatprep.subr.bf16.mxu0 %v945
    %1882 = vmatpush1.bf16.msra.mxu0 %v944
    %1883 = vmatprep.subr.bf16.mxu0 %v953
    %1884 = vmatpush1.bf16.msra.mxu0 %v952
    %1885 = vmatprep.subr.bf16.mxu0 %v961
    %1886 = vmatpush1.bf16.msra.mxu0 %v960
    %1887 = vmatprep.subr.bf16.mxu0 %v969
    %1888 = vmatpush1.bf16.msra.mxu0 %v968
    %1889 = vmatprep.subr.bf16.mxu0 %v977
    %1890 = vmatpush1.bf16.msra.mxu0 %v976
    %1891 = vmatprep.subr.bf16.mxu0 %v985
    %1892 = vmatpush1.bf16.msra.mxu0 %v984
    %1893 = vmatprep.subr.bf16.mxu0 %v993
    %1894 = vmatpush1.bf16.msra.mxu0 %v992
    %1895 = vmatprep.subr.bf16.mxu0 %v1001
    %1896 = vmatpush1.bf16.msra.mxu0 %v1000
    %1897 = vmatprep.subr.bf16.mxu0 %v1009
    %1898 = vmatpush1.bf16.msra.mxu0 %v1008
    %1899 = vmatprep.subr.bf16.mxu0 %v1017
    %1900 = vmatpush1.bf16.msra.mxu0 %v1016
    %1901 = vmatprep.mubr.bf16.mxu0 %v1827
    %1902 = vmatmul.mubr.bf16.gmra.mrb[0].mxu0 %v1826
    %v1903 = vpop.f32.mrb[0].mxu0
    %v1904 = vadd.f32 0.0, %v1903
    %v1905 = vpop.f32.mrb[0].mxu0
    %v1906 = vadd.f32 0.0, %v1905
    %v1907 = vpop.f32.mrb[0].mxu0
    %v1908 = vpop.f32.mrb[0].mxu0
    %1909 = vdwg.mxu0
    %1910 = vmatprep.subr.bf16.mxu0 %v899
    %1911 = vmatpush1.bf16.msra.mxu0 %v898
    %1912 = vmatprep.subr.bf16.mxu0 %v907
    %1913 = vmatpush1.bf16.msra.mxu0 %v906
    %1914 = vmatprep.subr.bf16.mxu0 %v915
    %1915 = vmatpush1.bf16.msra.mxu0 %v914
    %1916 = vmatprep.subr.bf16.mxu0 %v923
    %1917 = vmatpush1.bf16.msra.mxu0 %v922
    %1918 = vmatprep.subr.bf16.mxu0 %v931
    %1919 = vmatpush1.bf16.msra.mxu0 %v930
    %1920 = vmatprep.subr.bf16.mxu0 %v939
    %1921 = vmatpush1.bf16.msra.mxu0 %v938
    %1922 = vmatprep.subr.bf16.mxu0 %v947
    %1923 = vmatpush1.bf16.msra.mxu0 %v946
    %1924 = vmatprep.subr.bf16.mxu0 %v955
    %1925 = vmatpush1.bf16.msra.mxu0 %v954
    %1926 = vmatprep.subr.bf16.mxu0 %v963
    %1927 = vmatpush1.bf16.msra.mxu0 %v962
    %1928 = vmatprep.subr.bf16.mxu0 %v971
    %1929 = vmatpush1.bf16.msra.mxu0 %v970
    %1930 = vmatprep.subr.bf16.mxu0 %v979
    %1931 = vmatpush1.bf16.msra.mxu0 %v978
    %1932 = vmatprep.subr.bf16.mxu0 %v987
    %1933 = vmatpush1.bf16.msra.mxu0 %v986
    %1934 = vmatprep.subr.bf16.mxu0 %v995
    %1935 = vmatpush1.bf16.msra.mxu0 %v994
    %1936 = vmatprep.subr.bf16.mxu0 %v1003
    %1937 = vmatpush1.bf16.msra.mxu0 %v1002
    %1938 = vmatprep.subr.bf16.mxu0 %v1011
    %1939 = vmatpush1.bf16.msra.mxu0 %v1010
    %1940 = vmatprep.subr.bf16.mxu0 %v1019
    %1941 = vmatpush1.bf16.msra.mxu0 %v1018
    %1942 = vmatprep.mubr.bf16.mxu0 %v1827
    %1943 = vmatmul.mubr.bf16.gmra.mrb[0].mxu0 %v1826
    %v1944 = vpop.f32.mrb[0].mxu0
    %v1945 = vadd.f32 0.0, %v1944
    %v1946 = vpop.f32.mrb[0].mxu0
    %v1947 = vadd.f32 0.0, %v1946
    %v1948 = vpop.f32.mrb[0].mxu0
    %v1949 = vpop.f32.mrb[0].mxu0
    %1950 = vdwg.mxu0
    %1951 = vmatprep.subr.bf16.mxu0 %v901
    %1952 = vmatpush1.bf16.msra.mxu0 %v900
    %1953 = vmatprep.subr.bf16.mxu0 %v909
    %1954 = vmatpush1.bf16.msra.mxu0 %v908
    %1955 = vmatprep.subr.bf16.mxu0 %v917
    %1956 = vmatpush1.bf16.msra.mxu0 %v916
    %1957 = vmatprep.subr.bf16.mxu0 %v925
    %1958 = vmatpush1.bf16.msra.mxu0 %v924
    %1959 = vmatprep.subr.bf16.mxu0 %v933
    %1960 = vmatpush1.bf16.msra.mxu0 %v932
    %1961 = vmatprep.subr.bf16.mxu0 %v941
    %1962 = vmatpush1.bf16.msra.mxu0 %v940
    %1963 = vmatprep.subr.bf16.mxu0 %v949
    %1964 = vmatpush1.bf16.msra.mxu0 %v948
    %1965 = vmatprep.subr.bf16.mxu0 %v957
    %1966 = vmatpush1.bf16.msra.mxu0 %v956
    %1967 = vmatprep.subr.bf16.mxu0 %v965
    %1968 = vmatpush1.bf16.msra.mxu0 %v964
    %1969 = vmatprep.subr.bf16.mxu0 %v973
    %1970 = vmatpush1.bf16.msra.mxu0 %v972
    %1971 = vmatprep.subr.bf16.mxu0 %v981
    %1972 = vmatpush1.bf16.msra.mxu0 %v980
    %1973 = vmatprep.subr.bf16.mxu0 %v989
    %1974 = vmatpush1.bf16.msra.mxu0 %v988
    %1975 = vmatprep.subr.bf16.mxu0 %v997
    %1976 = vmatpush1.bf16.msra.mxu0 %v996
    %1977 = vmatprep.subr.bf16.mxu0 %v1005
    %1978 = vmatpush1.bf16.msra.mxu0 %v1004
    %1979 = vmatprep.subr.bf16.mxu0 %v1013
    %1980 = vmatpush1.bf16.msra.mxu0 %v1012
    %1981 = vmatprep.subr.bf16.mxu0 %v1021
    %1982 = vmatpush1.bf16.msra.mxu0 %v1020
    %1983 = vmatprep.mubr.bf16.mxu0 %v1827
    %1984 = vmatmul.mubr.bf16.gmra.mrb[0].mxu0 %v1826
    %v1985 = vpop.f32.mrb[0].mxu0
    %v1986 = vadd.f32 0.0, %v1985
    %v1987 = vpop.f32.mrb[0].mxu0
    %v1988 = vadd.f32 0.0, %v1987
    %v1989 = vpop.f32.mrb[0].mxu0
    %v1990 = vpop.f32.mrb[0].mxu0
    %1991 = vdwg.mxu0
    %v1992 = vadd.f32 %v1945, %v463
    %v1993 = vadd.f32 %v1947, %v467
    %v1994 = vadd.f32 %v1986, %v471
    %v1995 = vadd.f32 %v1988, %v475
    %v1996 = vxor.u32 %v1992, 2147483648
    %v1997 = vxor.u32 %v1993, 2147483648
    %v1998 = vxor.u32 %v1994, 2147483648
    %v1999 = vmul.f32 %v1996, 1.442695
    %v2000 = vpow.pop %v1999
    %v2001 = vmul.f32 %v1997, 1.442695
    %v2002 = vpow.pop %v2001
    %v2003 = vmul.f32 %v1998, 1.442695
    %v2004 = vpow.pop %v2003
    %v2005 = vadd.f32 %v2000, 1.0
    %v2006 = vadd.f32 %v2002, 1.0
    %v2007 = vadd.f32 %v2004, 1.0
    %v2008 = vrcp.pop %v2005
    %v2009 = vmul.f32 1.0, %v2008
    %v2010 = vrcp.pop %v2006
    %v2011 = vmul.f32 1.0, %v2010
    %v2012 = vrcp.pop %v2007
    %v2013 = vmul.f32 1.0, %v2012
    %v2014 = vtanh.pop %v1995
    %v2015 = vmul.f32 %v2011, %v1791
    %v2016 = vmul.f32 %v2009, %v2014
    %v2017 = vadd.f32 %v2015, %v2016
    %v2018 = vtanh.pop %v2017
    %v2019 = vmul.f32 %v2013, %v2018
    %2020 = vst [vmem:[#allocation2 + $0x8] sm:$0xff] %v2019
    %v2021 = vadd.f32 %v239, %v1863
    %v2022 = vadd.f32 %v241, %v1865
    %v2023 = vadd.f32 %v312, %v1904
    %v2024 = vadd.f32 %v314, %v1906
    %v2025 = vxor.u32 %v2021, 2147483648
    %v2026 = vxor.u32 %v2022, 2147483648
    %v2027 = vxor.u32 %v2023, 2147483648
    %v2028 = vmul.f32 %v2025, 1.442695
    %v2029 = vpow.pop %v2028
    %v2030 = vmul.f32 %v2026, 1.442695
    %v2031 = vpow.pop %v2030
    %v2032 = vmul.f32 %v2027, 1.442695
    %v2033 = vpow.pop %v2032
    %v2034 = vadd.f32 %v2029, 1.0
    %v2035 = vadd.f32 %v2031, 1.0
    %v2036 = vadd.f32 %v2033, 1.0
    %v2037 = vrcp.pop %v2034
    %v2038 = vmul.f32 1.0, %v2037
    %v2039 = vrcp.pop %v2035
    %v2040 = vmul.f32 1.0, %v2039
    %v2041 = vrcp.pop %v2036
    %v2042 = vmul.f32 1.0, %v2041
    %v2043 = vtanh.pop %v2024
    %v2044 = vmul.f32 %v2040, %v1820
    %v2045 = vmul.f32 %v2038, %v2043
    %v2046 = vadd.f32 %v2044, %v2045
    %v2047 = vtanh.pop %v2046
    %v2048 = vmul.f32 %v2042, %v2047
    %2049 = vst [vmem:[#allocation2] sm:$0xff] %v2048
    %v2050 = vld [vmem:[#allocation2] sm:$0xff]
    %v2051 = vld [vmem:[#allocation2 + $0x8] sm:$0xff]
    %v2052 = vpack.c.bf16 %v2050, %v2050
    %v2053 = vpack.c.bf16 %v2051, %v2051
    %2054 = vmatprep.subr.bf16.mxu0 %v895
    %2055 = vmatpush1.bf16.msra.mxu0 %v894
    %2056 = vmatprep.subr.bf16.mxu0 %v903
    %2057 = vmatpush1.bf16.msra.mxu0 %v902
    %2058 = vmatprep.subr.bf16.mxu0 %v911
    %2059 = vmatpush1.bf16.msra.mxu0 %v910
    %2060 = vmatprep.subr.bf16.mxu0 %v919
    %2061 = vmatpush1.bf16.msra.mxu0 %v918
    %2062 = vmatprep.subr.bf16.mxu0 %v927
    %2063 = vmatpush1.bf16.msra.mxu0 %v926
    %2064 = vmatprep.subr.bf16.mxu0 %v935
    %2065 = vmatpush1.bf16.msra.mxu0 %v934
    %2066 = vmatprep.subr.bf16.mxu0 %v943
    %2067 = vmatpush1.bf16.msra.mxu0 %v942
    %2068 = vmatprep.subr.bf16.mxu0 %v951
    %2069 = vmatpush1.bf16.msra.mxu0 %v950
    %2070 = vmatprep.subr.bf16.mxu0 %v959
    %2071 = vmatpush1.bf16.msra.mxu0 %v958
    %2072 = vmatprep.subr.bf16.mxu0 %v967
    %2073 = vmatpush1.bf16.msra.mxu0 %v966
    %2074 = vmatprep.subr.bf16.mxu0 %v975
    %2075 = vmatpush1.bf16.msra.mxu0 %v974
    %2076 = vmatprep.subr.bf16.mxu0 %v983
    %2077 = vmatpush1.bf16.msra.mxu0 %v982
    %2078 = vmatprep.subr.bf16.mxu0 %v991
    %2079 = vmatpush1.bf16.msra.mxu0 %v990
    %2080 = vmatprep.subr.bf16.mxu0 %v999
    %2081 = vmatpush1.bf16.msra.mxu0 %v998
    %2082 = vmatprep.subr.bf16.mxu0 %v1007
    %2083 = vmatpush1.bf16.msra.mxu0 %v1006
    %2084 = vmatprep.subr.bf16.mxu0 %v1015
    %2085 = vmatpush1.bf16.msra.mxu0 %v1014
    %2086 = vmatprep.mubr.bf16.mxu0 %v2053
    %2087 = vmatmul.mubr.bf16.gmra.mrb[0].mxu0 %v2052
    %v2088 = vpop.f32.mrb[0].mxu0
    %v2089 = vadd.f32 0.0, %v2088
    %v2090 = vpop.f32.mrb[0].mxu0
    %v2091 = vadd.f32 0.0, %v2090
    %v2092 = vpop.f32.mrb[0].mxu0
    %v2093 = vpop.f32.mrb[0].mxu0
    %2094 = vdwg.mxu0
    %2095 = vmatprep.subr.bf16.mxu0 %v897
    %2096 = vmatpush1.bf16.msra.mxu0 %v896
    %2097 = vmatprep.subr.bf16.mxu0 %v905
    %2098 = vmatpush1.bf16.msra.mxu0 %v904
    %2099 = vmatprep.subr.bf16.mxu0 %v913
    %2100 = vmatpush1.bf16.msra.mxu0 %v912
    %2101 = vmatprep.subr.bf16.mxu0 %v921
    %2102 = vmatpush1.bf16.msra.mxu0 %v920
    %2103 = vmatprep.subr.bf16.mxu0 %v929
    %2104 = vmatpush1.bf16.msra.mxu0 %v928
    %2105 = vmatprep.subr.bf16.mxu0 %v937
    %2106 = vmatpush1.bf16.msra.mxu0 %v936
    %2107 = vmatprep.subr.bf16.mxu0 %v945
    %2108 = vmatpush1.bf16.msra.mxu0 %v944
    %2109 = vmatprep.subr.bf16.mxu0 %v953
    %2110 = vmatpush1.bf16.msra.mxu0 %v952
    %2111 = vmatprep.subr.bf16.mxu0 %v961
    %2112 = vmatpush1.bf16.msra.mxu0 %v960
    %2113 = vmatprep.subr.bf16.mxu0 %v969
    %2114 = vmatpush1.bf16.msra.mxu0 %v968
    %2115 = vmatprep.subr.bf16.mxu0 %v977
    %2116 = vmatpush1.bf16.msra.mxu0 %v976
    %2117 = vmatprep.subr.bf16.mxu0 %v985
    %2118 = vmatpush1.bf16.msra.mxu0 %v984
    %2119 = vmatprep.subr.bf16.mxu0 %v993
    %2120 = vmatpush1.bf16.msra.mxu0 %v992
    %2121 = vmatprep.subr.bf16.mxu0 %v1001
    %2122 = vmatpush1.bf16.msra.mxu0 %v1000
    %2123 = vmatprep.subr.bf16.mxu0 %v1009
    %2124 = vmatpush1.bf16.msra.mxu0 %v1008
    %2125 = vmatprep.subr.bf16.mxu0 %v1017
    %2126 = vmatpush1.bf16.msra.mxu0 %v1016
    %2127 = vmatprep.mubr.bf16.mxu0 %v2053
    %2128 = vmatmul.mubr.bf16.gmra.mrb[0].mxu0 %v2052
    %v2129 = vpop.f32.mrb[0].mxu0
    %v2130 = vadd.f32 0.0, %v2129
    %v2131 = vpop.f32.mrb[0].mxu0
    %v2132 = vadd.f32 0.0, %v2131
    %v2133 = vpop.f32.mrb[0].mxu0
    %v2134 = vpop.f32.mrb[0].mxu0
    %2135 = vdwg.mxu0
    %2136 = vmatprep.subr.bf16.mxu0 %v899
    %2137 = vmatpush1.bf16.msra.mxu0 %v898
    %2138 = vmatprep.subr.bf16.mxu0 %v907
    %2139 = vmatpush1.bf16.msra.mxu0 %v906
    %2140 = vmatprep.subr.bf16.mxu0 %v915
    %2141 = vmatpush1.bf16.msra.mxu0 %v914
    %2142 = vmatprep.subr.bf16.mxu0 %v923
    %2143 = vmatpush1.bf16.msra.mxu0 %v922
    %2144 = vmatprep.subr.bf16.mxu0 %v931
    %2145 = vmatpush1.bf16.msra.mxu0 %v930
    %2146 = vmatprep.subr.bf16.mxu0 %v939
    %2147 = vmatpush1.bf16.msra.mxu0 %v938
    %2148 = vmatprep.subr.bf16.mxu0 %v947
    %2149 = vmatpush1.bf16.msra.mxu0 %v946
    %2150 = vmatprep.subr.bf16.mxu0 %v955
    %2151 = vmatpush1.bf16.msra.mxu0 %v954
    %2152 = vmatprep.subr.bf16.mxu0 %v963
    %2153 = vmatpush1.bf16.msra.mxu0 %v962
    %2154 = vmatprep.subr.bf16.mxu0 %v971
    %2155 = vmatpush1.bf16.msra.mxu0 %v970
    %2156 = vmatprep.subr.bf16.mxu0 %v979
    %2157 = vmatpush1.bf16.msra.mxu0 %v978
    %2158 = vmatprep.subr.bf16.mxu0 %v987
    %2159 = vmatpush1.bf16.msra.mxu0 %v986
    %2160 = vmatprep.subr.bf16.mxu0 %v995
    %2161 = vmatpush1.bf16.msra.mxu0 %v994
    %2162 = vmatprep.subr.bf16.mxu0 %v1003
    %2163 = vmatpush1.bf16.msra.mxu0 %v1002
    %2164 = vmatprep.subr.bf16.mxu0 %v1011
    %2165 = vmatpush1.bf16.msra.mxu0 %v1010
    %2166 = vmatprep.subr.bf16.mxu0 %v1019
    %2167 = vmatpush1.bf16.msra.mxu0 %v1018
    %2168 = vmatprep.mubr.bf16.mxu0 %v2053
    %2169 = vmatmul.mubr.bf16.gmra.mrb[0].mxu0 %v2052
    %v2170 = vpop.f32.mrb[0].mxu0
    %v2171 = vadd.f32 0.0, %v2170
    %v2172 = vpop.f32.mrb[0].mxu0
    %v2173 = vadd.f32 0.0, %v2172
    %v2174 = vpop.f32.mrb[0].mxu0
    %v2175 = vpop.f32.mrb[0].mxu0
    %2176 = vdwg.mxu0
    %2177 = vmatprep.subr.bf16.mxu0 %v901
    %2178 = vmatpush1.bf16.msra.mxu0 %v900
    %2179 = vmatprep.subr.bf16.mxu0 %v909
    %2180 = vmatpush1.bf16.msra.mxu0 %v908
    %2181 = vmatprep.subr.bf16.mxu0 %v917
    %2182 = vmatpush1.bf16.msra.mxu0 %v916
    %2183 = vmatprep.subr.bf16.mxu0 %v925
    %2184 = vmatpush1.bf16.msra.mxu0 %v924
    %2185 = vmatprep.subr.bf16.mxu0 %v933
    %2186 = vmatpush1.bf16.msra.mxu0 %v932
    %2187 = vmatprep.subr.bf16.mxu0 %v941
    %2188 = vmatpush1.bf16.msra.mxu0 %v940
    %2189 = vmatprep.subr.bf16.mxu0 %v949
    %2190 = vmatpush1.bf16.msra.mxu0 %v948
    %2191 = vmatprep.subr.bf16.mxu0 %v957
    %2192 = vmatpush1.bf16.msra.mxu0 %v956
    %2193 = vmatprep.subr.bf16.mxu0 %v965
    %2194 = vmatpush1.bf16.msra.mxu0 %v964
    %2195 = vmatprep.subr.bf16.mxu0 %v973
    %2196 = vmatpush1.bf16.msra.mxu0 %v972
    %2197 = vmatprep.subr.bf16.mxu0 %v981
    %2198 = vmatpush1.bf16.msra.mxu0 %v980
    %2199 = vmatprep.subr.bf16.mxu0 %v989
    %2200 = vmatpush1.bf16.msra.mxu0 %v988
    %2201 = vmatprep.subr.bf16.mxu0 %v997
    %2202 = vmatpush1.bf16.msra.mxu0 %v996
    %2203 = vmatprep.subr.bf16.mxu0 %v1005
    %2204 = vmatpush1.bf16.msra.mxu0 %v1004
    %2205 = vmatprep.subr.bf16.mxu0 %v1013
    %2206 = vmatpush1.bf16.msra.mxu0 %v1012
    %2207 = vmatprep.subr.bf16.mxu0 %v1021
    %2208 = vmatpush1.bf16.msra.mxu0 %v1020
    %2209 = vmatprep.mubr.bf16.mxu0 %v2053
    %2210 = vmatmul.mubr.bf16.gmra.mrb[0].mxu0 %v2052
    %v2211 = vpop.f32.mrb[0].mxu0
    %v2212 = vadd.f32 0.0, %v2211
    %v2213 = vpop.f32.mrb[0].mxu0
    %v2214 = vadd.f32 0.0, %v2213
    %v2215 = vpop.f32.mrb[0].mxu0
    %v2216 = vpop.f32.mrb[0].mxu0
    %2217 = vdwg.mxu0
    %v2218 = vadd.f32 %v2171, %v463
    %v2219 = vadd.f32 %v2173, %v467
    %v2220 = vadd.f32 %v2212, %v471
    %v2221 = vadd.f32 %v2214, %v475
    %v2222 = vxor.u32 %v2218, 2147483648
    %v2223 = vxor.u32 %v2219, 2147483648
    %v2224 = vxor.u32 %v2220, 2147483648
    %v2225 = vmul.f32 %v2222, 1.442695
    %v2226 = vpow.pop %v2225
    %v2227 = vmul.f32 %v2223, 1.442695
    %v2228 = vpow.pop %v2227
    %v2229 = vmul.f32 %v2224, 1.442695
    %v2230 = vpow.pop %v2229
    %v2231 = vadd.f32 %v2226, 1.0
    %v2232 = vadd.f32 %v2228, 1.0
    %v2233 = vadd.f32 %v2230, 1.0
    %v2234 = vrcp.pop %v2231
    %v2235 = vmul.f32 1.0, %v2234
    %v2236 = vrcp.pop %v2232
    %v2237 = vmul.f32 1.0, %v2236
    %v2238 = vrcp.pop %v2233
    %v2239 = vmul.f32 1.0, %v2238
    %v2240 = vtanh.pop %v2221
    %v2241 = vmul.f32 %v2237, %v2017
    %v2242 = vmul.f32 %v2235, %v2240
    %v2243 = vadd.f32 %v2241, %v2242
    %v2244 = vtanh.pop %v2243
    %v2245 = vmul.f32 %v2239, %v2244
    %2246 = vst [vmem:[#allocation2 + $0x8] sm:$0xff] %v2245
    %v2247 = vadd.f32 %v243, %v2089
    %v2248 = vadd.f32 %v245, %v2091
    %v2249 = vadd.f32 %v316, %v2130
    %v2250 = vadd.f32 %v318, %v2132
    %v2251 = vxor.u32 %v2247, 2147483648
    %v2252 = vxor.u32 %v2248, 2147483648
    %v2253 = vxor.u32 %v2249, 2147483648
    %v2254 = vmul.f32 %v2251, 1.442695
    %v2255 = vpow.pop %v2254
    %v2256 = vmul.f32 %v2252, 1.442695
    %v2257 = vpow.pop %v2256
    %v2258 = vmul.f32 %v2253, 1.442695
    %v2259 = vpow.pop %v2258
    %v2260 = vadd.f32 %v2255, 1.0
    %v2261 = vadd.f32 %v2257, 1.0
    %v2262 = vadd.f32 %v2259, 1.0
    %v2263 = vrcp.pop %v2260
    %v2264 = vmul.f32 1.0, %v2263
    %v2265 = vrcp.pop %v2261
    %v2266 = vmul.f32 1.0, %v2265
    %v2267 = vrcp.pop %v2262
    %v2268 = vmul.f32 1.0, %v2267
    %v2269 = vtanh.pop %v2250
    %v2270 = vmul.f32 %v2266, %v2046
    %v2271 = vmul.f32 %v2264, %v2269
    %v2272 = vadd.f32 %v2270, %v2271
    %v2273 = vtanh.pop %v2272
    %v2274 = vmul.f32 %v2268, %v2273
    %2275 = vst [vmem:[#allocation2] sm:$0xff] %v2274
    %v2276 = vld [vmem:[#allocation2] sm:$0xff]
    %v2277 = vld [vmem:[#allocation2 + $0x8] sm:$0xff]
    %v2278 = vpack.c.bf16 %v2276, %v2276
    %v2279 = vpack.c.bf16 %v2277, %v2277
    %2280 = vmatprep.subr.bf16.mxu0 %v895
    %2281 = vmatpush1.bf16.msra.mxu0 %v894
    %2282 = vmatprep.subr.bf16.mxu0 %v903
    %2283 = vmatpush1.bf16.msra.mxu0 %v902
    %2284 = vmatprep.subr.bf16.mxu0 %v911
    %2285 = vmatpush1.bf16.msra.mxu0 %v910
    %2286 = vmatprep.subr.bf16.mxu0 %v919
    %2287 = vmatpush1.bf16.msra.mxu0 %v918
    %2288 = vmatprep.subr.bf16.mxu0 %v927
    %2289 = vmatpush1.bf16.msra.mxu0 %v926
    %2290 = vmatprep.subr.bf16.mxu0 %v935
    %2291 = vmatpush1.bf16.msra.mxu0 %v934
    %2292 = vmatprep.subr.bf16.mxu0 %v943
    %2293 = vmatpush1.bf16.msra.mxu0 %v942
    %2294 = vmatprep.subr.bf16.mxu0 %v951
    %2295 = vmatpush1.bf16.msra.mxu0 %v950
    %2296 = vmatprep.subr.bf16.mxu0 %v959
    %2297 = vmatpush1.bf16.msra.mxu0 %v958
    %2298 = vmatprep.subr.bf16.mxu0 %v967
    %2299 = vmatpush1.bf16.msra.mxu0 %v966
    %2300 = vmatprep.subr.bf16.mxu0 %v975
    %2301 = vmatpush1.bf16.msra.mxu0 %v974
    %2302 = vmatprep.subr.bf16.mxu0 %v983
    %2303 = vmatpush1.bf16.msra.mxu0 %v982
    %2304 = vmatprep.subr.bf16.mxu0 %v991
    %2305 = vmatpush1.bf16.msra.mxu0 %v990
    %2306 = vmatprep.subr.bf16.mxu0 %v999
    %2307 = vmatpush1.bf16.msra.mxu0 %v998
    %2308 = vmatprep.subr.bf16.mxu0 %v1007
    %2309 = vmatpush1.bf16.msra.mxu0 %v1006
    %2310 = vmatprep.subr.bf16.mxu0 %v1015
    %2311 = vmatpush1.bf16.msra.mxu0 %v1014
    %2312 = vmatprep.mubr.bf16.mxu0 %v2279
    %2313 = vmatmul.mubr.bf16.gmra.mrb[0].mxu0 %v2278
    %v2314 = vpop.f32.mrb[0].mxu0
    %v2315 = vadd.f32 0.0, %v2314
    %v2316 = vpop.f32.mrb[0].mxu0
    %v2317 = vadd.f32 0.0, %v2316
    %v2318 = vpop.f32.mrb[0].mxu0
    %v2319 = vpop.f32.mrb[0].mxu0
    %2320 = vdwg.mxu0
    %2321 = vmatprep.subr.bf16.mxu0 %v897
    %2322 = vmatpush1.bf16.msra.mxu0 %v896
    %2323 = vmatprep.subr.bf16.mxu0 %v905
    %2324 = vmatpush1.bf16.msra.mxu0 %v904
    %2325 = vmatprep.subr.bf16.mxu0 %v913
    %2326 = vmatpush1.bf16.msra.mxu0 %v912
    %2327 = vmatprep.subr.bf16.mxu0 %v921
    %2328 = vmatpush1.bf16.msra.mxu0 %v920
    %2329 = vmatprep.subr.bf16.mxu0 %v929
    %2330 = vmatpush1.bf16.msra.mxu0 %v928
    %2331 = vmatprep.subr.bf16.mxu0 %v937
    %2332 = vmatpush1.bf16.msra.mxu0 %v936
    %2333 = vmatprep.subr.bf16.mxu0 %v945
    %2334 = vmatpush1.bf16.msra.mxu0 %v944
    %2335 = vmatprep.subr.bf16.mxu0 %v953
    %2336 = vmatpush1.bf16.msra.mxu0 %v952
    %2337 = vmatprep.subr.bf16.mxu0 %v961
    %2338 = vmatpush1.bf16.msra.mxu0 %v960
    %2339 = vmatprep.subr.bf16.mxu0 %v969
    %2340 = vmatpush1.bf16.msra.mxu0 %v968
    %2341 = vmatprep.subr.bf16.mxu0 %v977
    %2342 = vmatpush1.bf16.msra.mxu0 %v976
    %2343 = vmatprep.subr.bf16.mxu0 %v985
    %2344 = vmatpush1.bf16.msra.mxu0 %v984
    %2345 = vmatprep.subr.bf16.mxu0 %v993
    %2346 = vmatpush1.bf16.msra.mxu0 %v992
    %2347 = vmatprep.subr.bf16.mxu0 %v1001
    %2348 = vmatpush1.bf16.msra.mxu0 %v1000
    %2349 = vmatprep.subr.bf16.mxu0 %v1009
    %2350 = vmatpush1.bf16.msra.mxu0 %v1008
    %2351 = vmatprep.subr.bf16.mxu0 %v1017
    %2352 = vmatpush1.bf16.msra.mxu0 %v1016
    %2353 = vmatprep.mubr.bf16.mxu0 %v2279
    %2354 = vmatmul.mubr.bf16.gmra.mrb[0].mxu0 %v2278
    %v2355 = vpop.f32.mrb[0].mxu0
    %v2356 = vadd.f32 0.0, %v2355
    %v2357 = vpop.f32.mrb[0].mxu0
    %v2358 = vadd.f32 0.0, %v2357
    %v2359 = vpop.f32.mrb[0].mxu0
    %v2360 = vpop.f32.mrb[0].mxu0
    %2361 = vdwg.mxu0
    %2362 = vmatprep.subr.bf16.mxu0 %v899
    %2363 = vmatpush1.bf16.msra.mxu0 %v898
    %2364 = vmatprep.subr.bf16.mxu0 %v907
    %2365 = vmatpush1.bf16.msra.mxu0 %v906
    %2366 = vmatprep.subr.bf16.mxu0 %v915
    %2367 = vmatpush1.bf16.msra.mxu0 %v914
    %2368 = vmatprep.subr.bf16.mxu0 %v923
    %2369 = vmatpush1.bf16.msra.mxu0 %v922
    %2370 = vmatprep.subr.bf16.mxu0 %v931
    %2371 = vmatpush1.bf16.msra.mxu0 %v930
    %2372 = vmatprep.subr.bf16.mxu0 %v939
    %2373 = vmatpush1.bf16.msra.mxu0 %v938
    %2374 = vmatprep.subr.bf16.mxu0 %v947
    %2375 = vmatpush1.bf16.msra.mxu0 %v946
    %2376 = vmatprep.subr.bf16.mxu0 %v955
    %2377 = vmatpush1.bf16.msra.mxu0 %v954
    %2378 = vmatprep.subr.bf16.mxu0 %v963
    %2379 = vmatpush1.bf16.msra.mxu0 %v962
    %2380 = vmatprep.subr.bf16.mxu0 %v971
    %2381 = vmatpush1.bf16.msra.mxu0 %v970
    %2382 = vmatprep.subr.bf16.mxu0 %v979
    %2383 = vmatpush1.bf16.msra.mxu0 %v978
    %2384 = vmatprep.subr.bf16.mxu0 %v987
    %2385 = vmatpush1.bf16.msra.mxu0 %v986
    %2386 = vmatprep.subr.bf16.mxu0 %v995
    %2387 = vmatpush1.bf16.msra.mxu0 %v994
    %2388 = vmatprep.subr.bf16.mxu0 %v1003
    %2389 = vmatpush1.bf16.msra.mxu0 %v1002
    %2390 = vmatprep.subr.bf16.mxu0 %v1011
    %2391 = vmatpush1.bf16.msra.mxu0 %v1010
    %2392 = vmatprep.subr.bf16.mxu0 %v1019
    %2393 = vmatpush1.bf16.msra.mxu0 %v1018
    %2394 = vmatprep.mubr.bf16.mxu0 %v2279
    %2395 = vmatmul.mubr.bf16.gmra.mrb[0].mxu0 %v2278
    %v2396 = vpop.f32.mrb[0].mxu0
    %v2397 = vadd.f32 0.0, %v2396
    %v2398 = vpop.f32.mrb[0].mxu0
    %v2399 = vadd.f32 0.0, %v2398
    %v2400 = vpop.f32.mrb[0].mxu0
    %v2401 = vpop.f32.mrb[0].mxu0
    %2402 = vdwg.mxu0
    %2403 = vmatprep.subr.bf16.mxu0 %v901
    %2404 = vmatpush1.bf16.msra.mxu0 %v900
    %2405 = vmatprep.subr.bf16.mxu0 %v909
    %2406 = vmatpush1.bf16.msra.mxu0 %v908
    %2407 = vmatprep.subr.bf16.mxu0 %v917
    %2408 = vmatpush1.bf16.msra.mxu0 %v916
    %2409 = vmatprep.subr.bf16.mxu0 %v925
    %2410 = vmatpush1.bf16.msra.mxu0 %v924
    %2411 = vmatprep.subr.bf16.mxu0 %v933
    %2412 = vmatpush1.bf16.msra.mxu0 %v932
    %2413 = vmatprep.subr.bf16.mxu0 %v941
    %2414 = vmatpush1.bf16.msra.mxu0 %v940
    %2415 = vmatprep.subr.bf16.mxu0 %v949
    %2416 = vmatpush1.bf16.msra.mxu0 %v948
    %2417 = vmatprep.subr.bf16.mxu0 %v957
    %2418 = vmatpush1.bf16.msra.mxu0 %v956
    %2419 = vmatprep.subr.bf16.mxu0 %v965
    %2420 = vmatpush1.bf16.msra.mxu0 %v964
    %2421 = vmatprep.subr.bf16.mxu0 %v973
    %2422 = vmatpush1.bf16.msra.mxu0 %v972
    %2423 = vmatprep.subr.bf16.mxu0 %v981
    %2424 = vmatpush1.bf16.msra.mxu0 %v980
    %2425 = vmatprep.subr.bf16.mxu0 %v989
    %2426 = vmatpush1.bf16.msra.mxu0 %v988
    %2427 = vmatprep.subr.bf16.mxu0 %v997
    %2428 = vmatpush1.bf16.msra.mxu0 %v996
    %2429 = vmatprep.subr.bf16.mxu0 %v1005
    %2430 = vmatpush1.bf16.msra.mxu0 %v1004
    %2431 = vmatprep.subr.bf16.mxu0 %v1013
    %2432 = vmatpush1.bf16.msra.mxu0 %v1012
    %2433 = vmatprep.subr.bf16.mxu0 %v1021
    %2434 = vmatpush1.bf16.msra.mxu0 %v1020
    %2435 = vmatprep.mubr.bf16.mxu0 %v2279
    %2436 = vmatmul.mubr.bf16.gmra.mrb[0].mxu0 %v2278
    %v2437 = vpop.f32.mrb[0].mxu0
    %v2438 = vadd.f32 0.0, %v2437
    %v2439 = vpop.f32.mrb[0].mxu0
    %v2440 = vadd.f32 0.0, %v2439
    %v2441 = vpop.f32.mrb[0].mxu0
    %v2442 = vpop.f32.mrb[0].mxu0
    %2443 = vdwg.mxu0
    %v2444 = vadd.f32 %v2397, %v463
    %v2445 = vadd.f32 %v2399, %v467
    %v2446 = vadd.f32 %v2438, %v471
    %v2447 = vadd.f32 %v2440, %v475
    %v2448 = vxor.u32 %v2444, 2147483648
    %v2449 = vxor.u32 %v2445, 2147483648
    %v2450 = vxor.u32 %v2446, 2147483648
    %v2451 = vmul.f32 %v2448, 1.442695
    %v2452 = vpow.pop %v2451
    %v2453 = vmul.f32 %v2449, 1.442695
    %v2454 = vpow.pop %v2453
    %v2455 = vmul.f32 %v2450, 1.442695
    %v2456 = vpow.pop %v2455
    %v2457 = vadd.f32 %v2452, 1.0
    %v2458 = vadd.f32 %v2454, 1.0
    %v2459 = vadd.f32 %v2456, 1.0
    %v2460 = vrcp.pop %v2457
    %v2461 = vmul.f32 1.0, %v2460
    %v2462 = vrcp.pop %v2458
    %v2463 = vmul.f32 1.0, %v2462
    %v2464 = vrcp.pop %v2459
    %v2465 = vmul.f32 1.0, %v2464
    %v2466 = vtanh.pop %v2447
    %v2467 = vmul.f32 %v2463, %v2243
    %v2468 = vmul.f32 %v2461, %v2466
    %v2469 = vadd.f32 %v2467, %v2468
    %v2470 = vtanh.pop %v2469
    %v2471 = vmul.f32 %v2465, %v2470
    %2472 = vst [vmem:[#allocation2 + $0x8] sm:$0xff] %v2471
    %v2473 = vadd.f32 %v249, %v2315
    %v2474 = vadd.f32 %v251, %v2317
    %v2475 = vadd.f32 %v322, %v2356
    %v2476 = vadd.f32 %v324, %v2358
    %v2477 = vxor.u32 %v2473, 2147483648
    %v2478 = vxor.u32 %v2474, 2147483648
    %v2479 = vxor.u32 %v2475, 2147483648
    %v2480 = vmul.f32 %v2477, 1.442695
    %v2481 = vpow.pop %v2480
    %v2482 = vmul.f32 %v2478, 1.442695
    %v2483 = vpow.pop %v2482
    %v2484 = vmul.f32 %v2479, 1.442695
    %v2485 = vpow.pop %v2484
    %v2486 = vadd.f32 %v2481, 1.0
    %v2487 = vadd.f32 %v2483, 1.0
    %v2488 = vadd.f32 %v2485, 1.0
    %v2489 = vrcp.pop %v2486
    %v2490 = vmul.f32 1.0, %v2489
    %v2491 = vrcp.pop %v2487
    %v2492 = vmul.f32 1.0, %v2491
    %v2493 = vrcp.pop %v2488
    %v2494 = vmul.f32 1.0, %v2493
    %v2495 = vtanh.pop %v2476
    %v2496 = vmul.f32 %v2492, %v2272
    %v2497 = vmul.f32 %v2490, %v2495
    %v2498 = vadd.f32 %v2496, %v2497
    %v2499 = vtanh.pop %v2498
    %v2500 = vmul.f32 %v2494, %v2499
    %2501 = vst [vmem:[#allocation2] sm:$0xff] %v2500
    %v2502 = vld [vmem:[#allocation2] sm:$0xff]
    %v2503 = vld [vmem:[#allocation2 + $0x8] sm:$0xff]
    %v2504 = vpack.c.bf16 %v2502, %v2502
    %v2505 = vpack.c.bf16 %v2503, %v2503
    %2506 = vmatprep.subr.bf16.mxu0 %v895
    %2507 = vmatpush1.bf16.msra.mxu0 %v894
    %2508 = vmatprep.subr.bf16.mxu0 %v903
    %2509 = vmatpush1.bf16.msra.mxu0 %v902
    %2510 = vmatprep.subr.bf16.mxu0 %v911
    %2511 = vmatpush1.bf16.msra.mxu0 %v910
    %2512 = vmatprep.subr.bf16.mxu0 %v919
    %2513 = vmatpush1.bf16.msra.mxu0 %v918
    %2514 = vmatprep.subr.bf16.mxu0 %v927
    %2515 = vmatpush1.bf16.msra.mxu0 %v926
    %2516 = vmatprep.subr.bf16.mxu0 %v935
    %2517 = vmatpush1.bf16.msra.mxu0 %v934
    %2518 = vmatprep.subr.bf16.mxu0 %v943
    %2519 = vmatpush1.bf16.msra.mxu0 %v942
    %2520 = vmatprep.subr.bf16.mxu0 %v951
    %2521 = vmatpush1.bf16.msra.mxu0 %v950
    %2522 = vmatprep.subr.bf16.mxu0 %v959
    %2523 = vmatpush1.bf16.msra.mxu0 %v958
    %2524 = vmatprep.subr.bf16.mxu0 %v967
    %2525 = vmatpush1.bf16.msra.mxu0 %v966
    %2526 = vmatprep.subr.bf16.mxu0 %v975
    %2527 = vmatpush1.bf16.msra.mxu0 %v974
    %2528 = vmatprep.subr.bf16.mxu0 %v983
    %2529 = vmatpush1.bf16.msra.mxu0 %v982
    %2530 = vmatprep.subr.bf16.mxu0 %v991
    %2531 = vmatpush1.bf16.msra.mxu0 %v990
    %2532 = vmatprep.subr.bf16.mxu0 %v999
    %2533 = vmatpush1.bf16.msra.mxu0 %v998
    %2534 = vmatprep.subr.bf16.mxu0 %v1007
    %2535 = vmatpush1.bf16.msra.mxu0 %v1006
    %2536 = vmatprep.subr.bf16.mxu0 %v1015
    %2537 = vmatpush1.bf16.msra.mxu0 %v1014
    %2538 = vmatprep.mubr.bf16.mxu0 %v2505
    %2539 = vmatmul.mubr.bf16.gmra.mrb[0].mxu0 %v2504
    %v2540 = vpop.f32.mrb[0].mxu0
    %v2541 = vadd.f32 0.0, %v2540
    %v2542 = vpop.f32.mrb[0].mxu0
    %v2543 = vadd.f32 0.0, %v2542
    %v2544 = vpop.f32.mrb[0].mxu0
    %v2545 = vpop.f32.mrb[0].mxu0
    %2546 = vdwg.mxu0
    %2547 = vmatprep.subr.bf16.mxu0 %v897
    %2548 = vmatpush1.bf16.msra.mxu0 %v896
    %2549 = vmatprep.subr.bf16.mxu0 %v905
    %2550 = vmatpush1.bf16.msra.mxu0 %v904
    %2551 = vmatprep.subr.bf16.mxu0 %v913
    %2552 = vmatpush1.bf16.msra.mxu0 %v912
    %2553 = vmatprep.subr.bf16.mxu0 %v921
    %2554 = vmatpush1.bf16.msra.mxu0 %v920
    %2555 = vmatprep.subr.bf16.mxu0 %v929
    %2556 = vmatpush1.bf16.msra.mxu0 %v928
    %2557 = vmatprep.subr.bf16.mxu0 %v937
    %2558 = vmatpush1.bf16.msra.mxu0 %v936
    %2559 = vmatprep.subr.bf16.mxu0 %v945
    %2560 = vmatpush1.bf16.msra.mxu0 %v944
    %2561 = vmatprep.subr.bf16.mxu0 %v953
    %2562 = vmatpush1.bf16.msra.mxu0 %v952
    %2563 = vmatprep.subr.bf16.mxu0 %v961
    %2564 = vmatpush1.bf16.msra.mxu0 %v960
    %2565 = vmatprep.subr.bf16.mxu0 %v969
    %2566 = vmatpush1.bf16.msra.mxu0 %v968
    %2567 = vmatprep.subr.bf16.mxu0 %v977
    %2568 = vmatpush1.bf16.msra.mxu0 %v976
    %2569 = vmatprep.subr.bf16.mxu0 %v985
    %2570 = vmatpush1.bf16.msra.mxu0 %v984
    %2571 = vmatprep.subr.bf16.mxu0 %v993
    %2572 = vmatpush1.bf16.msra.mxu0 %v992
    %2573 = vmatprep.subr.bf16.mxu0 %v1001
    %2574 = vmatpush1.bf16.msra.mxu0 %v1000
    %2575 = vmatprep.subr.bf16.mxu0 %v1009
    %2576 = vmatpush1.bf16.msra.mxu0 %v1008
    %2577 = vmatprep.subr.bf16.mxu0 %v1017
    %2578 = vmatpush1.bf16.msra.mxu0 %v1016
    %2579 = vmatprep.mubr.bf16.mxu0 %v2505
    %2580 = vmatmul.mubr.bf16.gmra.mrb[0].mxu0 %v2504
    %v2581 = vpop.f32.mrb[0].mxu0
    %v2582 = vadd.f32 0.0, %v2581
    %v2583 = vpop.f32.mrb[0].mxu0
    %v2584 = vadd.f32 0.0, %v2583
    %v2585 = vpop.f32.mrb[0].mxu0
    %v2586 = vpop.f32.mrb[0].mxu0
    %2587 = vdwg.mxu0
    %2588 = vmatprep.subr.bf16.mxu0 %v899
    %2589 = vmatpush1.bf16.msra.mxu0 %v898
    %2590 = vmatprep.subr.bf16.mxu0 %v907
    %2591 = vmatpush1.bf16.msra.mxu0 %v906
    %2592 = vmatprep.subr.bf16.mxu0 %v915
    %2593 = vmatpush1.bf16.msra.mxu0 %v914
    %2594 = vmatprep.subr.bf16.mxu0 %v923
    %2595 = vmatpush1.bf16.msra.mxu0 %v922
    %2596 = vmatprep.subr.bf16.mxu0 %v931
    %2597 = vmatpush1.bf16.msra.mxu0 %v930
    %2598 = vmatprep.subr.bf16.mxu0 %v939
    %2599 = vmatpush1.bf16.msra.mxu0 %v938
    %2600 = vmatprep.subr.bf16.mxu0 %v947
    %2601 = vmatpush1.bf16.msra.mxu0 %v946
    %2602 = vmatprep.subr.bf16.mxu0 %v955
    %2603 = vmatpush1.bf16.msra.mxu0 %v954
    %2604 = vmatprep.subr.bf16.mxu0 %v963
    %2605 = vmatpush1.bf16.msra.mxu0 %v962
    %2606 = vmatprep.subr.bf16.mxu0 %v971
    %2607 = vmatpush1.bf16.msra.mxu0 %v970
    %2608 = vmatprep.subr.bf16.mxu0 %v979
    %2609 = vmatpush1.bf16.msra.mxu0 %v978
    %2610 = vmatprep.subr.bf16.mxu0 %v987
    %2611 = vmatpush1.bf16.msra.mxu0 %v986
    %2612 = vmatprep.subr.bf16.mxu0 %v995
    %2613 = vmatpush1.bf16.msra.mxu0 %v994
    %2614 = vmatprep.subr.bf16.mxu0 %v1003
    %2615 = vmatpush1.bf16.msra.mxu0 %v1002
    %2616 = vmatprep.subr.bf16.mxu0 %v1011
    %2617 = vmatpush1.bf16.msra.mxu0 %v1010
    %2618 = vmatprep.subr.bf16.mxu0 %v1019
    %2619 = vmatpush1.bf16.msra.mxu0 %v1018
    %2620 = vmatprep.mubr.bf16.mxu0 %v2505
    %2621 = vmatmul.mubr.bf16.gmra.mrb[0].mxu0 %v2504
    %v2622 = vpop.f32.mrb[0].mxu0
    %v2623 = vadd.f32 0.0, %v2622
    %v2624 = vpop.f32.mrb[0].mxu0
    %v2625 = vadd.f32 0.0, %v2624
    %v2626 = vpop.f32.mrb[0].mxu0
    %v2627 = vpop.f32.mrb[0].mxu0
    %2628 = vdwg.mxu0
    %2629 = vmatprep.subr.bf16.mxu0 %v901
    %2630 = vmatpush1.bf16.msra.mxu0 %v900
    %2631 = vmatprep.subr.bf16.mxu0 %v909
    %2632 = vmatpush1.bf16.msra.mxu0 %v908
    %2633 = vmatprep.subr.bf16.mxu0 %v917
    %2634 = vmatpush1.bf16.msra.mxu0 %v916
    %2635 = vmatprep.subr.bf16.mxu0 %v925
    %2636 = vmatpush1.bf16.msra.mxu0 %v924
    %2637 = vmatprep.subr.bf16.mxu0 %v933
    %2638 = vmatpush1.bf16.msra.mxu0 %v932
    %2639 = vmatprep.subr.bf16.mxu0 %v941
    %2640 = vmatpush1.bf16.msra.mxu0 %v940
    %2641 = vmatprep.subr.bf16.mxu0 %v949
    %2642 = vmatpush1.bf16.msra.mxu0 %v948
    %2643 = vmatprep.subr.bf16.mxu0 %v957
    %2644 = vmatpush1.bf16.msra.mxu0 %v956
    %2645 = vmatprep.subr.bf16.mxu0 %v965
    %2646 = vmatpush1.bf16.msra.mxu0 %v964
    %2647 = vmatprep.subr.bf16.mxu0 %v973
    %2648 = vmatpush1.bf16.msra.mxu0 %v972
    %2649 = vmatprep.subr.bf16.mxu0 %v981
    %2650 = vmatpush1.bf16.msra.mxu0 %v980
    %2651 = vmatprep.subr.bf16.mxu0 %v989
    %2652 = vmatpush1.bf16.msra.mxu0 %v988
    %2653 = vmatprep.subr.bf16.mxu0 %v997
    %2654 = vmatpush1.bf16.msra.mxu0 %v996
    %2655 = vmatprep.subr.bf16.mxu0 %v1005
    %2656 = vmatpush1.bf16.msra.mxu0 %v1004
    %2657 = vmatprep.subr.bf16.mxu0 %v1013
    %2658 = vmatpush1.bf16.msra.mxu0 %v1012
    %2659 = vmatprep.subr.bf16.mxu0 %v1021
    %2660 = vmatpush1.bf16.msra.mxu0 %v1020
    %2661 = vmatprep.mubr.bf16.mxu0 %v2505
    %2662 = vmatmul.mubr.bf16.gmra.mrb[0].mxu0 %v2504
    %v2663 = vpop.f32.mrb[0].mxu0
    %v2664 = vadd.f32 0.0, %v2663
    %v2665 = vpop.f32.mrb[0].mxu0
    %v2666 = vadd.f32 0.0, %v2665
    %v2667 = vpop.f32.mrb[0].mxu0
    %v2668 = vpop.f32.mrb[0].mxu0
    %2669 = vdwg.mxu0
    %v2670 = vadd.f32 %v2623, %v463
    %v2671 = vadd.f32 %v2625, %v467
    %v2672 = vadd.f32 %v2664, %v471
    %v2673 = vadd.f32 %v2666, %v475
    %v2674 = vxor.u32 %v2670, 2147483648
    %v2675 = vxor.u32 %v2671, 2147483648
    %v2676 = vxor.u32 %v2672, 2147483648
    %v2677 = vmul.f32 %v2674, 1.442695
    %v2678 = vpow.pop %v2677
    %v2679 = vmul.f32 %v2675, 1.442695
    %v2680 = vpow.pop %v2679
    %v2681 = vmul.f32 %v2676, 1.442695
    %v2682 = vpow.pop %v2681
    %v2683 = vadd.f32 %v2678, 1.0
    %v2684 = vadd.f32 %v2680, 1.0
    %v2685 = vadd.f32 %v2682, 1.0
    %v2686 = vrcp.pop %v2683
    %v2687 = vmul.f32 1.0, %v2686
    %v2688 = vrcp.pop %v2684
    %v2689 = vmul.f32 1.0, %v2688
    %v2690 = vrcp.pop %v2685
    %v2691 = vmul.f32 1.0, %v2690
    %v2692 = vtanh.pop %v2673
    %v2693 = vmul.f32 %v2689, %v2469
    %v2694 = vmul.f32 %v2687, %v2692
    %v2695 = vadd.f32 %v2693, %v2694
    %v2696 = vtanh.pop %v2695
    %v2697 = vmul.f32 %v2691, %v2696
    %2698 = vst [vmem:[#allocation2 + $0x8] sm:$0xff] %v2697
    %v2699 = vadd.f32 %v253, %v2541
    %v2700 = vadd.f32 %v255, %v2543
    %v2701 = vadd.f32 %v326, %v2582
    %v2702 = vadd.f32 %v328, %v2584
    %v2703 = vxor.u32 %v2699, 2147483648
    %v2704 = vxor.u32 %v2700, 2147483648
    %v2705 = vxor.u32 %v2701, 2147483648
    %v2706 = vmul.f32 %v2703, 1.442695
    %v2707 = vpow.pop %v2706
    %v2708 = vmul.f32 %v2704, 1.442695
    %v2709 = vpow.pop %v2708
    %v2710 = vmul.f32 %v2705, 1.442695
    %v2711 = vpow.pop %v2710
    %v2712 = vadd.f32 %v2707, 1.0
    %v2713 = vadd.f32 %v2709, 1.0
    %v2714 = vadd.f32 %v2711, 1.0
    %v2715 = vrcp.pop %v2712
    %v2716 = vmul.f32 1.0, %v2715
    %v2717 = vrcp.pop %v2713
    %v2718 = vmul.f32 1.0, %v2717
    %v2719 = vrcp.pop %v2714
    %v2720 = vmul.f32 1.0, %v2719
    %v2721 = vtanh.pop %v2702
    %v2722 = vmul.f32 %v2718, %v2498
    %v2723 = vmul.f32 %v2716, %v2721
    %v2724 = vadd.f32 %v2722, %v2723
    %v2725 = vtanh.pop %v2724
    %v2726 = vmul.f32 %v2720, %v2725
    %2727 = vst [vmem:[#allocation2] sm:$0xff] %v2726
    %v2728 = vld [vmem:[#allocation2] sm:$0xff]
    %v2729 = vld [vmem:[#allocation2 + $0x8] sm:$0xff]
    %v2730 = vpack.c.bf16 %v2728, %v2728
    %v2731 = vpack.c.bf16 %v2729, %v2729
    %2732 = vmatprep.subr.bf16.mxu0 %v899
    %2733 = vmatpush1.bf16.msra.mxu0 %v898
    %2734 = vmatprep.subr.bf16.mxu0 %v907
    %2735 = vmatpush1.bf16.msra.mxu0 %v906
    %2736 = vmatprep.subr.bf16.mxu0 %v915
    %2737 = vmatpush1.bf16.msra.mxu0 %v914
    %2738 = vmatprep.subr.bf16.mxu0 %v923
    %2739 = vmatpush1.bf16.msra.mxu0 %v922
    %2740 = vmatprep.subr.bf16.mxu0 %v931
    %2741 = vmatpush1.bf16.msra.mxu0 %v930
    %2742 = vmatprep.subr.bf16.mxu0 %v939
    %2743 = vmatpush1.bf16.msra.mxu0 %v938
    %2744 = vmatprep.subr.bf16.mxu0 %v947
    %2745 = vmatpush1.bf16.msra.mxu0 %v946
    %2746 = vmatprep.subr.bf16.mxu0 %v955
    %2747 = vmatpush1.bf16.msra.mxu0 %v954
    %2748 = vmatprep.subr.bf16.mxu0 %v963
    %2749 = vmatpush1.bf16.msra.mxu0 %v962
    %2750 = vmatprep.subr.bf16.mxu0 %v971
    %2751 = vmatpush1.bf16.msra.mxu0 %v970
    %2752 = vmatprep.subr.bf16.mxu0 %v979
    %2753 = vmatpush1.bf16.msra.mxu0 %v978
    %2754 = vmatprep.subr.bf16.mxu0 %v987
    %2755 = vmatpush1.bf16.msra.mxu0 %v986
    %2756 = vmatprep.subr.bf16.mxu0 %v995
    %2757 = vmatpush1.bf16.msra.mxu0 %v994
    %2758 = vmatprep.subr.bf16.mxu0 %v1003
    %2759 = vmatpush1.bf16.msra.mxu0 %v1002
    %2760 = vmatprep.subr.bf16.mxu0 %v1011
    %2761 = vmatpush1.bf16.msra.mxu0 %v1010
    %2762 = vmatprep.subr.bf16.mxu0 %v1019
    %2763 = vmatpush1.bf16.msra.mxu0 %v1018
    %2764 = vmatprep.mubr.bf16.mxu0 %v2731
    %2765 = vmatmul.mubr.bf16.gmra.mrb[0].mxu0 %v2730
    %v2766 = vpop.f32.mrb[0].mxu0
    %v2767 = vadd.f32 0.0, %v2766
    %v2768 = vpop.f32.mrb[0].mxu0
    %v2769 = vadd.f32 0.0, %v2768
    %v2770 = vpop.f32.mrb[0].mxu0
    %v2771 = vpop.f32.mrb[0].mxu0
    %2772 = vdwg.mxu0
    %2773 = vmatprep.subr.bf16.mxu0 %v901
    %2774 = vmatpush1.bf16.msra.mxu0 %v900
    %2775 = vmatprep.subr.bf16.mxu0 %v909
    %2776 = vmatpush1.bf16.msra.mxu0 %v908
    %2777 = vmatprep.subr.bf16.mxu0 %v917
    %2778 = vmatpush1.bf16.msra.mxu0 %v916
    %2779 = vmatprep.subr.bf16.mxu0 %v925
    %2780 = vmatpush1.bf16.msra.mxu0 %v924
    %2781 = vmatprep.subr.bf16.mxu0 %v933
    %2782 = vmatpush1.bf16.msra.mxu0 %v932
    %2783 = vmatprep.subr.bf16.mxu0 %v941
    %2784 = vmatpush1.bf16.msra.mxu0 %v940
    %2785 = vmatprep.subr.bf16.mxu0 %v949
    %2786 = vmatpush1.bf16.msra.mxu0 %v948
    %2787 = vmatprep.subr.bf16.mxu0 %v957
    %2788 = vmatpush1.bf16.msra.mxu0 %v956
    %2789 = vmatprep.subr.bf16.mxu0 %v965
    %2790 = vmatpush1.bf16.msra.mxu0 %v964
    %2791 = vmatprep.subr.bf16.mxu0 %v973
    %2792 = vmatpush1.bf16.msra.mxu0 %v972
    %2793 = vmatprep.subr.bf16.mxu0 %v981
    %2794 = vmatpush1.bf16.msra.mxu0 %v980
    %2795 = vmatprep.subr.bf16.mxu0 %v989
    %2796 = vmatpush1.bf16.msra.mxu0 %v988
    %2797 = vmatprep.subr.bf16.mxu0 %v997
    %2798 = vmatpush1.bf16.msra.mxu0 %v996
    %2799 = vmatprep.subr.bf16.mxu0 %v1005
    %2800 = vmatpush1.bf16.msra.mxu0 %v1004
    %2801 = vmatprep.subr.bf16.mxu0 %v1013
    %2802 = vmatpush1.bf16.msra.mxu0 %v1012
    %2803 = vmatprep.subr.bf16.mxu0 %v1021
    %2804 = vmatpush1.bf16.msra.mxu0 %v1020
    %2805 = vmatprep.mubr.bf16.mxu0 %v2731
    %2806 = vmatmul.mubr.bf16.gmra.mrb[0].mxu0 %v2730
    %v2807 = vpop.f32.mrb[0].mxu0
    %v2808 = vadd.f32 0.0, %v2807
    %v2809 = vpop.f32.mrb[0].mxu0
    %v2810 = vadd.f32 0.0, %v2809
    %v2811 = vpop.f32.mrb[0].mxu0
    %v2812 = vpop.f32.mrb[0].mxu0
    %2813 = vdwg.mxu0
    %v2814 = vadd.f32 %v2767, %v463
    %v2815 = vadd.f32 %v2769, %v467
    %v2816 = vadd.f32 %v2808, %v471
    %v2817 = vadd.f32 %v2810, %v475
    %v2818 = vxor.u32 %v2814, 2147483648
    %v2819 = vxor.u32 %v2815, 2147483648
    %v2820 = vxor.u32 %v2816, 2147483648
    %v2821 = vmul.f32 %v2818, 1.442695
    %v2822 = vpow.pop %v2821
    %v2823 = vmul.f32 %v2819, 1.442695
    %v2824 = vpow.pop %v2823
    %v2825 = vmul.f32 %v2820, 1.442695
    %v2826 = vpow.pop %v2825
    %v2827 = vadd.f32 %v2822, 1.0
    %v2828 = vadd.f32 %v2824, 1.0
    %v2829 = vadd.f32 %v2826, 1.0
    %v2830 = vrcp.pop %v2827
    %v2831 = vmul.f32 1.0, %v2830
    %v2832 = vrcp.pop %v2828
    %v2833 = vmul.f32 1.0, %v2832
    %v2834 = vrcp.pop %v2829
    %v2835 = vmul.f32 1.0, %v2834
    %v2836 = vtanh.pop %v2817
    %v2837 = vmul.f32 %v2833, %v2695
    %v2838 = vmul.f32 %v2831, %v2836
    %v2839 = vadd.f32 %v2837, %v2838
    %v2840 = vtanh.pop %v2839
    %v2841 = vmul.f32 %v2835, %v2840
    %2842 = vst [vmem:[#allocation2 + $0x8] sm:$0xff] %v2841
    %v2843 = vpack.c.bf16 %v2841, %v2841
    %v2844 = vld [vmem:[%s5] sm:$0xf]
    %v2845 = vld [vmem:[%s5 + $0x4] sm:$0xf]
    %v2846 = vld [vmem:[%s5 + $0x8] sm:$0xf]
    %v2847 = vld [vmem:[%s5 + $0xc] sm:$0xf]
    %v2848 = vld [vmem:[%s5 + $0x10] sm:$0xf]
    %v2849 = vld [vmem:[%s5 + $0x14] sm:$0xf]
    %v2850 = vld [vmem:[%s5 + $0x18] sm:$0xf]
    %v2851 = vld [vmem:[%s5 + $0x1c] sm:$0xf]
    %v2852 = vld [vmem:[%s5 + $0x20] sm:$0xf]
    %v2853 = vld [vmem:[%s5 + $0x24] sm:$0xf]
    %v2854 = vld [vmem:[%s5 + $0x28] sm:$0xf]
    %v2855 = vld [vmem:[%s5 + $0x2c] sm:$0xf]
    %v2856 = vld [vmem:[%s5 + $0x30] sm:$0xf]
    %v2857 = vld [vmem:[%s5 + $0x34] sm:$0xf]
    %v2858 = vld [vmem:[%s5 + $0x38] sm:$0xf]
    %v2859 = vld [vmem:[%s5 + $0x3c] sm:$0xf]
    %v2860 = vld [vmem:[%s6] sm:$0x1]
    %v2862 = vlaneseq
    %v2863 = vshrl.u32 %v2862, 7
    %v2864 = vsub.s32 0, %v2863
    %v2865 = vrot.slane %v2860, %v2864
    %v2883 = vunpack.c.l.b16 %v2844
    %v2884 = vunpack.c.l.b16 %v2845
    %v2885 = vunpack.c.l.b16 %v2846
    %v2886 = vunpack.c.l.b16 %v2847
    %v2887 = vunpack.c.l.b16 %v2848
    %v2888 = vunpack.c.l.b16 %v2849
    %v2889 = vunpack.c.l.b16 %v2850
    %v2890 = vunpack.c.l.b16 %v2851
    %v2891 = vunpack.c.l.b16 %v2852
    %v2892 = vunpack.c.l.b16 %v2853
    %v2893 = vunpack.c.l.b16 %v2854
    %v2894 = vunpack.c.l.b16 %v2855
    %v2895 = vunpack.c.l.b16 %v2856
    %v2896 = vunpack.c.l.b16 %v2857
    %v2897 = vunpack.c.l.b16 %v2858
    %v2898 = vunpack.c.l.b16 %v2859
    %v2899 = vpack.c.b16 %v2884, %v2883
    %v2900 = vpack.c.b16 %v2886, %v2885
    %v2901 = vpack.c.b16 %v2888, %v2887
    %v2902 = vpack.c.b16 %v2890, %v2889
    %v2903 = vpack.c.b16 %v2892, %v2891
    %v2904 = vpack.c.b16 %v2894, %v2893
    %v2905 = vpack.c.b16 %v2896, %v2895
    %v2906 = vpack.c.b16 %v2898, %v2897
    %2915 = vmatprep.subr.bf16.mxu0 0
    %2916 = vmatpush1.bf16.msra.mxu0 %v2899
    %2917 = vmatprep.subr.bf16.mxu0 0
    %2918 = vmatpush1.bf16.msra.mxu0 %v2900
    %2919 = vmatprep.subr.bf16.mxu0 0
    %2920 = vmatpush1.bf16.msra.mxu0 %v2901
    %2921 = vmatprep.subr.bf16.mxu0 0
    %2922 = vmatpush1.bf16.msra.mxu0 %v2902
    %2923 = vmatprep.subr.bf16.mxu0 0
    %2924 = vmatpush1.bf16.msra.mxu0 %v2903
    %2925 = vmatprep.subr.bf16.mxu0 0
    %2926 = vmatpush1.bf16.msra.mxu0 %v2904
    %2927 = vmatprep.subr.bf16.mxu0 0
    %2928 = vmatpush1.bf16.msra.mxu0 %v2905
    %2929 = vmatprep.subr.bf16.mxu0 0
    %2930 = vmatpush1.bf16.msra.mxu0 %v2906
    %2931 = vmatprep.subr.bf16.mxu0 0
    %2932 = vmatpush1.bf16.msra.mxu0 0
    %2933 = vmatprep.subr.bf16.mxu0 0
    %2934 = vmatpush1.bf16.msra.mxu0 0
    %2935 = vmatprep.subr.bf16.mxu0 0
    %2936 = vmatpush1.bf16.msra.mxu0 0
    %2937 = vmatprep.subr.bf16.mxu0 0
    %2938 = vmatpush1.bf16.msra.mxu0 0
    %2939 = vmatprep.subr.bf16.mxu0 0
    %2940 = vmatpush1.bf16.msra.mxu0 0
    %2941 = vmatprep.subr.bf16.mxu0 0
    %2942 = vmatpush1.bf16.msra.mxu0 0
    %2943 = vmatprep.subr.bf16.mxu0 0
    %2944 = vmatpush1.bf16.msra.mxu0 0
    %2945 = vmatprep.subr.bf16.mxu0 0
    %2946 = vmatpush1.bf16.msra.mxu0 0
    %2947 = vmatprep.mubr.bf16.mxu0 0
    %2948 = vmatmul.mubr.bf16.gmra.mrb[0].mxu0 %v2843
    %v2949 = vpop.f32.mrb[0].mxu0
    %v2950 = vadd.f32 %v2865, %v2949
    %v2951 = vpop.f32.mrb[0].mxu0
    %v2952 = vpop.f32.mrb[0].mxu0
    %v2953 = vpop.f32.mrb[0].mxu0
    %2954 = vdwg.mxu0
    %v2955 = vmax.f32 %v2950, 0.0
    %v2956 = vpack.c.bf16 %v2955, %v2955
    %v2957 = vld [vmem:[#allocation9] sm:$0xf]
    %v2958 = vld [vmem:[#allocation9 + $0x4] sm:$0xf]
    %v2959 = vld [vmem:[#allocation9 + $0x8] sm:$0xf]
    %v2960 = vld [vmem:[#allocation9 + $0xc] sm:$0xf]
    %v2961 = vld [vmem:[#allocation9 + $0x10] sm:$0xf]
    %v2962 = vld [vmem:[#allocation9 + $0x14] sm:$0xf]
    %v2963 = vld [vmem:[#allocation9 + $0x18] sm:$0xf]
    %v2964 = vld [vmem:[#allocation9 + $0x1c] sm:$0xf]
    %v2965 = vld [vmem:[#allocation9 + $0x20] sm:$0xf]
    %v2966 = vld [vmem:[#allocation9 + $0x24] sm:$0xf]
    %v2967 = vld [vmem:[#allocation9 + $0x28] sm:$0xf]
    %v2968 = vld [vmem:[#allocation9 + $0x2c] sm:$0xf]
    %v2969 = vld [vmem:[#allocation9 + $0x30] sm:$0xf]
    %v2970 = vld [vmem:[#allocation9 + $0x34] sm:$0xf]
    %v2971 = vld [vmem:[#allocation9 + $0x38] sm:$0xf]
    %v2972 = vld [vmem:[#allocation9 + $0x3c] sm:$0xf]
    %v2973 = vld [vmem:[%s8] sm:$0x1]
    %v2975 = vlaneseq
    %v2976 = vshrl.u32 %v2975, 7
    %v2977 = vsub.s32 0, %v2976
    %v2978 = vrot.slane %v2973, %v2977
    %v2996 = vunpack.c.l.b16 %v2957
    %v2997 = vunpack.c.l.b16 %v2958
    %v2998 = vunpack.c.l.b16 %v2959
    %v2999 = vunpack.c.l.b16 %v2960
    %v3000 = vunpack.c.l.b16 %v2961
    %v3001 = vunpack.c.l.b16 %v2962
    %v3002 = vunpack.c.l.b16 %v2963
    %v3003 = vunpack.c.l.b16 %v2964
    %v3004 = vunpack.c.l.b16 %v2965
    %v3005 = vunpack.c.l.b16 %v2966
    %v3006 = vunpack.c.l.b16 %v2967
    %v3007 = vunpack.c.l.b16 %v2968
    %v3008 = vunpack.c.l.b16 %v2969
    %v3009 = vunpack.c.l.b16 %v2970
    %v3010 = vunpack.c.l.b16 %v2971
    %v3011 = vunpack.c.l.b16 %v2972
    %v3012 = vpack.c.b16 %v2997, %v2996
    %v3013 = vpack.c.b16 %v2999, %v2998
    %v3014 = vpack.c.b16 %v3001, %v3000
    %v3015 = vpack.c.b16 %v3003, %v3002
    %v3016 = vpack.c.b16 %v3005, %v3004
    %v3017 = vpack.c.b16 %v3007, %v3006
    %v3018 = vpack.c.b16 %v3009, %v3008
    %v3019 = vpack.c.b16 %v3011, %v3010
    %3028 = vmatprep.subr.bf16.mxu0 0
    %3029 = vmatpush1.bf16.msra.mxu0 %v3012
    %3030 = vmatprep.subr.bf16.mxu0 0
    %3031 = vmatpush1.bf16.msra.mxu0 %v3013
    %3032 = vmatprep.subr.bf16.mxu0 0
    %3033 = vmatpush1.bf16.msra.mxu0 %v3014
    %3034 = vmatprep.subr.bf16.mxu0 0
    %3035 = vmatpush1.bf16.msra.mxu0 %v3015
    %3036 = vmatprep.subr.bf16.mxu0 0
    %3037 = vmatpush1.bf16.msra.mxu0 %v3016
    %3038 = vmatprep.subr.bf16.mxu0 0
    %3039 = vmatpush1.bf16.msra.mxu0 %v3017
    %3040 = vmatprep.subr.bf16.mxu0 0
    %3041 = vmatpush1.bf16.msra.mxu0 %v3018
    %3042 = vmatprep.subr.bf16.mxu0 0
    %3043 = vmatpush1.bf16.msra.mxu0 %v3019
    %3044 = vmatprep.subr.bf16.mxu0 0
    %3045 = vmatpush1.bf16.msra.mxu0 0
    %3046 = vmatprep.subr.bf16.mxu0 0
    %3047 = vmatpush1.bf16.msra.mxu0 0
    %3048 = vmatprep.subr.bf16.mxu0 0
    %3049 = vmatpush1.bf16.msra.mxu0 0
    %3050 = vmatprep.subr.bf16.mxu0 0
    %3051 = vmatpush1.bf16.msra.mxu0 0
    %3052 = vmatprep.subr.bf16.mxu0 0
    %3053 = vmatpush1.bf16.msra.mxu0 0
    %3054 = vmatprep.subr.bf16.mxu0 0
    %3055 = vmatpush1.bf16.msra.mxu0 0
    %3056 = vmatprep.subr.bf16.mxu0 0
    %3057 = vmatpush1.bf16.msra.mxu0 0
    %3058 = vmatprep.subr.bf16.mxu0 0
    %3059 = vmatpush1.bf16.msra.mxu0 0
    %3060 = vmatprep.mubr.bf16.mxu0 0
    %3061 = vmatmul.mubr.bf16.gmra.mrb[0].mxu0 %v2956
    %v3062 = vpop.f32.mrb[0].mxu0
    %v3063 = vadd.f32 %v2978, %v3062
    %v3064 = vpop.f32.mrb[0].mxu0
    %v3065 = vpop.f32.mrb[0].mxu0
    %v3066 = vpop.f32.mrb[0].mxu0
    %3067 = vdwg.mxu0
    %v3068 = vmax.f32 %v3063, 0.0
    %v3069 = vpack.c.bf16 %v3068, %v3068
    %v3070 = vld [vmem:[#allocation11] sm:$0xf]
    %v3071 = vld [vmem:[#allocation11 + $0x4] sm:$0xf]
    %v3072 = vld [vmem:[#allocation11 + $0x8] sm:$0xf]
    %v3073 = vld [vmem:[#allocation11 + $0xc] sm:$0xf]
    %v3074 = vld [vmem:[#allocation11 + $0x10] sm:$0xf]
    %v3075 = vld [vmem:[#allocation11 + $0x14] sm:$0xf]
    %v3076 = vld [vmem:[#allocation11 + $0x18] sm:$0xf]
    %v3077 = vld [vmem:[#allocation11 + $0x1c] sm:$0xf]
    %v3078 = vld [vmem:[#allocation11 + $0x20] sm:$0xf]
    %v3079 = vld [vmem:[#allocation11 + $0x24] sm:$0xf]
    %v3080 = vld [vmem:[#allocation11 + $0x28] sm:$0xf]
    %v3081 = vld [vmem:[#allocation11 + $0x2c] sm:$0xf]
    %v3082 = vld [vmem:[#allocation11 + $0x30] sm:$0xf]
    %v3083 = vld [vmem:[#allocation11 + $0x34] sm:$0xf]
    %v3084 = vld [vmem:[#allocation11 + $0x38] sm:$0xf]
    %v3085 = vld [vmem:[#allocation11 + $0x3c] sm:$0xf]
    %v3086 = vld [vmem:[%s10] sm:$0x1]
    %v3088 = vlaneseq
    %v3089 = vshrl.u32 %v3088, 7
    %v3090 = vsub.s32 0, %v3089
    %v3091 = vrot.slane %v3086, %v3090
    %v3109 = vunpack.c.l.b16 %v3070
    %v3110 = vunpack.c.l.b16 %v3071
    %v3111 = vunpack.c.l.b16 %v3072
    %v3112 = vunpack.c.l.b16 %v3073
    %v3113 = vunpack.c.l.b16 %v3074
    %v3114 = vunpack.c.l.b16 %v3075
    %v3115 = vunpack.c.l.b16 %v3076
    %v3116 = vunpack.c.l.b16 %v3077
    %v3117 = vunpack.c.l.b16 %v3078
    %v3118 = vunpack.c.l.b16 %v3079
    %v3119 = vunpack.c.l.b16 %v3080
    %v3120 = vunpack.c.l.b16 %v3081
    %v3121 = vunpack.c.l.b16 %v3082
    %v3122 = vunpack.c.l.b16 %v3083
    %v3123 = vunpack.c.l.b16 %v3084
    %v3124 = vunpack.c.l.b16 %v3085
    %v3125 = vpack.c.b16 %v3110, %v3109
    %v3126 = vpack.c.b16 %v3112, %v3111
    %v3127 = vpack.c.b16 %v3114, %v3113
    %v3128 = vpack.c.b16 %v3116, %v3115
    %v3129 = vpack.c.b16 %v3118, %v3117
    %v3130 = vpack.c.b16 %v3120, %v3119
    %v3131 = vpack.c.b16 %v3122, %v3121
    %v3132 = vpack.c.b16 %v3124, %v3123
    %3141 = vmatprep.subr.bf16.mxu0 0
    %3142 = vmatpush1.bf16.msra.mxu0 %v3125
    %3143 = vmatprep.subr.bf16.mxu0 0
    %3144 = vmatpush1.bf16.msra.mxu0 %v3126
    %3145 = vmatprep.subr.bf16.mxu0 0
    %3146 = vmatpush1.bf16.msra.mxu0 %v3127
    %3147 = vmatprep.subr.bf16.mxu0 0
    %3148 = vmatpush1.bf16.msra.mxu0 %v3128
    %3149 = vmatprep.subr.bf16.mxu0 0
    %3150 = vmatpush1.bf16.msra.mxu0 %v3129
    %3151 = vmatprep.subr.bf16.mxu0 0
    %3152 = vmatpush1.bf16.msra.mxu0 %v3130
    %3153 = vmatprep.subr.bf16.mxu0 0
    %3154 = vmatpush1.bf16.msra.mxu0 %v3131
    %3155 = vmatprep.subr.bf16.mxu0 0
    %3156 = vmatpush1.bf16.msra.mxu0 %v3132
    %3157 = vmatprep.subr.bf16.mxu0 0
    %3158 = vmatpush1.bf16.msra.mxu0 0
    %3159 = vmatprep.subr.bf16.mxu0 0
    %3160 = vmatpush1.bf16.msra.mxu0 0
    %3161 = vmatprep.subr.bf16.mxu0 0
    %3162 = vmatpush1.bf16.msra.mxu0 0
    %3163 = vmatprep.subr.bf16.mxu0 0
    %3164 = vmatpush1.bf16.msra.mxu0 0
    %3165 = vmatprep.subr.bf16.mxu0 0
    %3166 = vmatpush1.bf16.msra.mxu0 0
    %3167 = vmatprep.subr.bf16.mxu0 0
    %3168 = vmatpush1.bf16.msra.mxu0 0
    %3169 = vmatprep.subr.bf16.mxu0 0
    %3170 = vmatpush1.bf16.msra.mxu0 0
    %3171 = vmatprep.subr.bf16.mxu0 0
    %3172 = vmatpush1.bf16.msra.mxu0 0
    %3173 = vmatprep.mubr.bf16.mxu0 0
    %3174 = vmatmul.mubr.bf16.gmra.mrb[0].mxu0 %v3069
    %v3175 = vpop.f32.mrb[0].mxu0
    %v3176 = vadd.f32 %v3091, %v3175
    %v3177 = vpop.f32.mrb[0].mxu0
    %v3178 = vpop.f32.mrb[0].mxu0
    %v3179 = vpop.f32.mrb[0].mxu0
    %3180 = vdwg.mxu0
    %3181 = vst [vmem:[#allocation12] sm:$0xff] %v3176
    // Predicated region
    $region66: #{tpu_custom_call.1} parent=1 // pred_check
      _
    $region67: #{tpu_custom_call.1} parent=1 // pred_check_branch
      %3183 = sbr.rel (0) target = $region69
    $region68: #{tpu_custom_call.1} parent=1 // pred_region
      %s3185 = ssub.s32 128, 128
      %3186 = vsyncadd [#allocation5], %s3185
      %s3188 = sshll.u32 [#allocation12], 4
      %s3189 = int_to_ptr.vmem [resolvable:$true] %s3188
      %3191 = dma.vmem_to_hbm [thread:$0]  %s3189, 128, %s11, [#allocation5]
    $region69: #{tpu_custom_call.1} parent=1 // pred_fallthru
      _
    // Predicated region
    $region70: #{tpu_custom_call.1} parent=1 // pred_check
      _
    $region71: #{tpu_custom_call.1} parent=1 // pred_check_branch
      %3193 = sbr.rel (0) target = $region73
    $region72: #{tpu_custom_call.1} parent=1 // pred_region
      %3194 = dma.done [#allocation5], 128
    $region73: #{tpu_custom_call.1} parent=1 // pred_fallthru
      _
    %3195 = vsyncpa [#allocation4], 1
    %3196 = vsyncpa [#allocation7], 1
    %3197 = vsyncpa [#allocation10], 1
    %3198 = vsyncpa [#allocation5], 1

</llo_original>
